<compile_context>
chip_gen: v7x
topology: tpu7x:2x2x1
jax: 0.10.0
libtpu: 0.0.40
codegen_flags: <defaults>
</compile_context>

<pallas_src>
import jax
import jax.numpy as jnp
from jax.experimental import pallas as pl
from jax.experimental.pallas import tpu as pltpu

EPS = 1e-5                       # GroupNorm default eps
VMEM_LIMIT_BYTES = 48 * 1024 * 1024   # <= v7x physical (64 MiB), > v5e default (16 MiB)


# ----------------------------- in-kernel helpers -----------------------------

def _inorm(y, gamma, beta, inv_n):
    """Per-channel instance norm over the lane (flattened-spatial) axis.

    y: (C, HW) f32; gamma, beta: (C, 1) f32. Single-pass stats, clamped var.
    """
    mean = jnp.sum(y, axis=-1, keepdims=True) * inv_n
    ex2 = jnp.sum(y * y, axis=-1, keepdims=True) * inv_n
    var = jnp.maximum(ex2 - mean * mean, 0.0)
    return (y - mean) * jax.lax.rsqrt(var + EPS) * gamma + beta


def _shift(a, s):
    """b[:, p] = a[:, p + s]; positions reading past either end are zero."""
    if s == 0:
        return a
    rows = a.shape[0]
    if s > 0:
        return jnp.concatenate([a[:, s:], jnp.zeros((rows, s), a.dtype)], axis=1)
    return jnp.concatenate([jnp.zeros((rows, -s), a.dtype), a[:, :s]], axis=1)


def _col_masks(H, W):
    """Destination-validity masks for horizontal taps (hoisted, one per size)."""
    col = jax.lax.broadcasted_iota(jnp.int32, (1, H * W), 1) % W
    return col != 0, col != (W - 1)        # valid when reading w-1 / w+1


def _conv3x3(a, w_ref, ok_m1, ok_p1, W):
    """3x3 / stride-1 / pad-1 conv in (C, H*W) layout.

    a: (Cin, HW) f32.  w_ref: (3, Cout, 3*Cin) ref in the matmul dtype, where
    w_ref[ky][:, kx*Cin:(kx+1)*Cin] is the (Cout, Cin) tap (dy, dx)=(ky-1, kx-1).
    The three dx-shifted activation copies are stacked channel-wise so each of
    the 3 matmuls contracts K = 3*Cin.  Returns f32 (Cout, HW).
    """
    md = w_ref.dtype
    a = a.astype(md)
    left = jnp.where(ok_m1, _shift(a, -1), 0)     # reads w-1   (kx = 0)
    right = jnp.where(ok_p1, _shift(a, +1), 0)    # reads w+1   (kx = 2)
    stack = jnp.concatenate([left, a, right], axis=0)        # (3*Cin, HW)

    acc = None
    for ky, dy in ((0, -1), (1, 0), (2, 1)):
        # vertical shift by a whole row; the zero fill is exactly the border.
        sh = stack if dy == 0 else _shift(stack, dy * W)
        d = jnp.dot(w_ref[ky], sh, preferred_element_type=jnp.float32)
        acc = d if acc is None else acc + d
    return acc


def _pool2x2(y, pw, H, W):
    """Exact 2x2 / stride-2 average pool in (C, H*W) layout.

    Row pairs are summed on the VPU; the W-direction reduction is a tiny
    (W, W/2) matmul (pw[w, w//2] = 0.25) per output row.  No O(HW^2) pooling
    matrix, no in-kernel reshapes.  y: (C, HW) f32 -> (C, (H/2)*(W/2)) f32.
    """
    md = pw.dtype
    pieces = []
    for ho in range(H // 2):
        top = y[:, (2 * ho) * W:(2 * ho + 1) * W]
        bot = y[:, (2 * ho + 1) * W:(2 * ho + 2) * W]
        pieces.append(jnp.dot((top + bot).astype(md), pw,
                              preferred_element_type=jnp.float32))
    return jnp.concatenate(pieces, axis=1)


# --------------------------------- kernel ------------------------------------

def _make_kernel(H, W, Cin, Cp, stride, use_shortcut):
    HW = H * W
    need_pool = stride != 1
    Hc, Wc = (H // 2, W // 2) if need_pool else (H, W)
    HWc = Hc * Wc

    def kernel(*refs):
        it = iter(refs)
        x_ref = next(it)
        w1_ref, g1_ref, b1_ref = next(it), next(it), next(it)
        w2_ref, g2_ref, b2_ref = next(it), next(it), next(it)
        pw_ref = next(it) if need_pool else None
        ws_ref = gs_ref = bs_ref = None
        if use_shortcut:
            ws_ref, gs_ref, bs_ref = next(it), next(it), next(it)
        o_ref = next(it)

        # hoisted border masks (one set per conv spatial size) and constants
        ok1_m1, ok1_p1 = _col_masks(H, W)
        if need_pool:
            ok2_m1, ok2_p1 = _col_masks(Hc, Wc)
            pw = pw_ref[...]
        else:
            ok2_m1, ok2_p1 = ok1_m1, ok1_p1
            pw = None

        x = x_ref[...]                                     # (Cin, HW) f32

        # main path: conv1 -> instance norm -> relu
        y = _conv3x3(x, w1_ref, ok1_m1, ok1_p1, W)         # (Cp, HW) f32
        y = jnp.maximum(_inorm(y, g1_ref[...], b1_ref[...], 1.0 / HW), 0.0)

        if need_pool:                                      # 2x2 avg-pool
            y = _pool2x2(y, pw, H, W)                      # (Cp, HWc)

        # conv2 -> instance norm
        y = _conv3x3(y, w2_ref, ok2_m1, ok2_p1, Wc)        # (Cp, HWc)
        y = _inorm(y, g2_ref[...], b2_ref[...], 1.0 / HWc)

        # shortcut
        if use_shortcut:
            # pool first (commutes with the 1x1 conv): 4x fewer MXU FLOPs.
            s = _pool2x2(x, pw, H, W)                      # (Cin, HWc)
            ws = ws_ref[...]                               # (Cp, Cin)
            s = jnp.dot(ws, s.astype(ws.dtype),
                        preferred_element_type=jnp.float32)
            s = _inorm(s, gs_ref[...], bs_ref[...], 1.0 / HWc)
        else:
            s = x                                          # identity (Cin == Cp)

        o_ref[...] = jnp.maximum(y + s, 0.0)

    return kernel


# -------------------------------- wrapper ------------------------------------

def _pool_w_matrix(W, dtype):
    """(W, W/2) matrix with 0.25 at [w, w//2] -- lossless in bf16."""
    p = jnp.arange(W)
    return jnp.zeros((W, W // 2), jnp.float32).at[p, p // 2].set(0.25).astype(dtype)


def _conv_weight(w_oihw, md):
    """(O, I, 3, 3) -> (3, O, 3*I), tap layout [ky][o, kx*I + i]."""
    O, I = w_oihw.shape[0], w_oihw.shape[1]
    return jnp.transpose(w_oihw, (2, 0, 3, 1)).reshape(3, O, 3 * I).astype(md)


def basic_block_ap_forward(x_nchw, params, stride, *, matmul_dtype=jnp.bfloat16):
    """Forward pass of BasicBlock_AP (norm='instancenorm').

    x_nchw: (N, Cin, H, W) float32 -> (N, Cp, Ho, Wo) float32.
    matmul_dtype: dtype of conv/pool matmul operands (accumulation always f32).
    """
    N, Cin, H, W = x_nchw.shape
    Cp = params["w1"].shape[0]
    use_shortcut = (stride != 1) or (Cin != Cp)
    if use_shortcut and stride == 1:
        # Same restriction as the PyTorch module: its projection shortcut always
        # AvgPool2d(2,2)s, so a stride-1 projection block cannot add shapes there.
        raise ValueError("BasicBlock_AP projection shortcut requires stride != 1")
    need_pool = stride != 1
    if need_pool and (H % 2 or W % 2):
        raise ValueError("even H, W required when pooling")
    Ho, Wo = (H // 2, W // 2) if need_pool else (H, W)
    HW, HWo = H * W, Ho * Wo

    md = jnp.dtype(matmul_dtype)
    f32 = jnp.float32

    # NCHW per sample is already channels-major (C, H*W): reshape only.
    x = x_nchw.reshape(N, Cin, HW).astype(f32)
    w1 = _conv_weight(params["w1"], md)                    # (3, Cp, 3*Cin)
    w2 = _conv_weight(params["w2"], md)                    # (3, Cp, 3*Cp)
    g1 = params["g1"].reshape(Cp, 1).astype(f32)
    b1 = params["b1"].reshape(Cp, 1).astype(f32)
    g2 = params["g2"].reshape(Cp, 1).astype(f32)
    b2 = params["b2"].reshape(Cp, 1).astype(f32)

    def const(shape):
        # Full-array block, constant index map (fetched once), single-buffered.
        return pl.BlockSpec(shape, lambda n: (0,) * len(shape),
                            pipeline_mode=pl.Buffered(1))

    inputs = [x, w1, g1, b1, w2, g2, b2]
    in_specs = [
        pl.BlockSpec((None, Cin, HW), lambda n: (n, 0, 0)),
        const((3, Cp, 3 * Cin)), const((Cp, 1)), const((Cp, 1)),
        const((3, Cp, 3 * Cp)), const((Cp, 1)), const((Cp, 1)),
    ]
    if need_pool:
        inputs.append(_pool_w_matrix(W, md))
        in_specs.append(const((W, W // 2)))
    if use_shortcut:
        ws = params["ws"].reshape(Cp, Cin).astype(md)
        gs = params["gs"].reshape(Cp, 1).astype(f32)
        bs = params["bs"].reshape(Cp, 1).astype(f32)
        inputs += [ws, gs, bs]
        in_specs += [const((Cp, Cin)), const((Cp, 1)), const((Cp, 1))]

    kernel = _make_kernel(H, W, Cin, Cp, stride, use_shortcut)
    out = pl.pallas_call(
        kernel,
        out_shape=jax.ShapeDtypeStruct((N, Cp, HWo), f32),
        grid=(N,),                                       # one sample per step
        in_specs=in_specs,
        out_specs=pl.BlockSpec((None, Cp, HWo), lambda n: (n, 0, 0)),
        compiler_params=pltpu.CompilerParams(
            dimension_semantics=("parallel",),
            vmem_limit_bytes=VMEM_LIMIT_BYTES),
    )(*inputs)
    return out.reshape(N, Cp, Ho, Wo)                    # NCHW, reshape only


# ------------------------- pure-JAX reference check ---------------------------

def _ref_forward(x, p, stride):
    def conv(y, w):
        return jax.lax.conv_general_dilated(
            y, w, (1, 1), "SAME", dimension_numbers=("NCHW", "OIHW", "NCHW"))

    def inorm(y, g, b):
        m = y.mean(axis=(2, 3), keepdims=True)
        v = ((y - m) ** 2).mean(axis=(2, 3), keepdims=True)
        return ((y - m) / jnp.sqrt(v + EPS) * g[None, :, None, None]
                + b[None, :, None, None])

    def pool(y):
        N, C, H, W = y.shape
        return y.reshape(N, C, H // 2, 2, W // 2, 2).mean(axis=(3, 5))

    Cin = x.shape[1]
    Cp = p["w1"].shape[0]
    out = jax.nn.relu(inorm(conv(x, p["w1"]), p["g1"], p["b1"]))
    if stride != 1:
        out = pool(out)
    out = inorm(conv(out, p["w2"]), p["g2"], p["b2"])
    if stride != 1 or Cin != Cp:
        sc = jax.lax.conv_general_dilated(
            x, p["ws"], (1, 1), "VALID",
            dimension_numbers=("NCHW", "OIHW", "NCHW"))
        sc = inorm(pool(sc), p["gs"], p["bs"])
    else:
        sc = x
    return jax.nn.relu(out + sc)


def _make_params(key, Cin, Cp, with_shortcut):
    ks = jax.random.split(key, 11)
    p = {
        "w1": 0.1 * jax.random.normal(ks[0], (Cp, Cin, 3, 3), jnp.float32),
        "g1": 1.0 + 0.1 * jax.random.normal(ks[1], (Cp,), jnp.float32),
        "b1": 0.1 * jax.random.normal(ks[2], (Cp,), jnp.float32),
        "w2": 0.1 * jax.random.normal(ks[3], (Cp, Cp, 3, 3), jnp.float32),
        "g2": 1.0 + 0.1 * jax.random.normal(ks[4], (Cp,), jnp.float32),
        "b2": 0.1 * jax.random.normal(ks[5], (Cp,), jnp.float32),
    }
    if with_shortcut:
        p.update({
            "ws": 0.1 * jax.random.normal(ks[6], (Cp, Cin, 1, 1), jnp.float32),
            "gs": 1.0 + 0.1 * jax.random.normal(ks[7], (Cp,), jnp.float32),
            "bs": 0.1 * jax.random.normal(ks[8], (Cp,), jnp.float32),
        })
    return p


if __name__ == "__main__":
    key = jax.random.PRNGKey(0)
    k1, k2, kx1, kx2 = jax.random.split(key, 4)

    # Config A: downsampling block with projection shortcut (stride=2, Cin!=Cp)
    N, Cin, Cp, H, W = 2, 4, 8, 16, 16
    params_a = _make_params(k1, Cin, Cp, with_shortcut=True)
    x_a = jax.random.normal(kx1, (N, Cin, H, W), jnp.float32)
    ref_a = _ref_forward(x_a, params_a, stride=2)

    # strict correctness check: f32 matmul operands
    out_a32 = basic_block_ap_forward(x_a, params_a, stride=2,
                                     matmul_dtype=jnp.float32)
    jax.block_until_ready(out_a32)
    assert out_a32.shape == ref_a.shape == (N, Cp, H // 2, W // 2)
    assert float(jnp.max(jnp.abs(out_a32 - ref_a))) < 1e-3

    # fast path: bf16 matmul operands, f32 accumulation (looser smoke check)
    out_a16 = basic_block_ap_forward(x_a, params_a, stride=2,
                                     matmul_dtype=jnp.bfloat16)
    jax.block_until_ready(out_a16)
    assert out_a16.shape == ref_a.shape
    assert float(jnp.max(jnp.abs(out_a16 - ref_a))) < 5e-2

    # Config B: identity-shortcut block (stride=1, Cin==Cp)
    params_b = _make_params(k2, Cp, Cp, with_shortcut=False)
    x_b = jax.random.normal(kx2, (N, Cp, H, W), jnp.float32)
    out_b = basic_block_ap_forward(x_b, params_b, stride=1,
                                   matmul_dtype=jnp.float32)
    jax.block_until_ready(out_b)
    ref_b = _ref_forward(x_b, params_b, stride=1)
    assert out_b.shape == ref_b.shape == (N, Cp, H, W)
    assert float(jnp.max(jnp.abs(out_b - ref_b))) < 1e-3

    print("KERNEL_OK")
</pallas_src>

<mosaic_0001>
module attributes {stable_mosaic.version = 11 : i64} {
  func.func @kernel(%arg0: i32, %arg1: memref<1x4x256xf32, #tpu.memory_space<vmem>>, %arg2: memref<3x8x12xf32, #tpu.memory_space<vmem>>, %arg3: memref<8x1xf32, #tpu.memory_space<vmem>>, %arg4: memref<8x1xf32, #tpu.memory_space<vmem>>, %arg5: memref<3x8x24xf32, #tpu.memory_space<vmem>>, %arg6: memref<8x1xf32, #tpu.memory_space<vmem>>, %arg7: memref<8x1xf32, #tpu.memory_space<vmem>>, %arg8: memref<16x8xf32, #tpu.memory_space<vmem>>, %arg9: memref<8x4xf32, #tpu.memory_space<vmem>>, %arg10: memref<8x1xf32, #tpu.memory_space<vmem>>, %arg11: memref<8x1xf32, #tpu.memory_space<vmem>>, %arg12: memref<1x8x64xf32, #tpu.memory_space<vmem>>) attributes {dimension_semantics = [#tpu.dimension_semantics<parallel>], iteration_bounds = array<i64: 2>, scalar_prefetch = 0 : i64, scratch_operands = 0 : i64, tpu.core_type = #tpu.core_type<tc>, window_params = [{transform_indices = @transform_0, window_bounds = array<i64: 1, 4, 256>}, {pipeline_mode = #tpu.pipeline_mode<synchronous>, transform_indices = @transform_1, window_bounds = array<i64: 3, 8, 12>}, {pipeline_mode = #tpu.pipeline_mode<synchronous>, transform_indices = @transform_2, window_bounds = array<i64: 8, 1>}, {pipeline_mode = #tpu.pipeline_mode<synchronous>, transform_indices = @transform_3, window_bounds = array<i64: 8, 1>}, {pipeline_mode = #tpu.pipeline_mode<synchronous>, transform_indices = @transform_4, window_bounds = array<i64: 3, 8, 24>}, {pipeline_mode = #tpu.pipeline_mode<synchronous>, transform_indices = @transform_5, window_bounds = array<i64: 8, 1>}, {pipeline_mode = #tpu.pipeline_mode<synchronous>, transform_indices = @transform_6, window_bounds = array<i64: 8, 1>}, {pipeline_mode = #tpu.pipeline_mode<synchronous>, transform_indices = @transform_7, window_bounds = array<i64: 16, 8>}, {pipeline_mode = #tpu.pipeline_mode<synchronous>, transform_indices = @transform_8, window_bounds = array<i64: 8, 4>}, {pipeline_mode = #tpu.pipeline_mode<synchronous>, transform_indices = @transform_9, window_bounds = array<i64: 8, 1>}, {pipeline_mode = #tpu.pipeline_mode<synchronous>, transform_indices = @transform_10, window_bounds = array<i64: 8, 1>}, {transform_indices = @transform_11, window_bounds = array<i64: 1, 8, 64>}]} {
    %0 = tpu.iota {dimensions = array<i32: 1>} : vector<1x256xi32>
    %c16_i32 = arith.constant 16 : i32
    %c0_i32 = arith.constant 0 : i32
    %1 = arith.cmpi eq, %c16_i32, %c0_i32 : i32
    %c1_i32 = arith.constant 1 : i32
    %2 = arith.select %1, %c1_i32, %c16_i32 : i32
    %3 = vector.broadcast %2 : i32 to vector<1x256xi32>
    %4 = arith.remsi %0, %3 : vector<1x256xi32>
    %c0_i32_0 = arith.constant 0 : i32
    %5 = vector.broadcast %c0_i32_0 : i32 to vector<1x256xi32>
    %6 = arith.cmpi ne, %4, %5 : vector<1x256xi32>
    %c0_i32_1 = arith.constant 0 : i32
    %7 = vector.broadcast %c0_i32_1 : i32 to vector<1x256xi32>
    %8 = arith.cmpi slt, %4, %7 : vector<1x256xi32>
    %c0_i32_2 = arith.constant 0 : i32
    %9 = arith.cmpi slt, %2, %c0_i32_2 : i32
    %10 = vector.broadcast %9 : i1 to vector<1x256xi1>
    %11 = vector.broadcast %10 : vector<1x256xi1> to vector<1x256xi1>
    %12 = arith.xori %8, %11 : vector<1x256xi1>
    %13 = arith.andi %12, %6 : vector<1x256xi1>
    %14 = vector.broadcast %2 : i32 to vector<1x256xi32>
    %15 = arith.addi %4, %14 : vector<1x256xi32>
    %16 = arith.select %13, %15, %4 : vector<1x256xi1>, vector<1x256xi32>
    %c0_i32_3 = arith.constant 0 : i32
    %17 = vector.broadcast %c0_i32_3 : i32 to vector<1x256xi32>
    %18 = arith.cmpi ne, %16, %17 : vector<1x256xi32>
    %c15_i32 = arith.constant 15 : i32
    %19 = vector.broadcast %c15_i32 : i32 to vector<1x256xi32>
    %20 = arith.cmpi ne, %16, %19 : vector<1x256xi32>
    %21 = tpu.iota {dimensions = array<i32: 1>} : vector<1x64xi32>
    %c8_i32 = arith.constant 8 : i32
    %c0_i32_4 = arith.constant 0 : i32
    %22 = arith.cmpi eq, %c8_i32, %c0_i32_4 : i32
    %c1_i32_5 = arith.constant 1 : i32
    %23 = arith.select %22, %c1_i32_5, %c8_i32 : i32
    %24 = vector.broadcast %23 : i32 to vector<1x64xi32>
    %25 = arith.remsi %21, %24 : vector<1x64xi32>
    %c0_i32_6 = arith.constant 0 : i32
    %26 = vector.broadcast %c0_i32_6 : i32 to vector<1x64xi32>
    %27 = arith.cmpi ne, %25, %26 : vector<1x64xi32>
    %c0_i32_7 = arith.constant 0 : i32
    %28 = vector.broadcast %c0_i32_7 : i32 to vector<1x64xi32>
    %29 = arith.cmpi slt, %25, %28 : vector<1x64xi32>
    %c0_i32_8 = arith.constant 0 : i32
    %30 = arith.cmpi slt, %23, %c0_i32_8 : i32
    %31 = vector.broadcast %30 : i1 to vector<1x64xi1>
    %32 = vector.broadcast %31 : vector<1x64xi1> to vector<1x64xi1>
    %33 = arith.xori %29, %32 : vector<1x64xi1>
    %34 = arith.andi %33, %27 : vector<1x64xi1>
    %35 = vector.broadcast %23 : i32 to vector<1x64xi32>
    %36 = arith.addi %25, %35 : vector<1x64xi32>
    %37 = arith.select %34, %36, %25 : vector<1x64xi1>, vector<1x64xi32>
    %c0_i32_9 = arith.constant 0 : i32
    %38 = vector.broadcast %c0_i32_9 : i32 to vector<1x64xi32>
    %39 = arith.cmpi ne, %37, %38 : vector<1x64xi32>
    %c7_i32 = arith.constant 7 : i32
    %40 = vector.broadcast %c7_i32 : i32 to vector<1x64xi32>
    %41 = arith.cmpi ne, %37, %40 : vector<1x64xi32>
    %c0 = arith.constant 0 : index
    %c0_10 = arith.constant 0 : index
    %42 = vector.load %arg8[%c0, %c0_10] : memref<16x8xf32, #tpu.memory_space<vmem>>, vector<16x8xf32>
    %c0_11 = arith.constant 0 : index
    %c0_12 = arith.constant 0 : index
    %c0_13 = arith.constant 0 : index
    %43 = vector.load %arg1[%c0_11, %c0_12, %c0_13] : memref<1x4x256xf32, #tpu.memory_space<vmem>>, vector<1x4x256xf32>
    %44 = vector.shape_cast %43 : vector<1x4x256xf32> to vector<4x256xf32>
    %cst = arith.constant 0.000000e+00 : f32
    %45 = vector.broadcast %cst : f32 to vector<4x1xf32>
    %46 = vector.extract_strided_slice %44 {offsets = [0, 0], sizes = [4, 255], strides = [1, 1]} : vector<4x256xf32> to vector<4x255xf32>
    %47 = tpu.concatenate %45, %46 in 1 : vector<4x1xf32>, vector<4x255xf32> -> vector<4x256xf32>
    %c0_i32_14 = arith.constant 0 : i32
    %48 = arith.sitofp %c0_i32_14 : i32 to f32
    %49 = vector.shape_cast %18 : vector<1x256xi1> to vector<1x256xi1>
    %50 = vector.broadcast %49 : vector<1x256xi1> to vector<4x256xi1>
    %51 = vector.broadcast %48 : f32 to vector<4x256xf32>
    %52 = arith.select %50, %47, %51 : vector<4x256xi1>, vector<4x256xf32>
    %53 = vector.extract_strided_slice %44 {offsets = [0, 1], sizes = [4, 255], strides = [1, 1]} : vector<4x256xf32> to vector<4x255xf32>
    %cst_15 = arith.constant 0.000000e+00 : f32
    %54 = vector.broadcast %cst_15 : f32 to vector<4x1xf32>
    %55 = tpu.concatenate %53, %54 in 1 : vector<4x255xf32>, vector<4x1xf32> -> vector<4x256xf32>
    %c0_i32_16 = arith.constant 0 : i32
    %56 = arith.sitofp %c0_i32_16 : i32 to f32
    %57 = vector.shape_cast %20 : vector<1x256xi1> to vector<1x256xi1>
    %58 = vector.broadcast %57 : vector<1x256xi1> to vector<4x256xi1>
    %59 = vector.broadcast %56 : f32 to vector<4x256xf32>
    %60 = arith.select %58, %55, %59 : vector<4x256xi1>, vector<4x256xf32>
    %61 = tpu.concatenate %52, %44, %60 in 0 : vector<4x256xf32>, vector<4x256xf32>, vector<4x256xf32> -> vector<12x256xf32>
    %cst_17 = arith.constant 0.000000e+00 : f32
    %62 = vector.broadcast %cst_17 : f32 to vector<12x16xf32>
    %63 = vector.extract_strided_slice %61 {offsets = [0, 0], sizes = [12, 240], strides = [1, 1]} : vector<12x256xf32> to vector<12x240xf32>
    %64 = tpu.concatenate %62, %63 in 1 : vector<12x16xf32>, vector<12x240xf32> -> vector<12x256xf32>
    %c0_18 = arith.constant 0 : index
    %c0_19 = arith.constant 0 : index
    %c0_20 = arith.constant 0 : index
    %65 = vector.load %arg2[%c0_18, %c0_19, %c0_20] : memref<3x8x12xf32, #tpu.memory_space<vmem>>, vector<1x8x12xf32>
    %66 = vector.shape_cast %65 : vector<1x8x12xf32> to vector<8x12xf32>
    %cst_21 = arith.constant dense<0.000000e+00> : vector<8x256xf32>
    %67 = tpu.matmul %66, %64, %cst_21 {dimension_numbers = #tpu.dot_dimension_numbers<[1], [0], [0], [1], [0, 0, 1, 1], [], []>} : vector<8x12xf32>, vector<12x256xf32>, vector<8x256xf32> -> vector<8x256xf32>
    %c1 = arith.constant 1 : index
    %c0_22 = arith.constant 0 : index
    %c0_23 = arith.constant 0 : index
    %68 = vector.load %arg2[%c1, %c0_22, %c0_23] : memref<3x8x12xf32, #tpu.memory_space<vmem>>, vector<1x8x12xf32>
    %69 = vector.shape_cast %68 : vector<1x8x12xf32> to vector<8x12xf32>
    %cst_24 = arith.constant dense<0.000000e+00> : vector<8x256xf32>
    %70 = tpu.matmul %69, %61, %cst_24 {dimension_numbers = #tpu.dot_dimension_numbers<[1], [0], [0], [1], [0, 0, 1, 1], [], []>} : vector<8x12xf32>, vector<12x256xf32>, vector<8x256xf32> -> vector<8x256xf32>
    %71 = arith.addf %67, %70 : vector<8x256xf32>
    %72 = vector.extract_strided_slice %61 {offsets = [0, 16], sizes = [12, 240], strides = [1, 1]} : vector<12x256xf32> to vector<12x240xf32>
    %cst_25 = arith.constant 0.000000e+00 : f32
    %73 = vector.broadcast %cst_25 : f32 to vector<12x16xf32>
    %74 = tpu.concatenate %72, %73 in 1 : vector<12x240xf32>, vector<12x16xf32> -> vector<12x256xf32>
    %c2 = arith.constant 2 : index
    %c0_26 = arith.constant 0 : index
    %c0_27 = arith.constant 0 : index
    %75 = vector.load %arg2[%c2, %c0_26, %c0_27] : memref<3x8x12xf32, #tpu.memory_space<vmem>>, vector<1x8x12xf32>
    %76 = vector.shape_cast %75 : vector<1x8x12xf32> to vector<8x12xf32>
    %cst_28 = arith.constant dense<0.000000e+00> : vector<8x256xf32>
    %77 = tpu.matmul %76, %74, %cst_28 {dimension_numbers = #tpu.dot_dimension_numbers<[1], [0], [0], [1], [0, 0, 1, 1], [], []>} : vector<8x12xf32>, vector<12x256xf32>, vector<8x256xf32> -> vector<8x256xf32>
    %78 = arith.addf %71, %77 : vector<8x256xf32>
    %c0_29 = arith.constant 0 : index
    %c0_30 = arith.constant 0 : index
    %79 = vector.load %arg3[%c0_29, %c0_30] : memref<8x1xf32, #tpu.memory_space<vmem>>, vector<8x1xf32>
    %c0_31 = arith.constant 0 : index
    %c0_32 = arith.constant 0 : index
    %80 = vector.load %arg4[%c0_31, %c0_32] : memref<8x1xf32, #tpu.memory_space<vmem>>, vector<8x1xf32>
    %cst_33 = arith.constant dense<0.000000e+00> : vector<8xf32>
    %81 = vector.multi_reduction <add>, %78, %cst_33 [1] : vector<8x256xf32> to vector<8xf32>
    %82 = vector.shape_cast %81 : vector<8xf32> to vector<8x1xf32>
    %cst_34 = arith.constant 3.906250e-03 : f32
    %83 = vector.broadcast %cst_34 : f32 to vector<8x1xf32>
    %84 = arith.mulf %82, %83 : vector<8x1xf32>
    %85 = arith.mulf %78, %78 : vector<8x256xf32>
    %cst_35 = arith.constant dense<0.000000e+00> : vector<8xf32>
    %86 = vector.multi_reduction <add>, %85, %cst_35 [1] : vector<8x256xf32> to vector<8xf32>
    %87 = vector.shape_cast %86 : vector<8xf32> to vector<8x1xf32>
    %cst_36 = arith.constant 3.906250e-03 : f32
    %88 = vector.broadcast %cst_36 : f32 to vector<8x1xf32>
    %89 = arith.mulf %87, %88 : vector<8x1xf32>
    %90 = arith.mulf %84, %84 : vector<8x1xf32>
    %91 = arith.subf %89, %90 : vector<8x1xf32>
    %cst_37 = arith.constant 0.000000e+00 : f32
    %92 = vector.broadcast %cst_37 : f32 to vector<8x1xf32>
    %93 = arith.maximumf %91, %92 : vector<8x1xf32>
    %94 = vector.broadcast %84 : vector<8x1xf32> to vector<8x256xf32>
    %95 = arith.subf %78, %94 : vector<8x256xf32>
    %cst_38 = arith.constant 9.99999974E-6 : f32
    %96 = vector.broadcast %cst_38 : f32 to vector<8x1xf32>
    %97 = arith.addf %93, %96 : vector<8x1xf32>
    %98 = math.rsqrt %97 : vector<8x1xf32>
    %99 = vector.broadcast %98 : vector<8x1xf32> to vector<8x256xf32>
    %100 = arith.mulf %95, %99 : vector<8x256xf32>
    %101 = vector.broadcast %79 : vector<8x1xf32> to vector<8x256xf32>
    %102 = arith.mulf %100, %101 : vector<8x256xf32>
    %103 = vector.broadcast %80 : vector<8x1xf32> to vector<8x256xf32>
    %104 = arith.addf %102, %103 : vector<8x256xf32>
    %cst_39 = arith.constant 0.000000e+00 : f32
    %105 = vector.broadcast %cst_39 : f32 to vector<8x256xf32>
    %106 = arith.maximumf %104, %105 : vector<8x256xf32>
    %107 = vector.extract_strided_slice %106 {offsets = [0, 0], sizes = [8, 16], strides = [1, 1]} : vector<8x256xf32> to vector<8x16xf32>
    %108 = vector.extract_strided_slice %106 {offsets = [0, 16], sizes = [8, 16], strides = [1, 1]} : vector<8x256xf32> to vector<8x16xf32>
    %109 = arith.addf %107, %108 : vector<8x16xf32>
    %cst_40 = arith.constant dense<0.000000e+00> : vector<8x8xf32>
    %110 = tpu.matmul %109, %42, %cst_40 {dimension_numbers = #tpu.dot_dimension_numbers<[1], [0], [0], [1], [0, 0, 1, 1], [], []>} : vector<8x16xf32>, vector<16x8xf32>, vector<8x8xf32> -> vector<8x8xf32>
    %111 = vector.extract_strided_slice %106 {offsets = [0, 32], sizes = [8, 16], strides = [1, 1]} : vector<8x256xf32> to vector<8x16xf32>
    %112 = vector.extract_strided_slice %106 {offsets = [0, 48], sizes = [8, 16], strides = [1, 1]} : vector<8x256xf32> to vector<8x16xf32>
    %113 = arith.addf %111, %112 : vector<8x16xf32>
    %cst_41 = arith.constant dense<0.000000e+00> : vector<8x8xf32>
    %114 = tpu.matmul %113, %42, %cst_41 {dimension_numbers = #tpu.dot_dimension_numbers<[1], [0], [0], [1], [0, 0, 1, 1], [], []>} : vector<8x16xf32>, vector<16x8xf32>, vector<8x8xf32> -> vector<8x8xf32>
    %115 = vector.extract_strided_slice %106 {offsets = [0, 64], sizes = [8, 16], strides = [1, 1]} : vector<8x256xf32> to vector<8x16xf32>
    %116 = vector.extract_strided_slice %106 {offsets = [0, 80], sizes = [8, 16], strides = [1, 1]} : vector<8x256xf32> to vector<8x16xf32>
    %117 = arith.addf %115, %116 : vector<8x16xf32>
    %cst_42 = arith.constant dense<0.000000e+00> : vector<8x8xf32>
    %118 = tpu.matmul %117, %42, %cst_42 {dimension_numbers = #tpu.dot_dimension_numbers<[1], [0], [0], [1], [0, 0, 1, 1], [], []>} : vector<8x16xf32>, vector<16x8xf32>, vector<8x8xf32> -> vector<8x8xf32>
    %119 = vector.extract_strided_slice %106 {offsets = [0, 96], sizes = [8, 16], strides = [1, 1]} : vector<8x256xf32> to vector<8x16xf32>
    %120 = vector.extract_strided_slice %106 {offsets = [0, 112], sizes = [8, 16], strides = [1, 1]} : vector<8x256xf32> to vector<8x16xf32>
    %121 = arith.addf %119, %120 : vector<8x16xf32>
    %cst_43 = arith.constant dense<0.000000e+00> : vector<8x8xf32>
    %122 = tpu.matmul %121, %42, %cst_43 {dimension_numbers = #tpu.dot_dimension_numbers<[1], [0], [0], [1], [0, 0, 1, 1], [], []>} : vector<8x16xf32>, vector<16x8xf32>, vector<8x8xf32> -> vector<8x8xf32>
    %123 = vector.extract_strided_slice %106 {offsets = [0, 128], sizes = [8, 16], strides = [1, 1]} : vector<8x256xf32> to vector<8x16xf32>
    %124 = vector.extract_strided_slice %106 {offsets = [0, 144], sizes = [8, 16], strides = [1, 1]} : vector<8x256xf32> to vector<8x16xf32>
    %125 = arith.addf %123, %124 : vector<8x16xf32>
    %cst_44 = arith.constant dense<0.000000e+00> : vector<8x8xf32>
    %126 = tpu.matmul %125, %42, %cst_44 {dimension_numbers = #tpu.dot_dimension_numbers<[1], [0], [0], [1], [0, 0, 1, 1], [], []>} : vector<8x16xf32>, vector<16x8xf32>, vector<8x8xf32> -> vector<8x8xf32>
    %127 = vector.extract_strided_slice %106 {offsets = [0, 160], sizes = [8, 16], strides = [1, 1]} : vector<8x256xf32> to vector<8x16xf32>
    %128 = vector.extract_strided_slice %106 {offsets = [0, 176], sizes = [8, 16], strides = [1, 1]} : vector<8x256xf32> to vector<8x16xf32>
    %129 = arith.addf %127, %128 : vector<8x16xf32>
    %cst_45 = arith.constant dense<0.000000e+00> : vector<8x8xf32>
    %130 = tpu.matmul %129, %42, %cst_45 {dimension_numbers = #tpu.dot_dimension_numbers<[1], [0], [0], [1], [0, 0, 1, 1], [], []>} : vector<8x16xf32>, vector<16x8xf32>, vector<8x8xf32> -> vector<8x8xf32>
    %131 = vector.extract_strided_slice %106 {offsets = [0, 192], sizes = [8, 16], strides = [1, 1]} : vector<8x256xf32> to vector<8x16xf32>
    %132 = vector.extract_strided_slice %106 {offsets = [0, 208], sizes = [8, 16], strides = [1, 1]} : vector<8x256xf32> to vector<8x16xf32>
    %133 = arith.addf %131, %132 : vector<8x16xf32>
    %cst_46 = arith.constant dense<0.000000e+00> : vector<8x8xf32>
    %134 = tpu.matmul %133, %42, %cst_46 {dimension_numbers = #tpu.dot_dimension_numbers<[1], [0], [0], [1], [0, 0, 1, 1], [], []>} : vector<8x16xf32>, vector<16x8xf32>, vector<8x8xf32> -> vector<8x8xf32>
    %135 = vector.extract_strided_slice %106 {offsets = [0, 224], sizes = [8, 16], strides = [1, 1]} : vector<8x256xf32> to vector<8x16xf32>
    %136 = vector.extract_strided_slice %106 {offsets = [0, 240], sizes = [8, 16], strides = [1, 1]} : vector<8x256xf32> to vector<8x16xf32>
    %137 = arith.addf %135, %136 : vector<8x16xf32>
    %cst_47 = arith.constant dense<0.000000e+00> : vector<8x8xf32>
    %138 = tpu.matmul %137, %42, %cst_47 {dimension_numbers = #tpu.dot_dimension_numbers<[1], [0], [0], [1], [0, 0, 1, 1], [], []>} : vector<8x16xf32>, vector<16x8xf32>, vector<8x8xf32> -> vector<8x8xf32>
    %139 = tpu.concatenate %110, %114, %118, %122, %126, %130, %134, %138 in 1 : vector<8x8xf32>, vector<8x8xf32>, vector<8x8xf32>, vector<8x8xf32>, vector<8x8xf32>, vector<8x8xf32>, vector<8x8xf32>, vector<8x8xf32> -> vector<8x64xf32>
    %cst_48 = arith.constant 0.000000e+00 : f32
    %140 = vector.broadcast %cst_48 : f32 to vector<8x1xf32>
    %141 = vector.extract_strided_slice %139 {offsets = [0, 0], sizes = [8, 63], strides = [1, 1]} : vector<8x64xf32> to vector<8x63xf32>
    %142 = tpu.concatenate %140, %141 in 1 : vector<8x1xf32>, vector<8x63xf32> -> vector<8x64xf32>
    %c0_i32_49 = arith.constant 0 : i32
    %143 = arith.sitofp %c0_i32_49 : i32 to f32
    %144 = vector.shape_cast %39 : vector<1x64xi1> to vector<1x64xi1>
    %145 = vector.broadcast %144 : vector<1x64xi1> to vector<8x64xi1>
    %146 = vector.broadcast %143 : f32 to vector<8x64xf32>
    %147 = arith.select %145, %142, %146 : vector<8x64xi1>, vector<8x64xf32>
    %148 = vector.extract_strided_slice %139 {offsets = [0, 1], sizes = [8, 63], strides = [1, 1]} : vector<8x64xf32> to vector<8x63xf32>
    %cst_50 = arith.constant 0.000000e+00 : f32
    %149 = vector.broadcast %cst_50 : f32 to vector<8x1xf32>
    %150 = tpu.concatenate %148, %149 in 1 : vector<8x63xf32>, vector<8x1xf32> -> vector<8x64xf32>
    %c0_i32_51 = arith.constant 0 : i32
    %151 = arith.sitofp %c0_i32_51 : i32 to f32
    %152 = vector.shape_cast %41 : vector<1x64xi1> to vector<1x64xi1>
    %153 = vector.broadcast %152 : vector<1x64xi1> to vector<8x64xi1>
    %154 = vector.broadcast %151 : f32 to vector<8x64xf32>
    %155 = arith.select %153, %150, %154 : vector<8x64xi1>, vector<8x64xf32>
    %156 = tpu.concatenate %147, %139, %155 in 0 : vector<8x64xf32>, vector<8x64xf32>, vector<8x64xf32> -> vector<24x64xf32>
    %cst_52 = arith.constant 0.000000e+00 : f32
    %157 = vector.broadcast %cst_52 : f32 to vector<24x8xf32>
    %158 = vector.extract_strided_slice %156 {offsets = [0, 0], sizes = [24, 56], strides = [1, 1]} : vector<24x64xf32> to vector<24x56xf32>
    %159 = tpu.concatenate %157, %158 in 1 : vector<24x8xf32>, vector<24x56xf32> -> vector<24x64xf32>
    %c0_53 = arith.constant 0 : index
    %c0_54 = arith.constant 0 : index
    %c0_55 = arith.constant 0 : index
    %160 = vector.load %arg5[%c0_53, %c0_54, %c0_55] : memref<3x8x24xf32, #tpu.memory_space<vmem>>, vector<1x8x24xf32>
    %161 = vector.shape_cast %160 : vector<1x8x24xf32> to vector<8x24xf32>
    %cst_56 = arith.constant dense<0.000000e+00> : vector<8x64xf32>
    %162 = tpu.matmul %161, %159, %cst_56 {dimension_numbers = #tpu.dot_dimension_numbers<[1], [0], [0], [1], [0, 0, 1, 1], [], []>} : vector<8x24xf32>, vector<24x64xf32>, vector<8x64xf32> -> vector<8x64xf32>
    %c1_57 = arith.constant 1 : index
    %c0_58 = arith.constant 0 : index
    %c0_59 = arith.constant 0 : index
    %163 = vector.load %arg5[%c1_57, %c0_58, %c0_59] : memref<3x8x24xf32, #tpu.memory_space<vmem>>, vector<1x8x24xf32>
    %164 = vector.shape_cast %163 : vector<1x8x24xf32> to vector<8x24xf32>
    %cst_60 = arith.constant dense<0.000000e+00> : vector<8x64xf32>
    %165 = tpu.matmul %164, %156, %cst_60 {dimension_numbers = #tpu.dot_dimension_numbers<[1], [0], [0], [1], [0, 0, 1, 1], [], []>} : vector<8x24xf32>, vector<24x64xf32>, vector<8x64xf32> -> vector<8x64xf32>
    %166 = arith.addf %162, %165 : vector<8x64xf32>
    %167 = vector.extract_strided_slice %156 {offsets = [0, 8], sizes = [24, 56], strides = [1, 1]} : vector<24x64xf32> to vector<24x56xf32>
    %cst_61 = arith.constant 0.000000e+00 : f32
    %168 = vector.broadcast %cst_61 : f32 to vector<24x8xf32>
    %169 = tpu.concatenate %167, %168 in 1 : vector<24x56xf32>, vector<24x8xf32> -> vector<24x64xf32>
    %c2_62 = arith.constant 2 : index
    %c0_63 = arith.constant 0 : index
    %c0_64 = arith.constant 0 : index
    %170 = vector.load %arg5[%c2_62, %c0_63, %c0_64] : memref<3x8x24xf32, #tpu.memory_space<vmem>>, vector<1x8x24xf32>
    %171 = vector.shape_cast %170 : vector<1x8x24xf32> to vector<8x24xf32>
    %cst_65 = arith.constant dense<0.000000e+00> : vector<8x64xf32>
    %172 = tpu.matmul %171, %169, %cst_65 {dimension_numbers = #tpu.dot_dimension_numbers<[1], [0], [0], [1], [0, 0, 1, 1], [], []>} : vector<8x24xf32>, vector<24x64xf32>, vector<8x64xf32> -> vector<8x64xf32>
    %173 = arith.addf %166, %172 : vector<8x64xf32>
    %c0_66 = arith.constant 0 : index
    %c0_67 = arith.constant 0 : index
    %174 = vector.load %arg6[%c0_66, %c0_67] : memref<8x1xf32, #tpu.memory_space<vmem>>, vector<8x1xf32>
    %c0_68 = arith.constant 0 : index
    %c0_69 = arith.constant 0 : index
    %175 = vector.load %arg7[%c0_68, %c0_69] : memref<8x1xf32, #tpu.memory_space<vmem>>, vector<8x1xf32>
    %cst_70 = arith.constant dense<0.000000e+00> : vector<8xf32>
    %176 = vector.multi_reduction <add>, %173, %cst_70 [1] : vector<8x64xf32> to vector<8xf32>
    %177 = vector.shape_cast %176 : vector<8xf32> to vector<8x1xf32>
    %cst_71 = arith.constant 1.562500e-02 : f32
    %178 = vector.broadcast %cst_71 : f32 to vector<8x1xf32>
    %179 = arith.mulf %177, %178 : vector<8x1xf32>
    %180 = arith.mulf %173, %173 : vector<8x64xf32>
    %cst_72 = arith.constant dense<0.000000e+00> : vector<8xf32>
    %181 = vector.multi_reduction <add>, %180, %cst_72 [1] : vector<8x64xf32> to vector<8xf32>
    %182 = vector.shape_cast %181 : vector<8xf32> to vector<8x1xf32>
    %cst_73 = arith.constant 1.562500e-02 : f32
    %183 = vector.broadcast %cst_73 : f32 to vector<8x1xf32>
    %184 = arith.mulf %182, %183 : vector<8x1xf32>
    %185 = arith.mulf %179, %179 : vector<8x1xf32>
    %186 = arith.subf %184, %185 : vector<8x1xf32>
    %cst_74 = arith.constant 0.000000e+00 : f32
    %187 = vector.broadcast %cst_74 : f32 to vector<8x1xf32>
    %188 = arith.maximumf %186, %187 : vector<8x1xf32>
    %189 = vector.broadcast %179 : vector<8x1xf32> to vector<8x64xf32>
    %190 = arith.subf %173, %189 : vector<8x64xf32>
    %cst_75 = arith.constant 9.99999974E-6 : f32
    %191 = vector.broadcast %cst_75 : f32 to vector<8x1xf32>
    %192 = arith.addf %188, %191 : vector<8x1xf32>
    %193 = math.rsqrt %192 : vector<8x1xf32>
    %194 = vector.broadcast %193 : vector<8x1xf32> to vector<8x64xf32>
    %195 = arith.mulf %190, %194 : vector<8x64xf32>
    %196 = vector.broadcast %174 : vector<8x1xf32> to vector<8x64xf32>
    %197 = arith.mulf %195, %196 : vector<8x64xf32>
    %198 = vector.broadcast %175 : vector<8x1xf32> to vector<8x64xf32>
    %199 = arith.addf %197, %198 : vector<8x64xf32>
    %200 = vector.extract_strided_slice %44 {offsets = [0, 0], sizes = [4, 16], strides = [1, 1]} : vector<4x256xf32> to vector<4x16xf32>
    %201 = vector.extract_strided_slice %44 {offsets = [0, 16], sizes = [4, 16], strides = [1, 1]} : vector<4x256xf32> to vector<4x16xf32>
    %202 = arith.addf %200, %201 : vector<4x16xf32>
    %cst_76 = arith.constant dense<0.000000e+00> : vector<4x8xf32>
    %203 = tpu.matmul %202, %42, %cst_76 {dimension_numbers = #tpu.dot_dimension_numbers<[1], [0], [0], [1], [0, 0, 1, 1], [], []>} : vector<4x16xf32>, vector<16x8xf32>, vector<4x8xf32> -> vector<4x8xf32>
    %204 = vector.extract_strided_slice %44 {offsets = [0, 32], sizes = [4, 16], strides = [1, 1]} : vector<4x256xf32> to vector<4x16xf32>
    %205 = vector.extract_strided_slice %44 {offsets = [0, 48], sizes = [4, 16], strides = [1, 1]} : vector<4x256xf32> to vector<4x16xf32>
    %206 = arith.addf %204, %205 : vector<4x16xf32>
    %cst_77 = arith.constant dense<0.000000e+00> : vector<4x8xf32>
    %207 = tpu.matmul %206, %42, %cst_77 {dimension_numbers = #tpu.dot_dimension_numbers<[1], [0], [0], [1], [0, 0, 1, 1], [], []>} : vector<4x16xf32>, vector<16x8xf32>, vector<4x8xf32> -> vector<4x8xf32>
    %208 = vector.extract_strided_slice %44 {offsets = [0, 64], sizes = [4, 16], strides = [1, 1]} : vector<4x256xf32> to vector<4x16xf32>
    %209 = vector.extract_strided_slice %44 {offsets = [0, 80], sizes = [4, 16], strides = [1, 1]} : vector<4x256xf32> to vector<4x16xf32>
    %210 = arith.addf %208, %209 : vector<4x16xf32>
    %cst_78 = arith.constant dense<0.000000e+00> : vector<4x8xf32>
    %211 = tpu.matmul %210, %42, %cst_78 {dimension_numbers = #tpu.dot_dimension_numbers<[1], [0], [0], [1], [0, 0, 1, 1], [], []>} : vector<4x16xf32>, vector<16x8xf32>, vector<4x8xf32> -> vector<4x8xf32>
    %212 = vector.extract_strided_slice %44 {offsets = [0, 96], sizes = [4, 16], strides = [1, 1]} : vector<4x256xf32> to vector<4x16xf32>
    %213 = vector.extract_strided_slice %44 {offsets = [0, 112], sizes = [4, 16], strides = [1, 1]} : vector<4x256xf32> to vector<4x16xf32>
    %214 = arith.addf %212, %213 : vector<4x16xf32>
    %cst_79 = arith.constant dense<0.000000e+00> : vector<4x8xf32>
    %215 = tpu.matmul %214, %42, %cst_79 {dimension_numbers = #tpu.dot_dimension_numbers<[1], [0], [0], [1], [0, 0, 1, 1], [], []>} : vector<4x16xf32>, vector<16x8xf32>, vector<4x8xf32> -> vector<4x8xf32>
    %216 = vector.extract_strided_slice %44 {offsets = [0, 128], sizes = [4, 16], strides = [1, 1]} : vector<4x256xf32> to vector<4x16xf32>
    %217 = vector.extract_strided_slice %44 {offsets = [0, 144], sizes = [4, 16], strides = [1, 1]} : vector<4x256xf32> to vector<4x16xf32>
    %218 = arith.addf %216, %217 : vector<4x16xf32>
    %cst_80 = arith.constant dense<0.000000e+00> : vector<4x8xf32>
    %219 = tpu.matmul %218, %42, %cst_80 {dimension_numbers = #tpu.dot_dimension_numbers<[1], [0], [0], [1], [0, 0, 1, 1], [], []>} : vector<4x16xf32>, vector<16x8xf32>, vector<4x8xf32> -> vector<4x8xf32>
    %220 = vector.extract_strided_slice %44 {offsets = [0, 160], sizes = [4, 16], strides = [1, 1]} : vector<4x256xf32> to vector<4x16xf32>
    %221 = vector.extract_strided_slice %44 {offsets = [0, 176], sizes = [4, 16], strides = [1, 1]} : vector<4x256xf32> to vector<4x16xf32>
    %222 = arith.addf %220, %221 : vector<4x16xf32>
    %cst_81 = arith.constant dense<0.000000e+00> : vector<4x8xf32>
    %223 = tpu.matmul %222, %42, %cst_81 {dimension_numbers = #tpu.dot_dimension_numbers<[1], [0], [0], [1], [0, 0, 1, 1], [], []>} : vector<4x16xf32>, vector<16x8xf32>, vector<4x8xf32> -> vector<4x8xf32>
    %224 = vector.extract_strided_slice %44 {offsets = [0, 192], sizes = [4, 16], strides = [1, 1]} : vector<4x256xf32> to vector<4x16xf32>
    %225 = vector.extract_strided_slice %44 {offsets = [0, 208], sizes = [4, 16], strides = [1, 1]} : vector<4x256xf32> to vector<4x16xf32>
    %226 = arith.addf %224, %225 : vector<4x16xf32>
    %cst_82 = arith.constant dense<0.000000e+00> : vector<4x8xf32>
    %227 = tpu.matmul %226, %42, %cst_82 {dimension_numbers = #tpu.dot_dimension_numbers<[1], [0], [0], [1], [0, 0, 1, 1], [], []>} : vector<4x16xf32>, vector<16x8xf32>, vector<4x8xf32> -> vector<4x8xf32>
    %228 = vector.extract_strided_slice %44 {offsets = [0, 224], sizes = [4, 16], strides = [1, 1]} : vector<4x256xf32> to vector<4x16xf32>
    %229 = vector.extract_strided_slice %44 {offsets = [0, 240], sizes = [4, 16], strides = [1, 1]} : vector<4x256xf32> to vector<4x16xf32>
    %230 = arith.addf %228, %229 : vector<4x16xf32>
    %cst_83 = arith.constant dense<0.000000e+00> : vector<4x8xf32>
    %231 = tpu.matmul %230, %42, %cst_83 {dimension_numbers = #tpu.dot_dimension_numbers<[1], [0], [0], [1], [0, 0, 1, 1], [], []>} : vector<4x16xf32>, vector<16x8xf32>, vector<4x8xf32> -> vector<4x8xf32>
    %232 = tpu.concatenate %203, %207, %211, %215, %219, %223, %227, %231 in 1 : vector<4x8xf32>, vector<4x8xf32>, vector<4x8xf32>, vector<4x8xf32>, vector<4x8xf32>, vector<4x8xf32>, vector<4x8xf32>, vector<4x8xf32> -> vector<4x64xf32>
    %c0_84 = arith.constant 0 : index
    %c0_85 = arith.constant 0 : index
    %233 = vector.load %arg9[%c0_84, %c0_85] : memref<8x4xf32, #tpu.memory_space<vmem>>, vector<8x4xf32>
    %cst_86 = arith.constant dense<0.000000e+00> : vector<8x64xf32>
    %234 = tpu.matmul %233, %232, %cst_86 {dimension_numbers = #tpu.dot_dimension_numbers<[1], [0], [0], [1], [0, 0, 1, 1], [], []>} : vector<8x4xf32>, vector<4x64xf32>, vector<8x64xf32> -> vector<8x64xf32>
    %c0_87 = arith.constant 0 : index
    %c0_88 = arith.constant 0 : index
    %235 = vector.load %arg10[%c0_87, %c0_88] : memref<8x1xf32, #tpu.memory_space<vmem>>, vector<8x1xf32>
    %c0_89 = arith.constant 0 : index
    %c0_90 = arith.constant 0 : index
    %236 = vector.load %arg11[%c0_89, %c0_90] : memref<8x1xf32, #tpu.memory_space<vmem>>, vector<8x1xf32>
    %cst_91 = arith.constant dense<0.000000e+00> : vector<8xf32>
    %237 = vector.multi_reduction <add>, %234, %cst_91 [1] : vector<8x64xf32> to vector<8xf32>
    %238 = vector.shape_cast %237 : vector<8xf32> to vector<8x1xf32>
    %cst_92 = arith.constant 1.562500e-02 : f32
    %239 = vector.broadcast %cst_92 : f32 to vector<8x1xf32>
    %240 = arith.mulf %238, %239 : vector<8x1xf32>
    %241 = arith.mulf %234, %234 : vector<8x64xf32>
    %cst_93 = arith.constant dense<0.000000e+00> : vector<8xf32>
    %242 = vector.multi_reduction <add>, %241, %cst_93 [1] : vector<8x64xf32> to vector<8xf32>
    %243 = vector.shape_cast %242 : vector<8xf32> to vector<8x1xf32>
    %cst_94 = arith.constant 1.562500e-02 : f32
    %244 = vector.broadcast %cst_94 : f32 to vector<8x1xf32>
    %245 = arith.mulf %243, %244 : vector<8x1xf32>
    %246 = arith.mulf %240, %240 : vector<8x1xf32>
    %247 = arith.subf %245, %246 : vector<8x1xf32>
    %cst_95 = arith.constant 0.000000e+00 : f32
    %248 = vector.broadcast %cst_95 : f32 to vector<8x1xf32>
    %249 = arith.maximumf %247, %248 : vector<8x1xf32>
    %250 = vector.broadcast %240 : vector<8x1xf32> to vector<8x64xf32>
    %251 = arith.subf %234, %250 : vector<8x64xf32>
    %cst_96 = arith.constant 9.99999974E-6 : f32
    %252 = vector.broadcast %cst_96 : f32 to vector<8x1xf32>
    %253 = arith.addf %249, %252 : vector<8x1xf32>
    %254 = math.rsqrt %253 : vector<8x1xf32>
    %255 = vector.broadcast %254 : vector<8x1xf32> to vector<8x64xf32>
    %256 = arith.mulf %251, %255 : vector<8x64xf32>
    %257 = vector.broadcast %235 : vector<8x1xf32> to vector<8x64xf32>
    %258 = arith.mulf %256, %257 : vector<8x64xf32>
    %259 = vector.broadcast %236 : vector<8x1xf32> to vector<8x64xf32>
    %260 = arith.addf %258, %259 : vector<8x64xf32>
    %261 = arith.addf %199, %260 : vector<8x64xf32>
    %cst_97 = arith.constant 0.000000e+00 : f32
    %262 = vector.broadcast %cst_97 : f32 to vector<8x64xf32>
    %263 = arith.maximumf %261, %262 : vector<8x64xf32>
    %c0_98 = arith.constant 0 : index
    %c0_99 = arith.constant 0 : index
    %c0_100 = arith.constant 0 : index
    %264 = vector.load %arg12[%c0_98, %c0_99, %c0_100] : memref<1x8x64xf32, #tpu.memory_space<vmem>>, vector<1x8x64xf32>
    %265 = vector.shape_cast %264 : vector<1x8x64xf32> to vector<8x64xf32>
    %266 = vector.shape_cast %263 : vector<8x64xf32> to vector<1x8x64xf32>
    tpu.vector_store %arg12[%c0_98, %c0_99, %c0_100], %266 {strides = array<i32>} : memref<1x8x64xf32, #tpu.memory_space<vmem>>, vector<1x8x64xf32>,
    return
  }
  func.func @transform_0(%arg0: i32) -> (i32, i32, i32) {
    %c0_i32 = arith.constant 0 : i32
    %c0_i32_0 = arith.constant 0 : i32
    %c0_i32_1 = arith.constant 0 : i32
    return %arg0, %c0_i32, %c0_i32_0 : i32, i32, i32
  }
  func.func @transform_1(%arg0: i32) -> (i32, i32, i32) {
    %c0_i32 = arith.constant 0 : i32
    %c0_i32_0 = arith.constant 0 : i32
    %c0_i32_1 = arith.constant 0 : i32
    %c0_i32_2 = arith.constant 0 : i32
    return %c0_i32, %c0_i32_0, %c0_i32_1 : i32, i32, i32
  }
  func.func @transform_2(%arg0: i32) -> (i32, i32) {
    %c0_i32 = arith.constant 0 : i32
    %c0_i32_0 = arith.constant 0 : i32
    %c0_i32_1 = arith.constant 0 : i32
    return %c0_i32, %c0_i32_0 : i32, i32
  }
  func.func @transform_3(%arg0: i32) -> (i32, i32) {
    %c0_i32 = arith.constant 0 : i32
    %c0_i32_0 = arith.constant 0 : i32
    %c0_i32_1 = arith.constant 0 : i32
    return %c0_i32, %c0_i32_0 : i32, i32
  }
  func.func @transform_4(%arg0: i32) -> (i32, i32, i32) {
    %c0_i32 = arith.constant 0 : i32
    %c0_i32_0 = arith.constant 0 : i32
    %c0_i32_1 = arith.constant 0 : i32
    %c0_i32_2 = arith.constant 0 : i32
    return %c0_i32, %c0_i32_0, %c0_i32_1 : i32, i32, i32
  }
  func.func @transform_5(%arg0: i32) -> (i32, i32) {
    %c0_i32 = arith.constant 0 : i32
    %c0_i32_0 = arith.constant 0 : i32
    %c0_i32_1 = arith.constant 0 : i32
    return %c0_i32, %c0_i32_0 : i32, i32
  }
  func.func @transform_6(%arg0: i32) -> (i32, i32) {
    %c0_i32 = arith.constant 0 : i32
    %c0_i32_0 = arith.constant 0 : i32
    %c0_i32_1 = arith.constant 0 : i32
    return %c0_i32, %c0_i32_0 : i32, i32
  }
  func.func @transform_7(%arg0: i32) -> (i32, i32) {
    %c0_i32 = arith.constant 0 : i32
    %c0_i32_0 = arith.constant 0 : i32
    %c0_i32_1 = arith.constant 0 : i32
    return %c0_i32, %c0_i32_0 : i32, i32
  }
  func.func @transform_8(%arg0: i32) -> (i32, i32) {
    %c0_i32 = arith.constant 0 : i32
    %c0_i32_0 = arith.constant 0 : i32
    %c0_i32_1 = arith.constant 0 : i32
    return %c0_i32, %c0_i32_0 : i32, i32
  }
  func.func @transform_9(%arg0: i32) -> (i32, i32) {
    %c0_i32 = arith.constant 0 : i32
    %c0_i32_0 = arith.constant 0 : i32
    %c0_i32_1 = arith.constant 0 : i32
    return %c0_i32, %c0_i32_0 : i32, i32
  }
  func.func @transform_10(%arg0: i32) -> (i32, i32) {
    %c0_i32 = arith.constant 0 : i32
    %c0_i32_0 = arith.constant 0 : i32
    %c0_i32_1 = arith.constant 0 : i32
    return %c0_i32, %c0_i32_0 : i32, i32
  }
  func.func @transform_11(%arg0: i32) -> (i32, i32, i32) {
    %c0_i32 = arith.constant 0 : i32
    %c0_i32_0 = arith.constant 0 : i32
    %c0_i32_1 = arith.constant 0 : i32
    return %arg0, %c0_i32, %c0_i32_0 : i32, i32, i32
  }
}

</mosaic_0001>

<llo_original>
// kernel: tpu_custom_call.1
$region0: #{tpu_custom_call.1}
  #allocation0 [shape = 'u32[]', space=smem, size = 0x4, offset = 0x4, fixed_abs, tag = 'smem constant byte address 0x4 - core index']
  #allocation1 [shape = 'u32[144,128]{1,0:T(1,128)}', space=vmem, size = 0x12000, scoped, tag = 'internal scratch']
  %s0 = inlined_call_operand.vmem [shape: f32[2,4,256], index: 0, kind: input, shape index: {}]
  %s1 = inlined_call_operand.vmem [shape: f32[3,8,12], index: 1, kind: input, shape index: {}]
  %s2 = inlined_call_operand.vmem [shape: f32[8,1], index: 2, kind: input, shape index: {}]
  %s3 = inlined_call_operand.vmem [shape: f32[8,1], index: 3, kind: input, shape index: {}]
  %s4 = inlined_call_operand.vmem [shape: f32[3,8,24], index: 4, kind: input, shape index: {}]
  %s5 = inlined_call_operand.vmem [shape: f32[8,1], index: 5, kind: input, shape index: {}]
  %s6 = inlined_call_operand.vmem [shape: f32[8,1], index: 6, kind: input, shape index: {}]
  %s7 = inlined_call_operand.vmem [shape: f32[16,8], index: 7, kind: input, shape index: {}]
  %s8 = inlined_call_operand.vmem [shape: f32[8,4], index: 8, kind: input, shape index: {}]
  %s9 = inlined_call_operand.vmem [shape: f32[8,1], index: 9, kind: input, shape index: {}]
  %s10 = inlined_call_operand.vmem [shape: f32[8,1], index: 10, kind: input, shape index: {}]
  %s11 = inlined_call_operand.hbm [shape: f32[2,8,64], index: 11, kind: output, shape index: {}]
  %s12 = sld [smem:[#allocation0]]
  $region77: #{tpu_custom_call.1} parent=0
    _
  %s14 = ssub.s32 1, %s12
  %s15 = scalar_select 0, %s14, %s12
  $region1: #{tpu_custom_call.1} parent=0
    #allocation2 [shape = 'u8[8192]{0}', space=vmem, size = 0x2000, scoped, tag = 'output window, operand 0']
    #allocation3 [shape = 's32[2]{0}', space=sflag, size = 0x8, scoped, tag = 'scoped memory for tpu_custom_call.1']
    %16 = vsyncpa [#allocation3], 0
    %s17 = scalar_lea.sflag [#allocation3], 1
    %18 = vsyncpa %s17, 0
    loop: start=0, step=1, limit=4
    $region2: #{tpu_custom_call.1} parent=1 // loop_pre_header
      _
    $region3: #{tpu_custom_call.1} parent=1 // loop_header
      %s20 = sphi 0, %s24
      %p21 = scmp.ge.s32.totalorder %s20, 4
      %s30 = sphi 0, %s32
      %s33 = sphi 0, %s30
      %s34 = sphi 0, %s33
      %s50 = sphi 0, %s34
      %s54 = sphi 0, %s54
      %s56 = sphi 0, %s54
      %s57 = sphi 0, %s56
      %s71 = sphi 0, %s57
      %s75 = sphi 0, %s75
      %s77 = sphi 0, %s75
      %s78 = sphi 0, %s77
      %s92 = sphi 0, %s78
      %s96 = sphi 0, %s96
      %s98 = sphi 0, %s96
      %s99 = sphi 0, %s98
      %s113 = sphi 0, %s99
      %s117 = sphi 0, %s117
      %s119 = sphi 0, %s117
      %s120 = sphi 0, %s119
      %s134 = sphi 0, %s120
      %s138 = sphi 0, %s138
      %s140 = sphi 0, %s138
      %s141 = sphi 0, %s140
      %s155 = sphi 0, %s141
      %s159 = sphi 0, %s159
      %s161 = sphi 0, %s159
      %s162 = sphi 0, %s161
      %s176 = sphi 0, %s162
      %s180 = sphi 0, %s180
      %s182 = sphi 0, %s180
      %s183 = sphi 0, %s182
      %s197 = sphi 0, %s183
      %s201 = sphi 0, %s201
      %s203 = sphi 0, %s201
      %s204 = sphi 0, %s203
      %s218 = sphi 0, %s204
      %s222 = sphi 0, %s222
      %s224 = sphi 0, %s222
      %s225 = sphi 0, %s224
      %s239 = sphi 0, %s225
      %s243 = sphi 0, %s243
      %s245 = sphi 0, %s243
      %s246 = sphi 0, %s245
      %s260 = sphi 0, %s246
      %s266 = sphi 0, %s268
      %s269 = sphi 0, %s266
      %s270 = sphi 0, %s269
      %s286 = sphi 0, %s270
    $region4: #{tpu_custom_call.1} parent=1 // loop_header_branch
      %23 = sbr.rel (%p21) target = $region8
    $region5: #{tpu_custom_call.1} parent=1 // loop_body
      %s25 = ssub.s32 %s20, 1
      %s26 = ssub.s32 %s20, 2
      %s27 = sadd.s32 %s20, 1
      %s28 = ssub.s32 %s20, %s27
      %p29 = scmp.eq.s32.totalorder %s28, 0
      %s31 = sadd.s32 %s30, 1
      %s32 = scalar_select %p29, %s30, %s31
      %p35 = pneg %p29
      %p36 = scmp.eq.s32.totalorder %s20, 1
      %p37 = por %p35, %p36
      %p38 = scmp.ne.s32.totalorder %s30, %s33
      %p39 = scmp.eq.s32.totalorder %s20, 0
      %p40 = por %p38, %p39
      %p41 = scmp.ne.s32.totalorder %s30, %s33
      %p42 = scmp.eq.s32.totalorder %s25, 1
      %p43 = por %p41, %p42
      %p44 = scmp.ne.s32.totalorder %s33, %s34
      %p45 = scmp.eq.s32.totalorder %s25, 0
      %p46 = por %p44, %p45
      %p47 = scmp.ne.s32.totalorder %s33, %s34
      %p48 = scmp.eq.s32.totalorder %s26, 1
      %p49 = por %p47, %p48
      %p51 = scmp.ne.s32.totalorder %s34, %s50
      %p52 = scmp.eq.s32.totalorder %s26, 0
      %p53 = por %p51, %p52
      %s55 = sadd.s32 %s54, 1
      %p58 = scmp.eq.s32.totalorder %s20, 1
      %p59 = scmp.ne.s32.totalorder %s54, %s56
      %p60 = scmp.eq.s32.totalorder %s20, 0
      %p61 = por %p59, %p60
      %p62 = scmp.ne.s32.totalorder %s54, %s56
      %p63 = scmp.eq.s32.totalorder %s25, 1
      %p64 = por %p62, %p63
      %p65 = scmp.ne.s32.totalorder %s56, %s57
      %p66 = scmp.eq.s32.totalorder %s25, 0
      %p67 = por %p65, %p66
      %p68 = scmp.ne.s32.totalorder %s56, %s57
      %p69 = scmp.eq.s32.totalorder %s26, 1
      %p70 = por %p68, %p69
      %p72 = scmp.ne.s32.totalorder %s57, %s71
      %p73 = scmp.eq.s32.totalorder %s26, 0
      %p74 = por %p72, %p73
      %s76 = sadd.s32 %s75, 1
      %p79 = scmp.eq.s32.totalorder %s20, 1
      %p80 = scmp.ne.s32.totalorder %s75, %s77
      %p81 = scmp.eq.s32.totalorder %s20, 0
      %p82 = por %p80, %p81
      %p83 = scmp.ne.s32.totalorder %s75, %s77
      %p84 = scmp.eq.s32.totalorder %s25, 1
      %p85 = por %p83, %p84
      %p86 = scmp.ne.s32.totalorder %s77, %s78
      %p87 = scmp.eq.s32.totalorder %s25, 0
      %p88 = por %p86, %p87
      %p89 = scmp.ne.s32.totalorder %s77, %s78
      %p90 = scmp.eq.s32.totalorder %s26, 1
      %p91 = por %p89, %p90
      %p93 = scmp.ne.s32.totalorder %s78, %s92
      %p94 = scmp.eq.s32.totalorder %s26, 0
      %p95 = por %p93, %p94
      %s97 = sadd.s32 %s96, 1
      %p100 = scmp.eq.s32.totalorder %s20, 1
      %p101 = scmp.ne.s32.totalorder %s96, %s98
      %p102 = scmp.eq.s32.totalorder %s20, 0
      %p103 = por %p101, %p102
      %p104 = scmp.ne.s32.totalorder %s96, %s98
      %p105 = scmp.eq.s32.totalorder %s25, 1
      %p106 = por %p104, %p105
      %p107 = scmp.ne.s32.totalorder %s98, %s99
      %p108 = scmp.eq.s32.totalorder %s25, 0
      %p109 = por %p107, %p108
      %p110 = scmp.ne.s32.totalorder %s98, %s99
      %p111 = scmp.eq.s32.totalorder %s26, 1
      %p112 = por %p110, %p111
      %p114 = scmp.ne.s32.totalorder %s99, %s113
      %p115 = scmp.eq.s32.totalorder %s26, 0
      %p116 = por %p114, %p115
      %s118 = sadd.s32 %s117, 1
      %p121 = scmp.eq.s32.totalorder %s20, 1
      %p122 = scmp.ne.s32.totalorder %s117, %s119
      %p123 = scmp.eq.s32.totalorder %s20, 0
      %p124 = por %p122, %p123
      %p125 = scmp.ne.s32.totalorder %s117, %s119
      %p126 = scmp.eq.s32.totalorder %s25, 1
      %p127 = por %p125, %p126
      %p128 = scmp.ne.s32.totalorder %s119, %s120
      %p129 = scmp.eq.s32.totalorder %s25, 0
      %p130 = por %p128, %p129
      %p131 = scmp.ne.s32.totalorder %s119, %s120
      %p132 = scmp.eq.s32.totalorder %s26, 1
      %p133 = por %p131, %p132
      %p135 = scmp.ne.s32.totalorder %s120, %s134
      %p136 = scmp.eq.s32.totalorder %s26, 0
      %p137 = por %p135, %p136
      %s139 = sadd.s32 %s138, 1
      %p142 = scmp.eq.s32.totalorder %s20, 1
      %p143 = scmp.ne.s32.totalorder %s138, %s140
      %p144 = scmp.eq.s32.totalorder %s20, 0
      %p145 = por %p143, %p144
      %p146 = scmp.ne.s32.totalorder %s138, %s140
      %p147 = scmp.eq.s32.totalorder %s25, 1
      %p148 = por %p146, %p147
      %p149 = scmp.ne.s32.totalorder %s140, %s141
      %p150 = scmp.eq.s32.totalorder %s25, 0
      %p151 = por %p149, %p150
      %p152 = scmp.ne.s32.totalorder %s140, %s141
      %p153 = scmp.eq.s32.totalorder %s26, 1
      %p154 = por %p152, %p153
      %p156 = scmp.ne.s32.totalorder %s141, %s155
      %p157 = scmp.eq.s32.totalorder %s26, 0
      %p158 = por %p156, %p157
      %s160 = sadd.s32 %s159, 1
      %p163 = scmp.eq.s32.totalorder %s20, 1
      %p164 = scmp.ne.s32.totalorder %s159, %s161
      %p165 = scmp.eq.s32.totalorder %s20, 0
      %p166 = por %p164, %p165
      %p167 = scmp.ne.s32.totalorder %s159, %s161
      %p168 = scmp.eq.s32.totalorder %s25, 1
      %p169 = por %p167, %p168
      %p170 = scmp.ne.s32.totalorder %s161, %s162
      %p171 = scmp.eq.s32.totalorder %s25, 0
      %p172 = por %p170, %p171
      %p173 = scmp.ne.s32.totalorder %s161, %s162
      %p174 = scmp.eq.s32.totalorder %s26, 1
      %p175 = por %p173, %p174
      %p177 = scmp.ne.s32.totalorder %s162, %s176
      %p178 = scmp.eq.s32.totalorder %s26, 0
      %p179 = por %p177, %p178
      %s181 = sadd.s32 %s180, 1
      %p184 = scmp.eq.s32.totalorder %s20, 1
      %p185 = scmp.ne.s32.totalorder %s180, %s182
      %p186 = scmp.eq.s32.totalorder %s20, 0
      %p187 = por %p185, %p186
      %p188 = scmp.ne.s32.totalorder %s180, %s182
      %p189 = scmp.eq.s32.totalorder %s25, 1
      %p190 = por %p188, %p189
      %p191 = scmp.ne.s32.totalorder %s182, %s183
      %p192 = scmp.eq.s32.totalorder %s25, 0
      %p193 = por %p191, %p192
      %p194 = scmp.ne.s32.totalorder %s182, %s183
      %p195 = scmp.eq.s32.totalorder %s26, 1
      %p196 = por %p194, %p195
      %p198 = scmp.ne.s32.totalorder %s183, %s197
      %p199 = scmp.eq.s32.totalorder %s26, 0
      %p200 = por %p198, %p199
      %s202 = sadd.s32 %s201, 1
      %p205 = scmp.eq.s32.totalorder %s20, 1
      %p206 = scmp.ne.s32.totalorder %s201, %s203
      %p207 = scmp.eq.s32.totalorder %s20, 0
      %p208 = por %p206, %p207
      %p209 = scmp.ne.s32.totalorder %s201, %s203
      %p210 = scmp.eq.s32.totalorder %s25, 1
      %p211 = por %p209, %p210
      %p212 = scmp.ne.s32.totalorder %s203, %s204
      %p213 = scmp.eq.s32.totalorder %s25, 0
      %p214 = por %p212, %p213
      %p215 = scmp.ne.s32.totalorder %s203, %s204
      %p216 = scmp.eq.s32.totalorder %s26, 1
      %p217 = por %p215, %p216
      %p219 = scmp.ne.s32.totalorder %s204, %s218
      %p220 = scmp.eq.s32.totalorder %s26, 0
      %p221 = por %p219, %p220
      %s223 = sadd.s32 %s222, 1
      %p226 = scmp.eq.s32.totalorder %s20, 1
      %p227 = scmp.ne.s32.totalorder %s222, %s224
      %p228 = scmp.eq.s32.totalorder %s20, 0
      %p229 = por %p227, %p228
      %p230 = scmp.ne.s32.totalorder %s222, %s224
      %p231 = scmp.eq.s32.totalorder %s25, 1
      %p232 = por %p230, %p231
      %p233 = scmp.ne.s32.totalorder %s224, %s225
      %p234 = scmp.eq.s32.totalorder %s25, 0
      %p235 = por %p233, %p234
      %p236 = scmp.ne.s32.totalorder %s224, %s225
      %p237 = scmp.eq.s32.totalorder %s26, 1
      %p238 = por %p236, %p237
      %p240 = scmp.ne.s32.totalorder %s225, %s239
      %p241 = scmp.eq.s32.totalorder %s26, 0
      %p242 = por %p240, %p241
      %s244 = sadd.s32 %s243, 1
      %p247 = scmp.eq.s32.totalorder %s20, 1
      %p248 = scmp.ne.s32.totalorder %s243, %s245
      %p249 = scmp.eq.s32.totalorder %s20, 0
      %p250 = por %p248, %p249
      %p251 = scmp.ne.s32.totalorder %s243, %s245
      %p252 = scmp.eq.s32.totalorder %s25, 1
      %p253 = por %p251, %p252
      %p254 = scmp.ne.s32.totalorder %s245, %s246
      %p255 = scmp.eq.s32.totalorder %s25, 0
      %p256 = por %p254, %p255
      %p257 = scmp.ne.s32.totalorder %s245, %s246
      %p258 = scmp.eq.s32.totalorder %s26, 1
      %p259 = por %p257, %p258
      %p261 = scmp.ne.s32.totalorder %s246, %s260
      %p262 = scmp.eq.s32.totalorder %s26, 0
      %p263 = por %p261, %p262
      %s264 = ssub.s32 %s20, %s27
      %p265 = scmp.eq.s32.totalorder %s264, 0
      %s267 = sadd.s32 %s266, 1
      %s268 = scalar_select %p265, %s266, %s267
      %p271 = pneg %p265
      %p272 = scmp.eq.s32.totalorder %s20, 1
      %p273 = por %p271, %p272
      %p274 = scmp.ne.s32.totalorder %s266, %s269
      %p275 = scmp.eq.s32.totalorder %s20, 0
      %p276 = por %p274, %p275
      %p277 = scmp.ne.s32.totalorder %s266, %s269
      %p278 = scmp.eq.s32.totalorder %s25, 1
      %p279 = por %p277, %p278
      %p280 = scmp.ne.s32.totalorder %s269, %s270
      %p281 = scmp.eq.s32.totalorder %s25, 0
      %p282 = por %p280, %p281
      %p283 = scmp.ne.s32.totalorder %s269, %s270
      %p284 = scmp.eq.s32.totalorder %s26, 1
      %p285 = por %p283, %p284
      %p287 = scmp.ne.s32.totalorder %s270, %s286
      %p288 = scmp.eq.s32.totalorder %s26, 0
      %p289 = por %p287, %p288
      %p290 = scmp.le.s32.totalorder 1, %s20
      %p291 = scmp.lt.s32.totalorder %s20, 3
      %p292 = pnand %p290, %p291
      %p293 = pneg %p292
      // Predicated region
      $region9: #{tpu_custom_call.1} parent=5 // pred_check
        _
      $region10: #{tpu_custom_call.1} parent=5 // pred_check_branch
        %295 = sbr.rel (%p292) target = $region12
      $region11: #{tpu_custom_call.1} parent=5 // pred_region
        %s296 = ssub.s32 %s20, 1
        // Predicated region
        $region13: #{tpu_custom_call.1} parent=11 // pred_check
          %p297 = pneg %p67
        $region14: #{tpu_custom_call.1} parent=11 // pred_check_branch
          %299 = sbr.rel (%p297) target = $region16
        $region15: #{tpu_custom_call.1} parent=11 // pred_region
          _
        $region16: #{tpu_custom_call.1} parent=11 // pred_fallthru
          _
        // Predicated region
        $region17: #{tpu_custom_call.1} parent=11 // pred_check
          %p300 = pneg %p88
        $region18: #{tpu_custom_call.1} parent=11 // pred_check_branch
          %302 = sbr.rel (%p300) target = $region20
        $region19: #{tpu_custom_call.1} parent=11 // pred_region
          _
        $region20: #{tpu_custom_call.1} parent=11 // pred_fallthru
          _
        // Predicated region
        $region21: #{tpu_custom_call.1} parent=11 // pred_check
          %p303 = pneg %p109
        $region22: #{tpu_custom_call.1} parent=11 // pred_check_branch
          %305 = sbr.rel (%p303) target = $region24
        $region23: #{tpu_custom_call.1} parent=11 // pred_region
          _
        $region24: #{tpu_custom_call.1} parent=11 // pred_fallthru
          _
        // Predicated region
        $region25: #{tpu_custom_call.1} parent=11 // pred_check
          %p306 = pneg %p130
        $region26: #{tpu_custom_call.1} parent=11 // pred_check_branch
          %308 = sbr.rel (%p306) target = $region28
        $region27: #{tpu_custom_call.1} parent=11 // pred_region
          _
        $region28: #{tpu_custom_call.1} parent=11 // pred_fallthru
          _
        // Predicated region
        $region29: #{tpu_custom_call.1} parent=11 // pred_check
          %p309 = pneg %p151
        $region30: #{tpu_custom_call.1} parent=11 // pred_check_branch
          %311 = sbr.rel (%p309) target = $region32
        $region31: #{tpu_custom_call.1} parent=11 // pred_region
          _
        $region32: #{tpu_custom_call.1} parent=11 // pred_fallthru
          _
        // Predicated region
        $region33: #{tpu_custom_call.1} parent=11 // pred_check
          %p312 = pneg %p172
        $region34: #{tpu_custom_call.1} parent=11 // pred_check_branch
          %314 = sbr.rel (%p312) target = $region36
        $region35: #{tpu_custom_call.1} parent=11 // pred_region
          _
        $region36: #{tpu_custom_call.1} parent=11 // pred_fallthru
          _
        // Predicated region
        $region37: #{tpu_custom_call.1} parent=11 // pred_check
          %p315 = pneg %p193
        $region38: #{tpu_custom_call.1} parent=11 // pred_check_branch
          %317 = sbr.rel (%p315) target = $region40
        $region39: #{tpu_custom_call.1} parent=11 // pred_region
          _
        $region40: #{tpu_custom_call.1} parent=11 // pred_fallthru
          _
        // Predicated region
        $region41: #{tpu_custom_call.1} parent=11 // pred_check
          %p318 = pneg %p214
        $region42: #{tpu_custom_call.1} parent=11 // pred_check_branch
          %320 = sbr.rel (%p318) target = $region44
        $region43: #{tpu_custom_call.1} parent=11 // pred_region
          _
        $region44: #{tpu_custom_call.1} parent=11 // pred_fallthru
          _
        // Predicated region
        $region45: #{tpu_custom_call.1} parent=11 // pred_check
          %p321 = pneg %p235
        $region46: #{tpu_custom_call.1} parent=11 // pred_check_branch
          %323 = sbr.rel (%p321) target = $region48
        $region47: #{tpu_custom_call.1} parent=11 // pred_region
          _
        $region48: #{tpu_custom_call.1} parent=11 // pred_fallthru
          _
        // Predicated region
        $region49: #{tpu_custom_call.1} parent=11 // pred_check
          %p324 = pneg %p256
        $region50: #{tpu_custom_call.1} parent=11 // pred_check_branch
          %326 = sbr.rel (%p324) target = $region52
        $region51: #{tpu_custom_call.1} parent=11 // pred_region
          _
        $region52: #{tpu_custom_call.1} parent=11 // pred_fallthru
          _
      $region12: #{tpu_custom_call.1} parent=5 // pred_fallthru
        _
      %p327 = scmp.lt.s32.totalorder %s20, 2
      // Predicated region
      $region53: #{tpu_custom_call.1} parent=5 // pred_check
        %p328 = pneg %p327
      $region54: #{tpu_custom_call.1} parent=5 // pred_check_branch
        %330 = sbr.rel (%p328) target = $region56
      $region55: #{tpu_custom_call.1} parent=5 // pred_region
        // Predicated region
        $region57: #{tpu_custom_call.1} parent=55 // pred_check
          %p331 = pneg %p40
        $region58: #{tpu_custom_call.1} parent=55 // pred_check_branch
          %333 = sbr.rel (%p331) target = $region60
        $region59: #{tpu_custom_call.1} parent=55 // pred_region
          %p334 = scmp.lt.s32.totalorder %s20, 1
          %s335 = scalar_select %p334, %s20, 1
          %s336 = smul.addr %s335, 2
          %s337 = smul.addr %s336, 4
          %s338 = scalar_lea.vmem %s0, %s337
        $region60: #{tpu_custom_call.1} parent=55 // pred_fallthru
          _
      $region56: #{tpu_custom_call.1} parent=5 // pred_fallthru
        _
      %p339 = scmp.le.s32.totalorder 1, %s20
      %p340 = scmp.lt.s32.totalorder %s20, 3
      %p341 = pnand %p339, %p340
      %p342 = pneg %p341
      // Predicated region
      $region61: #{tpu_custom_call.1} parent=5 // pred_check
        _
      $region62: #{tpu_custom_call.1} parent=5 // pred_check_branch
        %344 = sbr.rel (%p341) target = $region64
      $region63: #{tpu_custom_call.1} parent=5 // pred_region
        %s345 = ssub.s32 %s20, 1
        %p346 = scmp.lt.s32.totalorder %s25, 1
        %s347 = scalar_select %p346, %s25, 1
        %s348 = smul.addr %s347, 2
        %s349 = smul.addr %s348, 4
        %s350 = scalar_lea.vmem %s0, %s349
        %p351 = pneg %p46
        %p352 = pneg %p43
        %p353 = pneg %p67
        %p354 = pneg %p64
        %p355 = pneg %p88
        %p356 = pneg %p85
        %p357 = pneg %p109
        %p358 = pneg %p106
        %p359 = pneg %p130
        %p360 = pneg %p127
        %p361 = pneg %p151
        %p362 = pneg %p148
        %p363 = pneg %p172
        %p364 = pneg %p169
        %p365 = pneg %p193
        %p366 = pneg %p190
        %p367 = pneg %p214
        %p368 = pneg %p211
        %p369 = pneg %p235
        %p370 = pneg %p232
        %p371 = pneg %p256
        %p372 = pneg %p253
        %p373 = pneg %p282
        %p374 = pneg %p279
        %s375 = sand.u32 %s269, 1
        %s376 = scalar_lea.sflag [#allocation3], %s375
        %s377 = sand.u32 %s269, 1
        %s378 = smul.addr %s377, 8
        %s379 = scalar_lea.vmem [#allocation2], %s378
        %p380 = scmp.lt.s32.totalorder %s25, 1
        %s381 = scalar_select %p380, %s25, 1
        %s382 = smul.addr %s381, 2
        %s383 = smul.addr %s382, 4
        %s384 = scalar_lea.vmem %s0, %s383
        %v385 = vlaneseq
        %v386 = vand.u32 %v385, 127
        %v387 = vadd.s32 %v386, 128
        %vm388 = vcmp.lt.s32.totalorder %v386, 0
        %v389 = vsub.s32 0, %v386
        %v390 = vsel %vm388, %v389, %v386
        %v391 = vshrl.u32 %v390, 4
        %v392 = vand.u32 %v390, 15
        %v393 = vsub.s32 0, %v392
        %v394 = vsel %vm388, %v393, %v392
        %vm395 = vcmp.lt.s32.totalorder %v387, 0
        %v396 = vsub.s32 0, %v387
        %v397 = vsel %vm395, %v396, %v387
        %v398 = vshrl.u32 %v397, 4
        %v399 = vand.u32 %v397, 15
        %v400 = vsub.s32 0, %v399
        %v401 = vsel %vm395, %v400, %v399
        %vm402 = vcmp.ne.s32.totalorder %v394, 0
        %vm403 = vcmp.ne.s32.totalorder %v401, 0
        %vm404 = vcmp.lt.s32.totalorder %v394, 0
        %vm405 = vcmp.lt.s32.totalorder %v401, 0
        %vm406 = vmand %vm404, %vm402
        %vm407 = vmand %vm405, %vm403
        %v408 = vadd.s32 %v394, 16
        %v409 = vadd.s32 %v401, 16
        %v410 = vsel %vm406, %v408, %v394
        %v411 = vsel %vm407, %v409, %v401
        %vm412 = vcmp.ne.s32.totalorder %v410, 0
        %vm413 = vcmp.ne.s32.totalorder %v411, 0
        %vm414 = vcmp.ne.s32.totalorder %v410, 15
        %vm415 = vcmp.ne.s32.totalorder %v411, 15
        %vm416 = vcmp.lt.s32.totalorder %v386, 0
        %v417 = vsub.s32 0, %v386
        %v418 = vsel %vm416, %v417, %v386
        %v419 = vshrl.u32 %v418, 3
        %v420 = vand.u32 %v418, 7
        %v421 = vsub.s32 0, %v420
        %v422 = vsel %vm416, %v421, %v420
        %vm423 = vcmp.ne.s32.totalorder %v422, 0
        %vm424 = vcmp.lt.s32.totalorder %v422, 0
        %vm425 = vmand %vm424, %vm423
        %v426 = vadd.s32 %v422, 8
        %v427 = vsel %vm425, %v426, %v422
        %vm428 = vcmp.ne.s32.totalorder %v427, 0
        %vm429 = vcmp.ne.s32.totalorder %v427, 7
        %v430 = vld [vmem:[%s7] sm:$0xff]
        %v431 = vld [vmem:[%s7 + $0x8] sm:$0xff]
        %v432 = vld [vmem:[%s384] sm:$0xff]
        %v434 = vcombine.high %v432, %v432
        %435 = vrot.lane.b32.xlu0 %v432, 1
        %v436 = vpop.permute.xlu0 %435
        %437 = vrot.lane.b32.xlu0 %v434, 1
        %v438 = vpop.permute.xlu0 %437
        %vm439 = vcmask 7168
        %v440 = vsel %vm439, %v436, %v438
        %v443 = vsel %vm439, 0.0, %v436
        %v444 = vsel %vm412, 1, 0
        %v445 = vsel %vm413, 1, 0
        %vm446 = vcmp.eq.s32.totalorder %v444, 1
        %vm447 = vcmp.eq.s32.totalorder %v445, 1
        %v448 = vsel %vm446, %v443, 0.0
        %v449 = vsel %vm447, %v440, 0.0
        %450 = vrot.lane.b32.xlu0 %v432, 127
        %v451 = vpop.permute.xlu0 %450
        %452 = vrot.lane.b32.xlu0 %v434, 127
        %v453 = vpop.permute.xlu0 %452
        %vm454 = vcmask 1039360
        %v455 = vsel %vm454, %v451, %v453
        %v458 = vsel %vm454, %v453, 0.0
        %v459 = vsel %vm414, 1, 0
        %v460 = vsel %vm415, 1, 0
        %vm461 = vcmp.eq.s32.totalorder %v459, 1
        %vm462 = vcmp.eq.s32.totalorder %v460, 1
        %v463 = vsel %vm461, %v455, 0.0
        %v464 = vsel %vm462, %v458, 0.0
        %v465 = vcombine.low %v432, %v432
        %vm467 = vcmask 1043456
        %v468 = vsel %vm467, %v448, %v465
        %v469 = vsel %vm467, %v449, %v432
        %474 = vrot.lane.b32.xlu0 %v468, 16
        %v475 = vpop.permute.xlu0 %474
        %476 = vrot.lane.b32.xlu0 %v469, 16
        %v477 = vpop.permute.xlu0 %476
        %478 = vrot.lane.b32.xlu0 %v463, 16
        %v479 = vpop.permute.xlu0 %478
        %480 = vrot.lane.b32.xlu0 %v464, 16
        %v481 = vpop.permute.xlu0 %480
        %vm482 = vcmask 130048
        %v483 = vsel %vm482, %v475, %v477
        %v484 = vsel %vm482, %v479, %v481
        %v488 = vsel %vm482, 0.0, %v475
        %v489 = vsel %vm482, 0.0, %v479
        %v490 = vld [vmem:[%s1] sm:$0xff]
        %s491 = scalar_lea.vmem %s1, 8
        %v492 = vld [vmem:[%s491] sm:$0xff]
        %vm493 = vcmask 97280
        %v495 = vsel %vm493, %v492, 0
        %v497 = vsel %vm467, %v463, 0
        %v499 = vsel %vm467, %v464, 0
        %501 = vmatprep.subr.mxu0 %v469
        %502 = vmatpush1.msra.mxu0 %v468
        %503 = vmatprep.subr.mxu0 %v499
        %504 = vmatpush1.msra.mxu0 %v497
        %505 = vmatprep.subr.mxu0 0.0
        %506 = vmatpush1.msra.mxu0 0.0
        %507 = vmatprep.subr.mxu0 0.0
        %508 = vmatpush1.msra.mxu0 0.0
        %509 = vmatprep.subr.mxu0 0.0
        %510 = vmatpush1.msra.mxu0 0.0
        %511 = vmatprep.subr.mxu0 0.0
        %512 = vmatpush1.msra.mxu0 0.0
        %513 = vmatprep.subr.mxu0 0.0
        %514 = vmatpush1.msra.mxu0 0.0
        %515 = vmatprep.subr.mxu0 0.0
        %516 = vmatpush1.msra.mxu0 0.0
        %517 = vmatprep.subr.mxu0 0.0
        %518 = vmatpush1.msra.mxu0 0.0
        %519 = vmatprep.subr.mxu0 0.0
        %520 = vmatpush1.msra.mxu0 0.0
        %521 = vmatprep.subr.mxu0 0.0
        %522 = vmatpush1.msra.mxu0 0.0
        %523 = vmatprep.subr.mxu0 0.0
        %524 = vmatpush1.msra.mxu0 0.0
        %525 = vmatprep.subr.mxu0 0.0
        %526 = vmatpush1.msra.mxu0 0.0
        %527 = vmatprep.subr.mxu0 0.0
        %528 = vmatpush1.msra.mxu0 0.0
        %529 = vmatprep.subr.mxu0 0.0
        %530 = vmatpush1.msra.mxu0 0.0
        %531 = vmatprep.subr.mxu0 0.0
        %532 = vmatpush1.msra.mxu0 0.0
        %533 = vmatprep.subr.mxu0 0.0
        %534 = vmatpush1.msra.mxu0 0.0
        %535 = vmatprep.subr.mxu0 0.0
        %536 = vmatpush1.msra.mxu0 0.0
        %537 = vmatprep.subr.mxu0 0.0
        %538 = vmatpush1.msra.mxu0 0.0
        %539 = vmatprep.subr.mxu0 0.0
        %540 = vmatpush1.msra.mxu0 0.0
        %541 = vmatprep.subr.mxu0 0.0
        %542 = vmatpush1.msra.mxu0 0.0
        %543 = vmatprep.subr.mxu0 0.0
        %544 = vmatpush1.msra.mxu0 0.0
        %545 = vmatprep.subr.mxu0 0.0
        %546 = vmatpush1.msra.mxu0 0.0
        %547 = vmatprep.subr.mxu0 0.0
        %548 = vmatpush1.msra.mxu0 0.0
        %549 = vmatprep.subr.mxu0 0.0
        %550 = vmatpush1.msra.mxu0 0.0
        %551 = vmatprep.subr.mxu0 0.0
        %552 = vmatpush1.msra.mxu0 0.0
        %553 = vmatprep.subr.mxu0 0.0
        %554 = vmatpush1.msra.mxu0 0.0
        %555 = vmatprep.subr.mxu0 0.0
        %556 = vmatpush1.msra.mxu0 0.0
        %557 = vmatprep.subr.mxu0 0.0
        %558 = vmatpush1.msra.mxu0 0.0
        %559 = vmatprep.subr.mxu0 0.0
        %560 = vmatpush1.msra.mxu0 0.0
        %561 = vmatprep.subr.mxu0 0.0
        %562 = vmatpush1.msra.mxu0 0.0
        %563 = vmatprep.subr.mxu0 0.0
        %564 = vmatpush1.msra.mxu0 0.0
        %565 = vmatprep.mubr.f32.mxu0 0.0
        %566 = vmatmul.mubr.f32.gmra.mrb[0].mxu0 %v495
        %v567 = vpop.f32.mrb[0].mxu0
        %v568 = vadd.f32 0.0, %v567
        %v569 = vpop.f32.mrb[0].mxu0
        %v570 = vadd.f32 0.0, %v569
        %571 = vdwg.mxu0
        %v573 = vsel %vm493, %v490, 0
        %v576 = vsel %vm467, %v489, 0
        %v578 = vsel %vm467, %v484, 0
        %580 = vmatprep.subr.mxu0 %v483
        %581 = vmatpush1.msra.mxu0 %v488
        %582 = vmatprep.subr.mxu0 %v578
        %583 = vmatpush1.msra.mxu0 %v576
        %584 = vmatprep.subr.mxu0 0.0
        %585 = vmatpush1.msra.mxu0 0.0
        %586 = vmatprep.subr.mxu0 0.0
        %587 = vmatpush1.msra.mxu0 0.0
        %588 = vmatprep.subr.mxu0 0.0
        %589 = vmatpush1.msra.mxu0 0.0
        %590 = vmatprep.subr.mxu0 0.0
        %591 = vmatpush1.msra.mxu0 0.0
        %592 = vmatprep.subr.mxu0 0.0
        %593 = vmatpush1.msra.mxu0 0.0
        %594 = vmatprep.subr.mxu0 0.0
        %595 = vmatpush1.msra.mxu0 0.0
        %596 = vmatprep.subr.mxu0 0.0
        %597 = vmatpush1.msra.mxu0 0.0
        %598 = vmatprep.subr.mxu0 0.0
        %599 = vmatpush1.msra.mxu0 0.0
        %600 = vmatprep.subr.mxu0 0.0
        %601 = vmatpush1.msra.mxu0 0.0
        %602 = vmatprep.subr.mxu0 0.0
        %603 = vmatpush1.msra.mxu0 0.0
        %604 = vmatprep.subr.mxu0 0.0
        %605 = vmatpush1.msra.mxu0 0.0
        %606 = vmatprep.subr.mxu0 0.0
        %607 = vmatpush1.msra.mxu0 0.0
        %608 = vmatprep.subr.mxu0 0.0
        %609 = vmatpush1.msra.mxu0 0.0
        %610 = vmatprep.subr.mxu0 0.0
        %611 = vmatpush1.msra.mxu0 0.0
        %612 = vmatprep.subr.mxu0 0.0
        %613 = vmatpush1.msra.mxu0 0.0
        %614 = vmatprep.subr.mxu0 0.0
        %615 = vmatpush1.msra.mxu0 0.0
        %616 = vmatprep.subr.mxu0 0.0
        %617 = vmatpush1.msra.mxu0 0.0
        %618 = vmatprep.subr.mxu0 0.0
        %619 = vmatpush1.msra.mxu0 0.0
        %620 = vmatprep.subr.mxu0 0.0
        %621 = vmatpush1.msra.mxu0 0.0
        %622 = vmatprep.subr.mxu0 0.0
        %623 = vmatpush1.msra.mxu0 0.0
        %624 = vmatprep.subr.mxu0 0.0
        %625 = vmatpush1.msra.mxu0 0.0
        %626 = vmatprep.subr.mxu0 0.0
        %627 = vmatpush1.msra.mxu0 0.0
        %628 = vmatprep.subr.mxu0 0.0
        %629 = vmatpush1.msra.mxu0 0.0
        %630 = vmatprep.subr.mxu0 0.0
        %631 = vmatpush1.msra.mxu0 0.0
        %632 = vmatprep.subr.mxu0 0.0
        %633 = vmatpush1.msra.mxu0 0.0
        %634 = vmatprep.subr.mxu0 0.0
        %635 = vmatpush1.msra.mxu0 0.0
        %636 = vmatprep.subr.mxu0 0.0
        %637 = vmatpush1.msra.mxu0 0.0
        %638 = vmatprep.subr.mxu0 0.0
        %639 = vmatpush1.msra.mxu0 0.0
        %640 = vmatprep.subr.mxu0 0.0
        %641 = vmatpush1.msra.mxu0 0.0
        %642 = vmatprep.subr.mxu0 0.0
        %643 = vmatpush1.msra.mxu0 0.0
        %644 = vmatprep.mubr.f32.mxu0 0.0
        %645 = vmatmul.mubr.f32.gmra.mrb[0].mxu0 %v573
        %v646 = vpop.f32.mrb[0].mxu0
        %v647 = vadd.f32 %v568, %v646
        %v648 = vpop.f32.mrb[0].mxu0
        %v649 = vadd.f32 %v570, %v648
        %650 = vdwg.mxu0
        %651 = vrot.lane.b32.xlu0 %v468, 112
        %v652 = vpop.permute.xlu0 %651
        %653 = vrot.lane.b32.xlu0 %v469, 112
        %v654 = vpop.permute.xlu0 %653
        %655 = vrot.lane.b32.xlu0 %v463, 112
        %v656 = vpop.permute.xlu0 %655
        %657 = vrot.lane.b32.xlu0 %v464, 112
        %v658 = vpop.permute.xlu0 %657
        %vm659 = vcmask 916480
        %v660 = vsel %vm659, %v652, %v654
        %v661 = vsel %vm659, %v656, %v658
        %v665 = vsel %vm659, %v654, 0.0
        %v666 = vsel %vm659, %v658, 0.0
        %s667 = scalar_lea.vmem %s1, 16
        %v668 = vld [vmem:[%s667] sm:$0xff]
        %v670 = vsel %vm493, %v668, 0
        %v672 = vsel %vm467, %v661, 0
        %v675 = vsel %vm467, %v666, 0
        %677 = vmatprep.subr.mxu0 %v665
        %678 = vmatpush1.msra.mxu0 %v660
        %679 = vmatprep.subr.mxu0 %v675
        %680 = vmatpush1.msra.mxu0 %v672
        %681 = vmatprep.subr.mxu0 0.0
        %682 = vmatpush1.msra.mxu0 0.0
        %683 = vmatprep.subr.mxu0 0.0
        %684 = vmatpush1.msra.mxu0 0.0
        %685 = vmatprep.subr.mxu0 0.0
        %686 = vmatpush1.msra.mxu0 0.0
        %687 = vmatprep.subr.mxu0 0.0
        %688 = vmatpush1.msra.mxu0 0.0
        %689 = vmatprep.subr.mxu0 0.0
        %690 = vmatpush1.msra.mxu0 0.0
        %691 = vmatprep.subr.mxu0 0.0
        %692 = vmatpush1.msra.mxu0 0.0
        %693 = vmatprep.subr.mxu0 0.0
        %694 = vmatpush1.msra.mxu0 0.0
        %695 = vmatprep.subr.mxu0 0.0
        %696 = vmatpush1.msra.mxu0 0.0
        %697 = vmatprep.subr.mxu0 0.0
        %698 = vmatpush1.msra.mxu0 0.0
        %699 = vmatprep.subr.mxu0 0.0
        %700 = vmatpush1.msra.mxu0 0.0
        %701 = vmatprep.subr.mxu0 0.0
        %702 = vmatpush1.msra.mxu0 0.0
        %703 = vmatprep.subr.mxu0 0.0
        %704 = vmatpush1.msra.mxu0 0.0
        %705 = vmatprep.subr.mxu0 0.0
        %706 = vmatpush1.msra.mxu0 0.0
        %707 = vmatprep.subr.mxu0 0.0
        %708 = vmatpush1.msra.mxu0 0.0
        %709 = vmatprep.subr.mxu0 0.0
        %710 = vmatpush1.msra.mxu0 0.0
        %711 = vmatprep.subr.mxu0 0.0
        %712 = vmatpush1.msra.mxu0 0.0
        %713 = vmatprep.subr.mxu0 0.0
        %714 = vmatpush1.msra.mxu0 0.0
        %715 = vmatprep.subr.mxu0 0.0
        %716 = vmatpush1.msra.mxu0 0.0
        %717 = vmatprep.subr.mxu0 0.0
        %718 = vmatpush1.msra.mxu0 0.0
        %719 = vmatprep.subr.mxu0 0.0
        %720 = vmatpush1.msra.mxu0 0.0
        %721 = vmatprep.subr.mxu0 0.0
        %722 = vmatpush1.msra.mxu0 0.0
        %723 = vmatprep.subr.mxu0 0.0
        %724 = vmatpush1.msra.mxu0 0.0
        %725 = vmatprep.subr.mxu0 0.0
        %726 = vmatpush1.msra.mxu0 0.0
        %727 = vmatprep.subr.mxu0 0.0
        %728 = vmatpush1.msra.mxu0 0.0
        %729 = vmatprep.subr.mxu0 0.0
        %730 = vmatpush1.msra.mxu0 0.0
        %731 = vmatprep.subr.mxu0 0.0
        %732 = vmatpush1.msra.mxu0 0.0
        %733 = vmatprep.subr.mxu0 0.0
        %734 = vmatpush1.msra.mxu0 0.0
        %735 = vmatprep.subr.mxu0 0.0
        %736 = vmatpush1.msra.mxu0 0.0
        %737 = vmatprep.subr.mxu0 0.0
        %738 = vmatpush1.msra.mxu0 0.0
        %739 = vmatprep.subr.mxu0 0.0
        %740 = vmatpush1.msra.mxu0 0.0
        %741 = vmatprep.mubr.f32.mxu0 0.0
        %742 = vmatmul.mubr.f32.gmra.mrb[0].mxu0 %v670
        %v743 = vpop.f32.mrb[0].mxu0
        %v744 = vadd.f32 0.0, %v743
        %v745 = vpop.f32.mrb[0].mxu0
        %v746 = vadd.f32 0.0, %v745
        %747 = vdwg.mxu0
        %v748 = vadd.f32 %v647, %v744
        %v749 = vadd.f32 %v649, %v746
        %v750 = vld [vmem:[%s2] sm:$0xff]
        %v751 = vld [vmem:[%s3] sm:$0xff]
        %v752 = vadd.f32 %v748, %v749
        %753 = vadd.xlane.f32.xlu0 %v752
        %v754 = vpop.xlane.xlu0 %753
        %v755 = vmul.f32 %v754, 0.00390625
        %v756 = vmul.f32 %v748, %v748
        %v757 = vmul.f32 %v749, %v749
        %v758 = vadd.f32 %v756, %v757
        %759 = vadd.xlane.f32.xlu0 %v758
        %v760 = vpop.xlane.xlu0 %759
        %v761 = vmul.f32 %v760, 0.00390625
        %v762 = vmul.f32 %v755, %v755
        %v763 = vsub.f32 %v761, %v762
        %v764 = vmax.f32 %v763, 0.0
        %v765 = vsub.f32 %v748, %v755
        %v766 = vsub.f32 %v749, %v755
        %v767 = vadd.f32 %v764, 1e-05
        %v768 = vrsqrt.pop %v767
        %v769 = vmul.f32 %v765, %v768
        %v770 = vmul.f32 %v766, %v768
        %772 = vset.pattern.permute.xlu0 0
        %773 = vperm.xlu0 %772, %v750
        %v774 = vpop.permute.xlu0 %773
        %v776 = vmul.f32 %v769, %v774
        %v777 = vmul.f32 %v770, %v774
        %779 = vset.pattern.permute.xlu0 0
        %780 = vperm.xlu0 %779, %v751
        %v781 = vpop.permute.xlu0 %780
        %v783 = vadd.f32 %v776, %v781
        %v784 = vadd.f32 %v777, %v781
        %v785 = vmax.f32 %v783, 0.0
        %v786 = vmax.f32 %v784, 0.0
        %788 = vrot.lane.b32.xlu0 %v785, 112
        %v789 = vpop.permute.xlu0 %788
        %v791 = vadd.f32 %v785, %v789
        %v793 = vsel %vm482, %v791, 0
        %795 = vmatprep.subr.mxu0 0.0
        %796 = vmatpush1.msra.mxu0 %v430
        %797 = vmatprep.subr.mxu0 0.0
        %798 = vmatpush1.msra.mxu0 %v431
        %799 = vmatprep.subr.mxu0 0.0
        %800 = vmatpush1.msra.mxu0 0.0
        %801 = vmatprep.subr.mxu0 0.0
        %802 = vmatpush1.msra.mxu0 0.0
        %803 = vmatprep.subr.mxu0 0.0
        %804 = vmatpush1.msra.mxu0 0.0
        %805 = vmatprep.subr.mxu0 0.0
        %806 = vmatpush1.msra.mxu0 0.0
        %807 = vmatprep.subr.mxu0 0.0
        %808 = vmatpush1.msra.mxu0 0.0
        %809 = vmatprep.subr.mxu0 0.0
        %810 = vmatpush1.msra.mxu0 0.0
        %811 = vmatprep.subr.mxu0 0.0
        %812 = vmatpush1.msra.mxu0 0.0
        %813 = vmatprep.subr.mxu0 0.0
        %814 = vmatpush1.msra.mxu0 0.0
        %815 = vmatprep.subr.mxu0 0.0
        %816 = vmatpush1.msra.mxu0 0.0
        %817 = vmatprep.subr.mxu0 0.0
        %818 = vmatpush1.msra.mxu0 0.0
        %819 = vmatprep.subr.mxu0 0.0
        %820 = vmatpush1.msra.mxu0 0.0
        %821 = vmatprep.subr.mxu0 0.0
        %822 = vmatpush1.msra.mxu0 0.0
        %823 = vmatprep.subr.mxu0 0.0
        %824 = vmatpush1.msra.mxu0 0.0
        %825 = vmatprep.subr.mxu0 0.0
        %826 = vmatpush1.msra.mxu0 0.0
        %827 = vmatprep.subr.mxu0 0.0
        %828 = vmatpush1.msra.mxu0 0.0
        %829 = vmatprep.subr.mxu0 0.0
        %830 = vmatpush1.msra.mxu0 0.0
        %831 = vmatprep.subr.mxu0 0.0
        %832 = vmatpush1.msra.mxu0 0.0
        %833 = vmatprep.subr.mxu0 0.0
        %834 = vmatpush1.msra.mxu0 0.0
        %835 = vmatprep.subr.mxu0 0.0
        %836 = vmatpush1.msra.mxu0 0.0
        %837 = vmatprep.subr.mxu0 0.0
        %838 = vmatpush1.msra.mxu0 0.0
        %839 = vmatprep.subr.mxu0 0.0
        %840 = vmatpush1.msra.mxu0 0.0
        %841 = vmatprep.subr.mxu0 0.0
        %842 = vmatpush1.msra.mxu0 0.0
        %843 = vmatprep.subr.mxu0 0.0
        %844 = vmatpush1.msra.mxu0 0.0
        %845 = vmatprep.subr.mxu0 0.0
        %846 = vmatpush1.msra.mxu0 0.0
        %847 = vmatprep.subr.mxu0 0.0
        %848 = vmatpush1.msra.mxu0 0.0
        %849 = vmatprep.subr.mxu0 0.0
        %850 = vmatpush1.msra.mxu0 0.0
        %851 = vmatprep.subr.mxu0 0.0
        %852 = vmatpush1.msra.mxu0 0.0
        %853 = vmatprep.subr.mxu0 0.0
        %854 = vmatpush1.msra.mxu0 0.0
        %855 = vmatprep.subr.mxu0 0.0
        %856 = vmatpush1.msra.mxu0 0.0
        %857 = vmatprep.subr.mxu0 0.0
        %858 = vmatpush1.msra.mxu0 0.0
        %859 = vmatprep.mubr.f32.mxu0 0.0
        %860 = vmatmul.mubr.f32.gmra.mrb[0].mxu0 %v793
        %v861 = vpop.f32.mrb[0].mxu0
        %v862 = vadd.f32 0.0, %v861
        %v863 = vpop.f32.mrb[0].mxu0
        %864 = vdwg.mxu0
        %865 = vrot.lane.b32.xlu0 %v791, 96
        %v866 = vpop.permute.xlu0 %865
        %v867 = vsel %vm482, %v866, 0
        %869 = vmatprep.subr.mxu0 0.0
        %870 = vmatpush1.msra.mxu0 %v430
        %871 = vmatprep.subr.mxu0 0.0
        %872 = vmatpush1.msra.mxu0 %v431
        %873 = vmatprep.subr.mxu0 0.0
        %874 = vmatpush1.msra.mxu0 0.0
        %875 = vmatprep.subr.mxu0 0.0
        %876 = vmatpush1.msra.mxu0 0.0
        %877 = vmatprep.subr.mxu0 0.0
        %878 = vmatpush1.msra.mxu0 0.0
        %879 = vmatprep.subr.mxu0 0.0
        %880 = vmatpush1.msra.mxu0 0.0
        %881 = vmatprep.subr.mxu0 0.0
        %882 = vmatpush1.msra.mxu0 0.0
        %883 = vmatprep.subr.mxu0 0.0
        %884 = vmatpush1.msra.mxu0 0.0
        %885 = vmatprep.subr.mxu0 0.0
        %886 = vmatpush1.msra.mxu0 0.0
        %887 = vmatprep.subr.mxu0 0.0
        %888 = vmatpush1.msra.mxu0 0.0
        %889 = vmatprep.subr.mxu0 0.0
        %890 = vmatpush1.msra.mxu0 0.0
        %891 = vmatprep.subr.mxu0 0.0
        %892 = vmatpush1.msra.mxu0 0.0
        %893 = vmatprep.subr.mxu0 0.0
        %894 = vmatpush1.msra.mxu0 0.0
        %895 = vmatprep.subr.mxu0 0.0
        %896 = vmatpush1.msra.mxu0 0.0
        %897 = vmatprep.subr.mxu0 0.0
        %898 = vmatpush1.msra.mxu0 0.0
        %899 = vmatprep.subr.mxu0 0.0
        %900 = vmatpush1.msra.mxu0 0.0
        %901 = vmatprep.subr.mxu0 0.0
        %902 = vmatpush1.msra.mxu0 0.0
        %903 = vmatprep.subr.mxu0 0.0
        %904 = vmatpush1.msra.mxu0 0.0
        %905 = vmatprep.subr.mxu0 0.0
        %906 = vmatpush1.msra.mxu0 0.0
        %907 = vmatprep.subr.mxu0 0.0
        %908 = vmatpush1.msra.mxu0 0.0
        %909 = vmatprep.subr.mxu0 0.0
        %910 = vmatpush1.msra.mxu0 0.0
        %911 = vmatprep.subr.mxu0 0.0
        %912 = vmatpush1.msra.mxu0 0.0
        %913 = vmatprep.subr.mxu0 0.0
        %914 = vmatpush1.msra.mxu0 0.0
        %915 = vmatprep.subr.mxu0 0.0
        %916 = vmatpush1.msra.mxu0 0.0
        %917 = vmatprep.subr.mxu0 0.0
        %918 = vmatpush1.msra.mxu0 0.0
        %919 = vmatprep.subr.mxu0 0.0
        %920 = vmatpush1.msra.mxu0 0.0
        %921 = vmatprep.subr.mxu0 0.0
        %922 = vmatpush1.msra.mxu0 0.0
        %923 = vmatprep.subr.mxu0 0.0
        %924 = vmatpush1.msra.mxu0 0.0
        %925 = vmatprep.subr.mxu0 0.0
        %926 = vmatpush1.msra.mxu0 0.0
        %927 = vmatprep.subr.mxu0 0.0
        %928 = vmatpush1.msra.mxu0 0.0
        %929 = vmatprep.subr.mxu0 0.0
        %930 = vmatpush1.msra.mxu0 0.0
        %931 = vmatprep.subr.mxu0 0.0
        %932 = vmatpush1.msra.mxu0 0.0
        %933 = vmatprep.mubr.f32.mxu0 0.0
        %934 = vmatmul.mubr.f32.gmra.mrb[0].mxu0 %v867
        %v935 = vpop.f32.mrb[0].mxu0
        %v936 = vadd.f32 0.0, %v935
        %v937 = vpop.f32.mrb[0].mxu0
        %938 = vdwg.mxu0
        %939 = vrot.lane.b32.xlu0 %v791, 64
        %v940 = vpop.permute.xlu0 %939
        %v941 = vsel %vm482, %v940, 0
        %943 = vmatprep.subr.mxu0 0.0
        %944 = vmatpush1.msra.mxu0 %v430
        %945 = vmatprep.subr.mxu0 0.0
        %946 = vmatpush1.msra.mxu0 %v431
        %947 = vmatprep.subr.mxu0 0.0
        %948 = vmatpush1.msra.mxu0 0.0
        %949 = vmatprep.subr.mxu0 0.0
        %950 = vmatpush1.msra.mxu0 0.0
        %951 = vmatprep.subr.mxu0 0.0
        %952 = vmatpush1.msra.mxu0 0.0
        %953 = vmatprep.subr.mxu0 0.0
        %954 = vmatpush1.msra.mxu0 0.0
        %955 = vmatprep.subr.mxu0 0.0
        %956 = vmatpush1.msra.mxu0 0.0
        %957 = vmatprep.subr.mxu0 0.0
        %958 = vmatpush1.msra.mxu0 0.0
        %959 = vmatprep.subr.mxu0 0.0
        %960 = vmatpush1.msra.mxu0 0.0
        %961 = vmatprep.subr.mxu0 0.0
        %962 = vmatpush1.msra.mxu0 0.0
        %963 = vmatprep.subr.mxu0 0.0
        %964 = vmatpush1.msra.mxu0 0.0
        %965 = vmatprep.subr.mxu0 0.0
        %966 = vmatpush1.msra.mxu0 0.0
        %967 = vmatprep.subr.mxu0 0.0
        %968 = vmatpush1.msra.mxu0 0.0
        %969 = vmatprep.subr.mxu0 0.0
        %970 = vmatpush1.msra.mxu0 0.0
        %971 = vmatprep.subr.mxu0 0.0
        %972 = vmatpush1.msra.mxu0 0.0
        %973 = vmatprep.subr.mxu0 0.0
        %974 = vmatpush1.msra.mxu0 0.0
        %975 = vmatprep.subr.mxu0 0.0
        %976 = vmatpush1.msra.mxu0 0.0
        %977 = vmatprep.subr.mxu0 0.0
        %978 = vmatpush1.msra.mxu0 0.0
        %979 = vmatprep.subr.mxu0 0.0
        %980 = vmatpush1.msra.mxu0 0.0
        %981 = vmatprep.subr.mxu0 0.0
        %982 = vmatpush1.msra.mxu0 0.0
        %983 = vmatprep.subr.mxu0 0.0
        %984 = vmatpush1.msra.mxu0 0.0
        %985 = vmatprep.subr.mxu0 0.0
        %986 = vmatpush1.msra.mxu0 0.0
        %987 = vmatprep.subr.mxu0 0.0
        %988 = vmatpush1.msra.mxu0 0.0
        %989 = vmatprep.subr.mxu0 0.0
        %990 = vmatpush1.msra.mxu0 0.0
        %991 = vmatprep.subr.mxu0 0.0
        %992 = vmatpush1.msra.mxu0 0.0
        %993 = vmatprep.subr.mxu0 0.0
        %994 = vmatpush1.msra.mxu0 0.0
        %995 = vmatprep.subr.mxu0 0.0
        %996 = vmatpush1.msra.mxu0 0.0
        %997 = vmatprep.subr.mxu0 0.0
        %998 = vmatpush1.msra.mxu0 0.0
        %999 = vmatprep.subr.mxu0 0.0
        %1000 = vmatpush1.msra.mxu0 0.0
        %1001 = vmatprep.subr.mxu0 0.0
        %1002 = vmatpush1.msra.mxu0 0.0
        %1003 = vmatprep.subr.mxu0 0.0
        %1004 = vmatpush1.msra.mxu0 0.0
        %1005 = vmatprep.subr.mxu0 0.0
        %1006 = vmatpush1.msra.mxu0 0.0
        %1007 = vmatprep.mubr.f32.mxu0 0.0
        %1008 = vmatmul.mubr.f32.gmra.mrb[0].mxu0 %v941
        %v1009 = vpop.f32.mrb[0].mxu0
        %v1010 = vadd.f32 0.0, %v1009
        %v1011 = vpop.f32.mrb[0].mxu0
        %1012 = vdwg.mxu0
        %1013 = vrot.lane.b32.xlu0 %v791, 32
        %v1014 = vpop.permute.xlu0 %1013
        %v1015 = vsel %vm482, %v1014, 0
        %1017 = vmatprep.subr.mxu0 0.0
        %1018 = vmatpush1.msra.mxu0 %v430
        %1019 = vmatprep.subr.mxu0 0.0
        %1020 = vmatpush1.msra.mxu0 %v431
        %1021 = vmatprep.subr.mxu0 0.0
        %1022 = vmatpush1.msra.mxu0 0.0
        %1023 = vmatprep.subr.mxu0 0.0
        %1024 = vmatpush1.msra.mxu0 0.0
        %1025 = vmatprep.subr.mxu0 0.0
        %1026 = vmatpush1.msra.mxu0 0.0
        %1027 = vmatprep.subr.mxu0 0.0
        %1028 = vmatpush1.msra.mxu0 0.0
        %1029 = vmatprep.subr.mxu0 0.0
        %1030 = vmatpush1.msra.mxu0 0.0
        %1031 = vmatprep.subr.mxu0 0.0
        %1032 = vmatpush1.msra.mxu0 0.0
        %1033 = vmatprep.subr.mxu0 0.0
        %1034 = vmatpush1.msra.mxu0 0.0
        %1035 = vmatprep.subr.mxu0 0.0
        %1036 = vmatpush1.msra.mxu0 0.0
        %1037 = vmatprep.subr.mxu0 0.0
        %1038 = vmatpush1.msra.mxu0 0.0
        %1039 = vmatprep.subr.mxu0 0.0
        %1040 = vmatpush1.msra.mxu0 0.0
        %1041 = vmatprep.subr.mxu0 0.0
        %1042 = vmatpush1.msra.mxu0 0.0
        %1043 = vmatprep.subr.mxu0 0.0
        %1044 = vmatpush1.msra.mxu0 0.0
        %1045 = vmatprep.subr.mxu0 0.0
        %1046 = vmatpush1.msra.mxu0 0.0
        %1047 = vmatprep.subr.mxu0 0.0
        %1048 = vmatpush1.msra.mxu0 0.0
        %1049 = vmatprep.subr.mxu0 0.0
        %1050 = vmatpush1.msra.mxu0 0.0
        %1051 = vmatprep.subr.mxu0 0.0
        %1052 = vmatpush1.msra.mxu0 0.0
        %1053 = vmatprep.subr.mxu0 0.0
        %1054 = vmatpush1.msra.mxu0 0.0
        %1055 = vmatprep.subr.mxu0 0.0
        %1056 = vmatpush1.msra.mxu0 0.0
        %1057 = vmatprep.subr.mxu0 0.0
        %1058 = vmatpush1.msra.mxu0 0.0
        %1059 = vmatprep.subr.mxu0 0.0
        %1060 = vmatpush1.msra.mxu0 0.0
        %1061 = vmatprep.subr.mxu0 0.0
        %1062 = vmatpush1.msra.mxu0 0.0
        %1063 = vmatprep.subr.mxu0 0.0
        %1064 = vmatpush1.msra.mxu0 0.0
        %1065 = vmatprep.subr.mxu0 0.0
        %1066 = vmatpush1.msra.mxu0 0.0
        %1067 = vmatprep.subr.mxu0 0.0
        %1068 = vmatpush1.msra.mxu0 0.0
        %1069 = vmatprep.subr.mxu0 0.0
        %1070 = vmatpush1.msra.mxu0 0.0
        %1071 = vmatprep.subr.mxu0 0.0
        %1072 = vmatpush1.msra.mxu0 0.0
        %1073 = vmatprep.subr.mxu0 0.0
        %1074 = vmatpush1.msra.mxu0 0.0
        %1075 = vmatprep.subr.mxu0 0.0
        %1076 = vmatpush1.msra.mxu0 0.0
        %1077 = vmatprep.subr.mxu0 0.0
        %1078 = vmatpush1.msra.mxu0 0.0
        %1079 = vmatprep.subr.mxu0 0.0
        %1080 = vmatpush1.msra.mxu0 0.0
        %1081 = vmatprep.mubr.f32.mxu0 0.0
        %1082 = vmatmul.mubr.f32.gmra.mrb[0].mxu0 %v1015
        %v1083 = vpop.f32.mrb[0].mxu0
        %v1084 = vadd.f32 0.0, %v1083
        %v1085 = vpop.f32.mrb[0].mxu0
        %1086 = vdwg.mxu0
        %1088 = vrot.lane.b32.xlu0 %v786, 112
        %v1089 = vpop.permute.xlu0 %1088
        %v1091 = vadd.f32 %v786, %v1089
        %v1093 = vsel %vm482, %v1091, 0
        %1095 = vmatprep.subr.mxu0 0.0
        %1096 = vmatpush1.msra.mxu0 %v430
        %1097 = vmatprep.subr.mxu0 0.0
        %1098 = vmatpush1.msra.mxu0 %v431
        %1099 = vmatprep.subr.mxu0 0.0
        %1100 = vmatpush1.msra.mxu0 0.0
        %1101 = vmatprep.subr.mxu0 0.0
        %1102 = vmatpush1.msra.mxu0 0.0
        %1103 = vmatprep.subr.mxu0 0.0
        %1104 = vmatpush1.msra.mxu0 0.0
        %1105 = vmatprep.subr.mxu0 0.0
        %1106 = vmatpush1.msra.mxu0 0.0
        %1107 = vmatprep.subr.mxu0 0.0
        %1108 = vmatpush1.msra.mxu0 0.0
        %1109 = vmatprep.subr.mxu0 0.0
        %1110 = vmatpush1.msra.mxu0 0.0
        %1111 = vmatprep.subr.mxu0 0.0
        %1112 = vmatpush1.msra.mxu0 0.0
        %1113 = vmatprep.subr.mxu0 0.0
        %1114 = vmatpush1.msra.mxu0 0.0
        %1115 = vmatprep.subr.mxu0 0.0
        %1116 = vmatpush1.msra.mxu0 0.0
        %1117 = vmatprep.subr.mxu0 0.0
        %1118 = vmatpush1.msra.mxu0 0.0
        %1119 = vmatprep.subr.mxu0 0.0
        %1120 = vmatpush1.msra.mxu0 0.0
        %1121 = vmatprep.subr.mxu0 0.0
        %1122 = vmatpush1.msra.mxu0 0.0
        %1123 = vmatprep.subr.mxu0 0.0
        %1124 = vmatpush1.msra.mxu0 0.0
        %1125 = vmatprep.subr.mxu0 0.0
        %1126 = vmatpush1.msra.mxu0 0.0
        %1127 = vmatprep.subr.mxu0 0.0
        %1128 = vmatpush1.msra.mxu0 0.0
        %1129 = vmatprep.subr.mxu0 0.0
        %1130 = vmatpush1.msra.mxu0 0.0
        %1131 = vmatprep.subr.mxu0 0.0
        %1132 = vmatpush1.msra.mxu0 0.0
        %1133 = vmatprep.subr.mxu0 0.0
        %1134 = vmatpush1.msra.mxu0 0.0
        %1135 = vmatprep.subr.mxu0 0.0
        %1136 = vmatpush1.msra.mxu0 0.0
        %1137 = vmatprep.subr.mxu0 0.0
        %1138 = vmatpush1.msra.mxu0 0.0
        %1139 = vmatprep.subr.mxu0 0.0
        %1140 = vmatpush1.msra.mxu0 0.0
        %1141 = vmatprep.subr.mxu0 0.0
        %1142 = vmatpush1.msra.mxu0 0.0
        %1143 = vmatprep.subr.mxu0 0.0
        %1144 = vmatpush1.msra.mxu0 0.0
        %1145 = vmatprep.subr.mxu0 0.0
        %1146 = vmatpush1.msra.mxu0 0.0
        %1147 = vmatprep.subr.mxu0 0.0
        %1148 = vmatpush1.msra.mxu0 0.0
        %1149 = vmatprep.subr.mxu0 0.0
        %1150 = vmatpush1.msra.mxu0 0.0
        %1151 = vmatprep.subr.mxu0 0.0
        %1152 = vmatpush1.msra.mxu0 0.0
        %1153 = vmatprep.subr.mxu0 0.0
        %1154 = vmatpush1.msra.mxu0 0.0
        %1155 = vmatprep.subr.mxu0 0.0
        %1156 = vmatpush1.msra.mxu0 0.0
        %1157 = vmatprep.subr.mxu0 0.0
        %1158 = vmatpush1.msra.mxu0 0.0
        %1159 = vmatprep.mubr.f32.mxu0 0.0
        %1160 = vmatmul.mubr.f32.gmra.mrb[0].mxu0 %v1093
        %v1161 = vpop.f32.mrb[0].mxu0
        %v1162 = vadd.f32 0.0, %v1161
        %v1163 = vpop.f32.mrb[0].mxu0
        %1164 = vdwg.mxu0
        %1165 = vrot.lane.b32.xlu0 %v1091, 96
        %v1166 = vpop.permute.xlu0 %1165
        %v1167 = vsel %vm482, %v1166, 0
        %1169 = vmatprep.subr.mxu0 0.0
        %1170 = vmatpush1.msra.mxu0 %v430
        %1171 = vmatprep.subr.mxu0 0.0
        %1172 = vmatpush1.msra.mxu0 %v431
        %1173 = vmatprep.subr.mxu0 0.0
        %1174 = vmatpush1.msra.mxu0 0.0
        %1175 = vmatprep.subr.mxu0 0.0
        %1176 = vmatpush1.msra.mxu0 0.0
        %1177 = vmatprep.subr.mxu0 0.0
        %1178 = vmatpush1.msra.mxu0 0.0
        %1179 = vmatprep.subr.mxu0 0.0
        %1180 = vmatpush1.msra.mxu0 0.0
        %1181 = vmatprep.subr.mxu0 0.0
        %1182 = vmatpush1.msra.mxu0 0.0
        %1183 = vmatprep.subr.mxu0 0.0
        %1184 = vmatpush1.msra.mxu0 0.0
        %1185 = vmatprep.subr.mxu0 0.0
        %1186 = vmatpush1.msra.mxu0 0.0
        %1187 = vmatprep.subr.mxu0 0.0
        %1188 = vmatpush1.msra.mxu0 0.0
        %1189 = vmatprep.subr.mxu0 0.0
        %1190 = vmatpush1.msra.mxu0 0.0
        %1191 = vmatprep.subr.mxu0 0.0
        %1192 = vmatpush1.msra.mxu0 0.0
        %1193 = vmatprep.subr.mxu0 0.0
        %1194 = vmatpush1.msra.mxu0 0.0
        %1195 = vmatprep.subr.mxu0 0.0
        %1196 = vmatpush1.msra.mxu0 0.0
        %1197 = vmatprep.subr.mxu0 0.0
        %1198 = vmatpush1.msra.mxu0 0.0
        %1199 = vmatprep.subr.mxu0 0.0
        %1200 = vmatpush1.msra.mxu0 0.0
        %1201 = vmatprep.subr.mxu0 0.0
        %1202 = vmatpush1.msra.mxu0 0.0
        %1203 = vmatprep.subr.mxu0 0.0
        %1204 = vmatpush1.msra.mxu0 0.0
        %1205 = vmatprep.subr.mxu0 0.0
        %1206 = vmatpush1.msra.mxu0 0.0
        %1207 = vmatprep.subr.mxu0 0.0
        %1208 = vmatpush1.msra.mxu0 0.0
        %1209 = vmatprep.subr.mxu0 0.0
        %1210 = vmatpush1.msra.mxu0 0.0
        %1211 = vmatprep.subr.mxu0 0.0
        %1212 = vmatpush1.msra.mxu0 0.0
        %1213 = vmatprep.subr.mxu0 0.0
        %1214 = vmatpush1.msra.mxu0 0.0
        %1215 = vmatprep.subr.mxu0 0.0
        %1216 = vmatpush1.msra.mxu0 0.0
        %1217 = vmatprep.subr.mxu0 0.0
        %1218 = vmatpush1.msra.mxu0 0.0
        %1219 = vmatprep.subr.mxu0 0.0
        %1220 = vmatpush1.msra.mxu0 0.0
        %1221 = vmatprep.subr.mxu0 0.0
        %1222 = vmatpush1.msra.mxu0 0.0
        %1223 = vmatprep.subr.mxu0 0.0
        %1224 = vmatpush1.msra.mxu0 0.0
        %1225 = vmatprep.subr.mxu0 0.0
        %1226 = vmatpush1.msra.mxu0 0.0
        %1227 = vmatprep.subr.mxu0 0.0
        %1228 = vmatpush1.msra.mxu0 0.0
        %1229 = vmatprep.subr.mxu0 0.0
        %1230 = vmatpush1.msra.mxu0 0.0
        %1231 = vmatprep.subr.mxu0 0.0
        %1232 = vmatpush1.msra.mxu0 0.0
        %1233 = vmatprep.mubr.f32.mxu0 0.0
        %1234 = vmatmul.mubr.f32.gmra.mrb[0].mxu0 %v1167
        %v1235 = vpop.f32.mrb[0].mxu0
        %v1236 = vadd.f32 0.0, %v1235
        %v1237 = vpop.f32.mrb[0].mxu0
        %1238 = vdwg.mxu0
        %1239 = vrot.lane.b32.xlu0 %v1091, 64
        %v1240 = vpop.permute.xlu0 %1239
        %v1241 = vsel %vm482, %v1240, 0
        %1243 = vmatprep.subr.mxu0 0.0
        %1244 = vmatpush1.msra.mxu0 %v430
        %1245 = vmatprep.subr.mxu0 0.0
        %1246 = vmatpush1.msra.mxu0 %v431
        %1247 = vmatprep.subr.mxu0 0.0
        %1248 = vmatpush1.msra.mxu0 0.0
        %1249 = vmatprep.subr.mxu0 0.0
        %1250 = vmatpush1.msra.mxu0 0.0
        %1251 = vmatprep.subr.mxu0 0.0
        %1252 = vmatpush1.msra.mxu0 0.0
        %1253 = vmatprep.subr.mxu0 0.0
        %1254 = vmatpush1.msra.mxu0 0.0
        %1255 = vmatprep.subr.mxu0 0.0
        %1256 = vmatpush1.msra.mxu0 0.0
        %1257 = vmatprep.subr.mxu0 0.0
        %1258 = vmatpush1.msra.mxu0 0.0
        %1259 = vmatprep.subr.mxu0 0.0
        %1260 = vmatpush1.msra.mxu0 0.0
        %1261 = vmatprep.subr.mxu0 0.0
        %1262 = vmatpush1.msra.mxu0 0.0
        %1263 = vmatprep.subr.mxu0 0.0
        %1264 = vmatpush1.msra.mxu0 0.0
        %1265 = vmatprep.subr.mxu0 0.0
        %1266 = vmatpush1.msra.mxu0 0.0
        %1267 = vmatprep.subr.mxu0 0.0
        %1268 = vmatpush1.msra.mxu0 0.0
        %1269 = vmatprep.subr.mxu0 0.0
        %1270 = vmatpush1.msra.mxu0 0.0
        %1271 = vmatprep.subr.mxu0 0.0
        %1272 = vmatpush1.msra.mxu0 0.0
        %1273 = vmatprep.subr.mxu0 0.0
        %1274 = vmatpush1.msra.mxu0 0.0
        %1275 = vmatprep.subr.mxu0 0.0
        %1276 = vmatpush1.msra.mxu0 0.0
        %1277 = vmatprep.subr.mxu0 0.0
        %1278 = vmatpush1.msra.mxu0 0.0
        %1279 = vmatprep.subr.mxu0 0.0
        %1280 = vmatpush1.msra.mxu0 0.0
        %1281 = vmatprep.subr.mxu0 0.0
        %1282 = vmatpush1.msra.mxu0 0.0
        %1283 = vmatprep.subr.mxu0 0.0
        %1284 = vmatpush1.msra.mxu0 0.0
        %1285 = vmatprep.subr.mxu0 0.0
        %1286 = vmatpush1.msra.mxu0 0.0
        %1287 = vmatprep.subr.mxu0 0.0
        %1288 = vmatpush1.msra.mxu0 0.0
        %1289 = vmatprep.subr.mxu0 0.0
        %1290 = vmatpush1.msra.mxu0 0.0
        %1291 = vmatprep.subr.mxu0 0.0
        %1292 = vmatpush1.msra.mxu0 0.0
        %1293 = vmatprep.subr.mxu0 0.0
        %1294 = vmatpush1.msra.mxu0 0.0
        %1295 = vmatprep.subr.mxu0 0.0
        %1296 = vmatpush1.msra.mxu0 0.0
        %1297 = vmatprep.subr.mxu0 0.0
        %1298 = vmatpush1.msra.mxu0 0.0
        %1299 = vmatprep.subr.mxu0 0.0
        %1300 = vmatpush1.msra.mxu0 0.0
        %1301 = vmatprep.subr.mxu0 0.0
        %1302 = vmatpush1.msra.mxu0 0.0
        %1303 = vmatprep.subr.mxu0 0.0
        %1304 = vmatpush1.msra.mxu0 0.0
        %1305 = vmatprep.subr.mxu0 0.0
        %1306 = vmatpush1.msra.mxu0 0.0
        %1307 = vmatprep.mubr.f32.mxu0 0.0
        %1308 = vmatmul.mubr.f32.gmra.mrb[0].mxu0 %v1241
        %v1309 = vpop.f32.mrb[0].mxu0
        %v1310 = vadd.f32 0.0, %v1309
        %v1311 = vpop.f32.mrb[0].mxu0
        %1312 = vdwg.mxu0
        %1313 = vrot.lane.b32.xlu0 %v1091, 32
        %v1314 = vpop.permute.xlu0 %1313
        %v1315 = vsel %vm482, %v1314, 0
        %1317 = vmatprep.subr.mxu0 0.0
        %1318 = vmatpush1.msra.mxu0 %v430
        %1319 = vmatprep.subr.mxu0 0.0
        %1320 = vmatpush1.msra.mxu0 %v431
        %1321 = vmatprep.subr.mxu0 0.0
        %1322 = vmatpush1.msra.mxu0 0.0
        %1323 = vmatprep.subr.mxu0 0.0
        %1324 = vmatpush1.msra.mxu0 0.0
        %1325 = vmatprep.subr.mxu0 0.0
        %1326 = vmatpush1.msra.mxu0 0.0
        %1327 = vmatprep.subr.mxu0 0.0
        %1328 = vmatpush1.msra.mxu0 0.0
        %1329 = vmatprep.subr.mxu0 0.0
        %1330 = vmatpush1.msra.mxu0 0.0
        %1331 = vmatprep.subr.mxu0 0.0
        %1332 = vmatpush1.msra.mxu0 0.0
        %1333 = vmatprep.subr.mxu0 0.0
        %1334 = vmatpush1.msra.mxu0 0.0
        %1335 = vmatprep.subr.mxu0 0.0
        %1336 = vmatpush1.msra.mxu0 0.0
        %1337 = vmatprep.subr.mxu0 0.0
        %1338 = vmatpush1.msra.mxu0 0.0
        %1339 = vmatprep.subr.mxu0 0.0
        %1340 = vmatpush1.msra.mxu0 0.0
        %1341 = vmatprep.subr.mxu0 0.0
        %1342 = vmatpush1.msra.mxu0 0.0
        %1343 = vmatprep.subr.mxu0 0.0
        %1344 = vmatpush1.msra.mxu0 0.0
        %1345 = vmatprep.subr.mxu0 0.0
        %1346 = vmatpush1.msra.mxu0 0.0
        %1347 = vmatprep.subr.mxu0 0.0
        %1348 = vmatpush1.msra.mxu0 0.0
        %1349 = vmatprep.subr.mxu0 0.0
        %1350 = vmatpush1.msra.mxu0 0.0
        %1351 = vmatprep.subr.mxu0 0.0
        %1352 = vmatpush1.msra.mxu0 0.0
        %1353 = vmatprep.subr.mxu0 0.0
        %1354 = vmatpush1.msra.mxu0 0.0
        %1355 = vmatprep.subr.mxu0 0.0
        %1356 = vmatpush1.msra.mxu0 0.0
        %1357 = vmatprep.subr.mxu0 0.0
        %1358 = vmatpush1.msra.mxu0 0.0
        %1359 = vmatprep.subr.mxu0 0.0
        %1360 = vmatpush1.msra.mxu0 0.0
        %1361 = vmatprep.subr.mxu0 0.0
        %1362 = vmatpush1.msra.mxu0 0.0
        %1363 = vmatprep.subr.mxu0 0.0
        %1364 = vmatpush1.msra.mxu0 0.0
        %1365 = vmatprep.subr.mxu0 0.0
        %1366 = vmatpush1.msra.mxu0 0.0
        %1367 = vmatprep.subr.mxu0 0.0
        %1368 = vmatpush1.msra.mxu0 0.0
        %1369 = vmatprep.subr.mxu0 0.0
        %1370 = vmatpush1.msra.mxu0 0.0
        %1371 = vmatprep.subr.mxu0 0.0
        %1372 = vmatpush1.msra.mxu0 0.0
        %1373 = vmatprep.subr.mxu0 0.0
        %1374 = vmatpush1.msra.mxu0 0.0
        %1375 = vmatprep.subr.mxu0 0.0
        %1376 = vmatpush1.msra.mxu0 0.0
        %1377 = vmatprep.subr.mxu0 0.0
        %1378 = vmatpush1.msra.mxu0 0.0
        %1379 = vmatprep.subr.mxu0 0.0
        %1380 = vmatpush1.msra.mxu0 0.0
        %1381 = vmatprep.mubr.f32.mxu0 0.0
        %1382 = vmatmul.mubr.f32.gmra.mrb[0].mxu0 %v1315
        %v1383 = vpop.f32.mrb[0].mxu0
        %v1384 = vadd.f32 0.0, %v1383
        %v1385 = vpop.f32.mrb[0].mxu0
        %1386 = vdwg.mxu0
        %1388 = vrot.lane.b32.xlu0 %v936, 8
        %v1389 = vpop.permute.xlu0 %1388
        %1392 = vrot.lane.b32.xlu0 %v1010, 16
        %v1393 = vpop.permute.xlu0 %1392
        %1396 = vrot.lane.b32.xlu0 %v1084, 24
        %v1397 = vpop.permute.xlu0 %1396
        %1400 = vrot.lane.b32.xlu0 %v1162, 32
        %v1401 = vpop.permute.xlu0 %1400
        %1404 = vrot.lane.b32.xlu0 %v1236, 40
        %v1405 = vpop.permute.xlu0 %1404
        %1408 = vrot.lane.b32.xlu0 %v1310, 48
        %v1409 = vpop.permute.xlu0 %1408
        %1412 = vrot.lane.b32.xlu0 %v1384, 56
        %v1413 = vpop.permute.xlu0 %1412
        %vm1415 = vcmask 64512
        %v1416 = vsel %vm1415, %v862, %v1389
        %v1417 = vsel %vm482, %v1416, %v1393
        %vm1418 = vcmask 195584
        %v1419 = vsel %vm1418, %v1417, %v1397
        %vm1420 = vcmask 261120
        %v1421 = vsel %vm1420, %v1419, %v1401
        %vm1422 = vcmask 326656
        %v1423 = vsel %vm1422, %v1421, %v1405
        %vm1424 = vcmask 392192
        %v1425 = vsel %vm1424, %v1423, %v1409
        %vm1426 = vcmask 457728
        %v1427 = vsel %vm1426, %v1425, %v1413
        %1429 = vrot.lane.b32.xlu0 %v1427, 1
        %v1430 = vpop.permute.xlu0 %1429
        %v1432 = vsel %vm439, 0.0, %v1430
        %v1433 = vsel %vm428, 1, 0
        %vm1434 = vcmp.eq.s32.totalorder %v1433, 1
        %v1435 = vsel %vm1434, %v1432, 0.0
        %1436 = vrot.lane.b32.xlu0 %v1427, 127
        %v1437 = vpop.permute.xlu0 %1436
        %vm1439 = vcmask 515072
        %v1440 = vsel %vm1439, %v1437, 0.0
        %v1441 = vsel %vm429, 1, 0
        %vm1442 = vcmp.eq.s32.totalorder %v1441, 1
        %v1443 = vsel %vm1442, %v1440, 0.0
        %1446 = vrot.lane.b32.xlu0 %v1435, 8
        %v1447 = vpop.permute.xlu0 %1446
        %1448 = vrot.lane.b32.xlu0 %v1427, 8
        %v1449 = vpop.permute.xlu0 %1448
        %1450 = vrot.lane.b32.xlu0 %v1443, 8
        %v1451 = vpop.permute.xlu0 %1450
        %v1455 = vsel %vm1415, 0.0, %v1447
        %v1456 = vsel %vm1415, 0.0, %v1449
        %v1457 = vsel %vm1415, 0.0, %v1451
        %v1458 = vld [vmem:[%s4] sm:$0xff]
        %s1459 = scalar_lea.vmem %s4, 8
        %v1460 = vld [vmem:[%s1459] sm:$0xff]
        %v1462 = vsel %vm1418, %v1460, 0
        %1464 = vmatprep.subr.mxu0 0.0
        %1465 = vmatpush1.msra.mxu0 %v1435
        %1466 = vmatprep.subr.mxu0 0.0
        %1467 = vmatpush1.msra.mxu0 %v1427
        %1468 = vmatprep.subr.mxu0 0.0
        %1469 = vmatpush1.msra.mxu0 %v1443
        %1470 = vmatprep.subr.mxu0 0.0
        %1471 = vmatpush1.msra.mxu0 0.0
        %1472 = vmatprep.subr.mxu0 0.0
        %1473 = vmatpush1.msra.mxu0 0.0
        %1474 = vmatprep.subr.mxu0 0.0
        %1475 = vmatpush1.msra.mxu0 0.0
        %1476 = vmatprep.subr.mxu0 0.0
        %1477 = vmatpush1.msra.mxu0 0.0
        %1478 = vmatprep.subr.mxu0 0.0
        %1479 = vmatpush1.msra.mxu0 0.0
        %1480 = vmatprep.subr.mxu0 0.0
        %1481 = vmatpush1.msra.mxu0 0.0
        %1482 = vmatprep.subr.mxu0 0.0
        %1483 = vmatpush1.msra.mxu0 0.0
        %1484 = vmatprep.subr.mxu0 0.0
        %1485 = vmatpush1.msra.mxu0 0.0
        %1486 = vmatprep.subr.mxu0 0.0
        %1487 = vmatpush1.msra.mxu0 0.0
        %1488 = vmatprep.subr.mxu0 0.0
        %1489 = vmatpush1.msra.mxu0 0.0
        %1490 = vmatprep.subr.mxu0 0.0
        %1491 = vmatpush1.msra.mxu0 0.0
        %1492 = vmatprep.subr.mxu0 0.0
        %1493 = vmatpush1.msra.mxu0 0.0
        %1494 = vmatprep.subr.mxu0 0.0
        %1495 = vmatpush1.msra.mxu0 0.0
        %1496 = vmatprep.subr.mxu0 0.0
        %1497 = vmatpush1.msra.mxu0 0.0
        %1498 = vmatprep.subr.mxu0 0.0
        %1499 = vmatpush1.msra.mxu0 0.0
        %1500 = vmatprep.subr.mxu0 0.0
        %1501 = vmatpush1.msra.mxu0 0.0
        %1502 = vmatprep.subr.mxu0 0.0
        %1503 = vmatpush1.msra.mxu0 0.0
        %1504 = vmatprep.subr.mxu0 0.0
        %1505 = vmatpush1.msra.mxu0 0.0
        %1506 = vmatprep.subr.mxu0 0.0
        %1507 = vmatpush1.msra.mxu0 0.0
        %1508 = vmatprep.subr.mxu0 0.0
        %1509 = vmatpush1.msra.mxu0 0.0
        %1510 = vmatprep.subr.mxu0 0.0
        %1511 = vmatpush1.msra.mxu0 0.0
        %1512 = vmatprep.subr.mxu0 0.0
        %1513 = vmatpush1.msra.mxu0 0.0
        %1514 = vmatprep.subr.mxu0 0.0
        %1515 = vmatpush1.msra.mxu0 0.0
        %1516 = vmatprep.subr.mxu0 0.0
        %1517 = vmatpush1.msra.mxu0 0.0
        %1518 = vmatprep.subr.mxu0 0.0
        %1519 = vmatpush1.msra.mxu0 0.0
        %1520 = vmatprep.subr.mxu0 0.0
        %1521 = vmatpush1.msra.mxu0 0.0
        %1522 = vmatprep.subr.mxu0 0.0
        %1523 = vmatpush1.msra.mxu0 0.0
        %1524 = vmatprep.subr.mxu0 0.0
        %1525 = vmatpush1.msra.mxu0 0.0
        %1526 = vmatprep.subr.mxu0 0.0
        %1527 = vmatpush1.msra.mxu0 0.0
        %1528 = vmatprep.mubr.f32.mxu0 0.0
        %1529 = vmatmul.mubr.f32.gmra.mrb[0].mxu0 %v1462
        %v1530 = vpop.f32.mrb[0].mxu0
        %v1531 = vadd.f32 0.0, %v1530
        %v1532 = vpop.f32.mrb[0].mxu0
        %1533 = vdwg.mxu0
        %v1535 = vsel %vm1418, %v1458, 0
        %1537 = vmatprep.subr.mxu0 0.0
        %1538 = vmatpush1.msra.mxu0 %v1455
        %1539 = vmatprep.subr.mxu0 0.0
        %1540 = vmatpush1.msra.mxu0 %v1456
        %1541 = vmatprep.subr.mxu0 0.0
        %1542 = vmatpush1.msra.mxu0 %v1457
        %1543 = vmatprep.subr.mxu0 0.0
        %1544 = vmatpush1.msra.mxu0 0.0
        %1545 = vmatprep.subr.mxu0 0.0
        %1546 = vmatpush1.msra.mxu0 0.0
        %1547 = vmatprep.subr.mxu0 0.0
        %1548 = vmatpush1.msra.mxu0 0.0
        %1549 = vmatprep.subr.mxu0 0.0
        %1550 = vmatpush1.msra.mxu0 0.0
        %1551 = vmatprep.subr.mxu0 0.0
        %1552 = vmatpush1.msra.mxu0 0.0
        %1553 = vmatprep.subr.mxu0 0.0
        %1554 = vmatpush1.msra.mxu0 0.0
        %1555 = vmatprep.subr.mxu0 0.0
        %1556 = vmatpush1.msra.mxu0 0.0
        %1557 = vmatprep.subr.mxu0 0.0
        %1558 = vmatpush1.msra.mxu0 0.0
        %1559 = vmatprep.subr.mxu0 0.0
        %1560 = vmatpush1.msra.mxu0 0.0
        %1561 = vmatprep.subr.mxu0 0.0
        %1562 = vmatpush1.msra.mxu0 0.0
        %1563 = vmatprep.subr.mxu0 0.0
        %1564 = vmatpush1.msra.mxu0 0.0
        %1565 = vmatprep.subr.mxu0 0.0
        %1566 = vmatpush1.msra.mxu0 0.0
        %1567 = vmatprep.subr.mxu0 0.0
        %1568 = vmatpush1.msra.mxu0 0.0
        %1569 = vmatprep.subr.mxu0 0.0
        %1570 = vmatpush1.msra.mxu0 0.0
        %1571 = vmatprep.subr.mxu0 0.0
        %1572 = vmatpush1.msra.mxu0 0.0
        %1573 = vmatprep.subr.mxu0 0.0
        %1574 = vmatpush1.msra.mxu0 0.0
        %1575 = vmatprep.subr.mxu0 0.0
        %1576 = vmatpush1.msra.mxu0 0.0
        %1577 = vmatprep.subr.mxu0 0.0
        %1578 = vmatpush1.msra.mxu0 0.0
        %1579 = vmatprep.subr.mxu0 0.0
        %1580 = vmatpush1.msra.mxu0 0.0
        %1581 = vmatprep.subr.mxu0 0.0
        %1582 = vmatpush1.msra.mxu0 0.0
        %1583 = vmatprep.subr.mxu0 0.0
        %1584 = vmatpush1.msra.mxu0 0.0
        %1585 = vmatprep.subr.mxu0 0.0
        %1586 = vmatpush1.msra.mxu0 0.0
        %1587 = vmatprep.subr.mxu0 0.0
        %1588 = vmatpush1.msra.mxu0 0.0
        %1589 = vmatprep.subr.mxu0 0.0
        %1590 = vmatpush1.msra.mxu0 0.0
        %1591 = vmatprep.subr.mxu0 0.0
        %1592 = vmatpush1.msra.mxu0 0.0
        %1593 = vmatprep.subr.mxu0 0.0
        %1594 = vmatpush1.msra.mxu0 0.0
        %1595 = vmatprep.subr.mxu0 0.0
        %1596 = vmatpush1.msra.mxu0 0.0
        %1597 = vmatprep.subr.mxu0 0.0
        %1598 = vmatpush1.msra.mxu0 0.0
        %1599 = vmatprep.subr.mxu0 0.0
        %1600 = vmatpush1.msra.mxu0 0.0
        %1601 = vmatprep.mubr.f32.mxu0 0.0
        %1602 = vmatmul.mubr.f32.gmra.mrb[0].mxu0 %v1535
        %v1603 = vpop.f32.mrb[0].mxu0
        %v1604 = vadd.f32 %v1531, %v1603
        %v1605 = vpop.f32.mrb[0].mxu0
        %1606 = vdwg.mxu0
        %1607 = vrot.lane.b32.xlu0 %v1435, 120
        %v1608 = vpop.permute.xlu0 %1607
        %1609 = vrot.lane.b32.xlu0 %v1427, 120
        %v1610 = vpop.permute.xlu0 %1609
        %1611 = vrot.lane.b32.xlu0 %v1443, 120
        %v1612 = vpop.permute.xlu0 %1611
        %v1616 = vsel %vm1426, %v1608, 0.0
        %v1617 = vsel %vm1426, %v1610, 0.0
        %v1618 = vsel %vm1426, %v1612, 0.0
        %s1619 = scalar_lea.vmem %s4, 16
        %v1620 = vld [vmem:[%s1619] sm:$0xff]
        %v1622 = vsel %vm1418, %v1620, 0
        %1624 = vmatprep.subr.mxu0 0.0
        %1625 = vmatpush1.msra.mxu0 %v1616
        %1626 = vmatprep.subr.mxu0 0.0
        %1627 = vmatpush1.msra.mxu0 %v1617
        %1628 = vmatprep.subr.mxu0 0.0
        %1629 = vmatpush1.msra.mxu0 %v1618
        %1630 = vmatprep.subr.mxu0 0.0
        %1631 = vmatpush1.msra.mxu0 0.0
        %1632 = vmatprep.subr.mxu0 0.0
        %1633 = vmatpush1.msra.mxu0 0.0
        %1634 = vmatprep.subr.mxu0 0.0
        %1635 = vmatpush1.msra.mxu0 0.0
        %1636 = vmatprep.subr.mxu0 0.0
        %1637 = vmatpush1.msra.mxu0 0.0
        %1638 = vmatprep.subr.mxu0 0.0
        %1639 = vmatpush1.msra.mxu0 0.0
        %1640 = vmatprep.subr.mxu0 0.0
        %1641 = vmatpush1.msra.mxu0 0.0
        %1642 = vmatprep.subr.mxu0 0.0
        %1643 = vmatpush1.msra.mxu0 0.0
        %1644 = vmatprep.subr.mxu0 0.0
        %1645 = vmatpush1.msra.mxu0 0.0
        %1646 = vmatprep.subr.mxu0 0.0
        %1647 = vmatpush1.msra.mxu0 0.0
        %1648 = vmatprep.subr.mxu0 0.0
        %1649 = vmatpush1.msra.mxu0 0.0
        %1650 = vmatprep.subr.mxu0 0.0
        %1651 = vmatpush1.msra.mxu0 0.0
        %1652 = vmatprep.subr.mxu0 0.0
        %1653 = vmatpush1.msra.mxu0 0.0
        %1654 = vmatprep.subr.mxu0 0.0
        %1655 = vmatpush1.msra.mxu0 0.0
        %1656 = vmatprep.subr.mxu0 0.0
        %1657 = vmatpush1.msra.mxu0 0.0
        %1658 = vmatprep.subr.mxu0 0.0
        %1659 = vmatpush1.msra.mxu0 0.0
        %1660 = vmatprep.subr.mxu0 0.0
        %1661 = vmatpush1.msra.mxu0 0.0
        %1662 = vmatprep.subr.mxu0 0.0
        %1663 = vmatpush1.msra.mxu0 0.0
        %1664 = vmatprep.subr.mxu0 0.0
        %1665 = vmatpush1.msra.mxu0 0.0
        %1666 = vmatprep.subr.mxu0 0.0
        %1667 = vmatpush1.msra.mxu0 0.0
        %1668 = vmatprep.subr.mxu0 0.0
        %1669 = vmatpush1.msra.mxu0 0.0
        %1670 = vmatprep.subr.mxu0 0.0
        %1671 = vmatpush1.msra.mxu0 0.0
        %1672 = vmatprep.subr.mxu0 0.0
        %1673 = vmatpush1.msra.mxu0 0.0
        %1674 = vmatprep.subr.mxu0 0.0
        %1675 = vmatpush1.msra.mxu0 0.0
        %1676 = vmatprep.subr.mxu0 0.0
        %1677 = vmatpush1.msra.mxu0 0.0
        %1678 = vmatprep.subr.mxu0 0.0
        %1679 = vmatpush1.msra.mxu0 0.0
        %1680 = vmatprep.subr.mxu0 0.0
        %1681 = vmatpush1.msra.mxu0 0.0
        %1682 = vmatprep.subr.mxu0 0.0
        %1683 = vmatpush1.msra.mxu0 0.0
        %1684 = vmatprep.subr.mxu0 0.0
        %1685 = vmatpush1.msra.mxu0 0.0
        %1686 = vmatprep.subr.mxu0 0.0
        %1687 = vmatpush1.msra.mxu0 0.0
        %1688 = vmatprep.mubr.f32.mxu0 0.0
        %1689 = vmatmul.mubr.f32.gmra.mrb[0].mxu0 %v1622
        %v1690 = vpop.f32.mrb[0].mxu0
        %v1691 = vadd.f32 0.0, %v1690
        %v1692 = vpop.f32.mrb[0].mxu0
        %1693 = vdwg.mxu0
        %v1694 = vadd.f32 %v1604, %v1691
        %v1695 = vld [vmem:[%s5] sm:$0xff]
        %v1696 = vld [vmem:[%s6] sm:$0xff]
        %vm1697 = vcmask 523264
        %v1698 = vsel %vm1697, %v1694, 0.0
        %1699 = vadd.xlane.f32.xlu0 %v1698
        %v1700 = vpop.xlane.xlu0 %1699
        %v1701 = vmul.f32 %v1700, 0.015625
        %v1702 = vmul.f32 %v1694, %v1694
        %v1703 = vsel %vm1697, %v1702, 0.0
        %1704 = vadd.xlane.f32.xlu0 %v1703
        %v1705 = vpop.xlane.xlu0 %1704
        %v1706 = vmul.f32 %v1705, 0.015625
        %v1707 = vmul.f32 %v1701, %v1701
        %v1708 = vsub.f32 %v1706, %v1707
        %v1709 = vmax.f32 %v1708, 0.0
        %v1710 = vsub.f32 %v1694, %v1701
        %v1711 = vadd.f32 %v1709, 1e-05
        %v1712 = vrsqrt.pop %v1711
        %v1713 = vmul.f32 %v1710, %v1712
        %1715 = vset.pattern.permute.xlu0 0
        %1716 = vperm.xlu0 %1715, %v1695
        %v1717 = vpop.permute.xlu0 %1716
        %v1719 = vmul.f32 %v1713, %v1717
        %1721 = vset.pattern.permute.xlu0 0
        %1722 = vperm.xlu0 %1721, %v1696
        %v1723 = vpop.permute.xlu0 %1722
        %v1725 = vadd.f32 %v1719, %v1723
        %1726 = vrot.lane.b32.xlu0 %v432, 112
        %v1727 = vpop.permute.xlu0 %1726
        %v1729 = vadd.f32 %v432, %v1727
        %v1731 = vsel %vm482, %v1729, 0
        %1733 = vmatprep.subr.mxu0 0.0
        %1734 = vmatpush1.msra.mxu0 %v430
        %1735 = vmatprep.subr.mxu0 0.0
        %1736 = vmatpush1.msra.mxu0 %v431
        %1737 = vmatprep.subr.mxu0 0.0
        %1738 = vmatpush1.msra.mxu0 0.0
        %1739 = vmatprep.subr.mxu0 0.0
        %1740 = vmatpush1.msra.mxu0 0.0
        %1741 = vmatprep.subr.mxu0 0.0
        %1742 = vmatpush1.msra.mxu0 0.0
        %1743 = vmatprep.subr.mxu0 0.0
        %1744 = vmatpush1.msra.mxu0 0.0
        %1745 = vmatprep.subr.mxu0 0.0
        %1746 = vmatpush1.msra.mxu0 0.0
        %1747 = vmatprep.subr.mxu0 0.0
        %1748 = vmatpush1.msra.mxu0 0.0
        %1749 = vmatprep.subr.mxu0 0.0
        %1750 = vmatpush1.msra.mxu0 0.0
        %1751 = vmatprep.subr.mxu0 0.0
        %1752 = vmatpush1.msra.mxu0 0.0
        %1753 = vmatprep.subr.mxu0 0.0
        %1754 = vmatpush1.msra.mxu0 0.0
        %1755 = vmatprep.subr.mxu0 0.0
        %1756 = vmatpush1.msra.mxu0 0.0
        %1757 = vmatprep.subr.mxu0 0.0
        %1758 = vmatpush1.msra.mxu0 0.0
        %1759 = vmatprep.subr.mxu0 0.0
        %1760 = vmatpush1.msra.mxu0 0.0
        %1761 = vmatprep.subr.mxu0 0.0
        %1762 = vmatpush1.msra.mxu0 0.0
        %1763 = vmatprep.subr.mxu0 0.0
        %1764 = vmatpush1.msra.mxu0 0.0
        %1765 = vmatprep.subr.mxu0 0.0
        %1766 = vmatpush1.msra.mxu0 0.0
        %1767 = vmatprep.subr.mxu0 0.0
        %1768 = vmatpush1.msra.mxu0 0.0
        %1769 = vmatprep.subr.mxu0 0.0
        %1770 = vmatpush1.msra.mxu0 0.0
        %1771 = vmatprep.subr.mxu0 0.0
        %1772 = vmatpush1.msra.mxu0 0.0
        %1773 = vmatprep.subr.mxu0 0.0
        %1774 = vmatpush1.msra.mxu0 0.0
        %1775 = vmatprep.subr.mxu0 0.0
        %1776 = vmatpush1.msra.mxu0 0.0
        %1777 = vmatprep.subr.mxu0 0.0
        %1778 = vmatpush1.msra.mxu0 0.0
        %1779 = vmatprep.subr.mxu0 0.0
        %1780 = vmatpush1.msra.mxu0 0.0
        %1781 = vmatprep.subr.mxu0 0.0
        %1782 = vmatpush1.msra.mxu0 0.0
        %1783 = vmatprep.subr.mxu0 0.0
        %1784 = vmatpush1.msra.mxu0 0.0
        %1785 = vmatprep.subr.mxu0 0.0
        %1786 = vmatpush1.msra.mxu0 0.0
        %1787 = vmatprep.subr.mxu0 0.0
        %1788 = vmatpush1.msra.mxu0 0.0
        %1789 = vmatprep.subr.mxu0 0.0
        %1790 = vmatpush1.msra.mxu0 0.0
        %1791 = vmatprep.subr.mxu0 0.0
        %1792 = vmatpush1.msra.mxu0 0.0
        %1793 = vmatprep.subr.mxu0 0.0
        %1794 = vmatpush1.msra.mxu0 0.0
        %1795 = vmatprep.subr.mxu0 0.0
        %1796 = vmatpush1.msra.mxu0 0.0
        %1797 = vmatprep.mubr.f32.mxu0 0.0
        %1798 = vmatmul.mubr.f32.gmra.mrb[0].mxu0 %v1731
        %v1799 = vpop.f32.mrb[0].mxu0
        %v1800 = vadd.f32 0.0, %v1799
        %v1801 = vpop.f32.mrb[0].mxu0
        %1802 = vdwg.mxu0
        %1803 = vrot.lane.b32.xlu0 %v1729, 96
        %v1804 = vpop.permute.xlu0 %1803
        %v1805 = vsel %vm482, %v1804, 0
        %1807 = vmatprep.subr.mxu0 0.0
        %1808 = vmatpush1.msra.mxu0 %v430
        %1809 = vmatprep.subr.mxu0 0.0
        %1810 = vmatpush1.msra.mxu0 %v431
        %1811 = vmatprep.subr.mxu0 0.0
        %1812 = vmatpush1.msra.mxu0 0.0
        %1813 = vmatprep.subr.mxu0 0.0
        %1814 = vmatpush1.msra.mxu0 0.0
        %1815 = vmatprep.subr.mxu0 0.0
        %1816 = vmatpush1.msra.mxu0 0.0
        %1817 = vmatprep.subr.mxu0 0.0
        %1818 = vmatpush1.msra.mxu0 0.0
        %1819 = vmatprep.subr.mxu0 0.0
        %1820 = vmatpush1.msra.mxu0 0.0
        %1821 = vmatprep.subr.mxu0 0.0
        %1822 = vmatpush1.msra.mxu0 0.0
        %1823 = vmatprep.subr.mxu0 0.0
        %1824 = vmatpush1.msra.mxu0 0.0
        %1825 = vmatprep.subr.mxu0 0.0
        %1826 = vmatpush1.msra.mxu0 0.0
        %1827 = vmatprep.subr.mxu0 0.0
        %1828 = vmatpush1.msra.mxu0 0.0
        %1829 = vmatprep.subr.mxu0 0.0
        %1830 = vmatpush1.msra.mxu0 0.0
        %1831 = vmatprep.subr.mxu0 0.0
        %1832 = vmatpush1.msra.mxu0 0.0
        %1833 = vmatprep.subr.mxu0 0.0
        %1834 = vmatpush1.msra.mxu0 0.0
        %1835 = vmatprep.subr.mxu0 0.0
        %1836 = vmatpush1.msra.mxu0 0.0
        %1837 = vmatprep.subr.mxu0 0.0
        %1838 = vmatpush1.msra.mxu0 0.0
        %1839 = vmatprep.subr.mxu0 0.0
        %1840 = vmatpush1.msra.mxu0 0.0
        %1841 = vmatprep.subr.mxu0 0.0
        %1842 = vmatpush1.msra.mxu0 0.0
        %1843 = vmatprep.subr.mxu0 0.0
        %1844 = vmatpush1.msra.mxu0 0.0
        %1845 = vmatprep.subr.mxu0 0.0
        %1846 = vmatpush1.msra.mxu0 0.0
        %1847 = vmatprep.subr.mxu0 0.0
        %1848 = vmatpush1.msra.mxu0 0.0
        %1849 = vmatprep.subr.mxu0 0.0
        %1850 = vmatpush1.msra.mxu0 0.0
        %1851 = vmatprep.subr.mxu0 0.0
        %1852 = vmatpush1.msra.mxu0 0.0
        %1853 = vmatprep.subr.mxu0 0.0
        %1854 = vmatpush1.msra.mxu0 0.0
        %1855 = vmatprep.subr.mxu0 0.0
        %1856 = vmatpush1.msra.mxu0 0.0
        %1857 = vmatprep.subr.mxu0 0.0
        %1858 = vmatpush1.msra.mxu0 0.0
        %1859 = vmatprep.subr.mxu0 0.0
        %1860 = vmatpush1.msra.mxu0 0.0
        %1861 = vmatprep.subr.mxu0 0.0
        %1862 = vmatpush1.msra.mxu0 0.0
        %1863 = vmatprep.subr.mxu0 0.0
        %1864 = vmatpush1.msra.mxu0 0.0
        %1865 = vmatprep.subr.mxu0 0.0
        %1866 = vmatpush1.msra.mxu0 0.0
        %1867 = vmatprep.subr.mxu0 0.0
        %1868 = vmatpush1.msra.mxu0 0.0
        %1869 = vmatprep.subr.mxu0 0.0
        %1870 = vmatpush1.msra.mxu0 0.0
        %1871 = vmatprep.mubr.f32.mxu0 0.0
        %1872 = vmatmul.mubr.f32.gmra.mrb[0].mxu0 %v1805
        %v1873 = vpop.f32.mrb[0].mxu0
        %v1874 = vadd.f32 0.0, %v1873
        %v1875 = vpop.f32.mrb[0].mxu0
        %1876 = vdwg.mxu0
        %1877 = vrot.lane.b32.xlu0 %v1729, 64
        %v1878 = vpop.permute.xlu0 %1877
        %v1879 = vsel %vm482, %v1878, 0
        %1881 = vmatprep.subr.mxu0 0.0
        %1882 = vmatpush1.msra.mxu0 %v430
        %1883 = vmatprep.subr.mxu0 0.0
        %1884 = vmatpush1.msra.mxu0 %v431
        %1885 = vmatprep.subr.mxu0 0.0
        %1886 = vmatpush1.msra.mxu0 0.0
        %1887 = vmatprep.subr.mxu0 0.0
        %1888 = vmatpush1.msra.mxu0 0.0
        %1889 = vmatprep.subr.mxu0 0.0
        %1890 = vmatpush1.msra.mxu0 0.0
        %1891 = vmatprep.subr.mxu0 0.0
        %1892 = vmatpush1.msra.mxu0 0.0
        %1893 = vmatprep.subr.mxu0 0.0
        %1894 = vmatpush1.msra.mxu0 0.0
        %1895 = vmatprep.subr.mxu0 0.0
        %1896 = vmatpush1.msra.mxu0 0.0
        %1897 = vmatprep.subr.mxu0 0.0
        %1898 = vmatpush1.msra.mxu0 0.0
        %1899 = vmatprep.subr.mxu0 0.0
        %1900 = vmatpush1.msra.mxu0 0.0
        %1901 = vmatprep.subr.mxu0 0.0
        %1902 = vmatpush1.msra.mxu0 0.0
        %1903 = vmatprep.subr.mxu0 0.0
        %1904 = vmatpush1.msra.mxu0 0.0
        %1905 = vmatprep.subr.mxu0 0.0
        %1906 = vmatpush1.msra.mxu0 0.0
        %1907 = vmatprep.subr.mxu0 0.0
        %1908 = vmatpush1.msra.mxu0 0.0
        %1909 = vmatprep.subr.mxu0 0.0
        %1910 = vmatpush1.msra.mxu0 0.0
        %1911 = vmatprep.subr.mxu0 0.0
        %1912 = vmatpush1.msra.mxu0 0.0
        %1913 = vmatprep.subr.mxu0 0.0
        %1914 = vmatpush1.msra.mxu0 0.0
        %1915 = vmatprep.subr.mxu0 0.0
        %1916 = vmatpush1.msra.mxu0 0.0
        %1917 = vmatprep.subr.mxu0 0.0
        %1918 = vmatpush1.msra.mxu0 0.0
        %1919 = vmatprep.subr.mxu0 0.0
        %1920 = vmatpush1.msra.mxu0 0.0
        %1921 = vmatprep.subr.mxu0 0.0
        %1922 = vmatpush1.msra.mxu0 0.0
        %1923 = vmatprep.subr.mxu0 0.0
        %1924 = vmatpush1.msra.mxu0 0.0
        %1925 = vmatprep.subr.mxu0 0.0
        %1926 = vmatpush1.msra.mxu0 0.0
        %1927 = vmatprep.subr.mxu0 0.0
        %1928 = vmatpush1.msra.mxu0 0.0
        %1929 = vmatprep.subr.mxu0 0.0
        %1930 = vmatpush1.msra.mxu0 0.0
        %1931 = vmatprep.subr.mxu0 0.0
        %1932 = vmatpush1.msra.mxu0 0.0
        %1933 = vmatprep.subr.mxu0 0.0
        %1934 = vmatpush1.msra.mxu0 0.0
        %1935 = vmatprep.subr.mxu0 0.0
        %1936 = vmatpush1.msra.mxu0 0.0
        %1937 = vmatprep.subr.mxu0 0.0
        %1938 = vmatpush1.msra.mxu0 0.0
        %1939 = vmatprep.subr.mxu0 0.0
        %1940 = vmatpush1.msra.mxu0 0.0
        %1941 = vmatprep.subr.mxu0 0.0
        %1942 = vmatpush1.msra.mxu0 0.0
        %1943 = vmatprep.subr.mxu0 0.0
        %1944 = vmatpush1.msra.mxu0 0.0
        %1945 = vmatprep.mubr.f32.mxu0 0.0
        %1946 = vmatmul.mubr.f32.gmra.mrb[0].mxu0 %v1879
        %v1947 = vpop.f32.mrb[0].mxu0
        %v1948 = vadd.f32 0.0, %v1947
        %v1949 = vpop.f32.mrb[0].mxu0
        %1950 = vdwg.mxu0
        %1951 = vrot.lane.b32.xlu0 %v1729, 32
        %v1952 = vpop.permute.xlu0 %1951
        %v1953 = vsel %vm482, %v1952, 0
        %1955 = vmatprep.subr.mxu0 0.0
        %1956 = vmatpush1.msra.mxu0 %v430
        %1957 = vmatprep.subr.mxu0 0.0
        %1958 = vmatpush1.msra.mxu0 %v431
        %1959 = vmatprep.subr.mxu0 0.0
        %1960 = vmatpush1.msra.mxu0 0.0
        %1961 = vmatprep.subr.mxu0 0.0
        %1962 = vmatpush1.msra.mxu0 0.0
        %1963 = vmatprep.subr.mxu0 0.0
        %1964 = vmatpush1.msra.mxu0 0.0
        %1965 = vmatprep.subr.mxu0 0.0
        %1966 = vmatpush1.msra.mxu0 0.0
        %1967 = vmatprep.subr.mxu0 0.0
        %1968 = vmatpush1.msra.mxu0 0.0
        %1969 = vmatprep.subr.mxu0 0.0
        %1970 = vmatpush1.msra.mxu0 0.0
        %1971 = vmatprep.subr.mxu0 0.0
        %1972 = vmatpush1.msra.mxu0 0.0
        %1973 = vmatprep.subr.mxu0 0.0
        %1974 = vmatpush1.msra.mxu0 0.0
        %1975 = vmatprep.subr.mxu0 0.0
        %1976 = vmatpush1.msra.mxu0 0.0
        %1977 = vmatprep.subr.mxu0 0.0
        %1978 = vmatpush1.msra.mxu0 0.0
        %1979 = vmatprep.subr.mxu0 0.0
        %1980 = vmatpush1.msra.mxu0 0.0
        %1981 = vmatprep.subr.mxu0 0.0
        %1982 = vmatpush1.msra.mxu0 0.0
        %1983 = vmatprep.subr.mxu0 0.0
        %1984 = vmatpush1.msra.mxu0 0.0
        %1985 = vmatprep.subr.mxu0 0.0
        %1986 = vmatpush1.msra.mxu0 0.0
        %1987 = vmatprep.subr.mxu0 0.0
        %1988 = vmatpush1.msra.mxu0 0.0
        %1989 = vmatprep.subr.mxu0 0.0
        %1990 = vmatpush1.msra.mxu0 0.0
        %1991 = vmatprep.subr.mxu0 0.0
        %1992 = vmatpush1.msra.mxu0 0.0
        %1993 = vmatprep.subr.mxu0 0.0
        %1994 = vmatpush1.msra.mxu0 0.0
        %1995 = vmatprep.subr.mxu0 0.0
        %1996 = vmatpush1.msra.mxu0 0.0
        %1997 = vmatprep.subr.mxu0 0.0
        %1998 = vmatpush1.msra.mxu0 0.0
        %1999 = vmatprep.subr.mxu0 0.0
        %2000 = vmatpush1.msra.mxu0 0.0
        %2001 = vmatprep.subr.mxu0 0.0
        %2002 = vmatpush1.msra.mxu0 0.0
        %2003 = vmatprep.subr.mxu0 0.0
        %2004 = vmatpush1.msra.mxu0 0.0
        %2005 = vmatprep.subr.mxu0 0.0
        %2006 = vmatpush1.msra.mxu0 0.0
        %2007 = vmatprep.subr.mxu0 0.0
        %2008 = vmatpush1.msra.mxu0 0.0
        %2009 = vmatprep.subr.mxu0 0.0
        %2010 = vmatpush1.msra.mxu0 0.0
        %2011 = vmatprep.subr.mxu0 0.0
        %2012 = vmatpush1.msra.mxu0 0.0
        %2013 = vmatprep.subr.mxu0 0.0
        %2014 = vmatpush1.msra.mxu0 0.0
        %2015 = vmatprep.subr.mxu0 0.0
        %2016 = vmatpush1.msra.mxu0 0.0
        %2017 = vmatprep.subr.mxu0 0.0
        %2018 = vmatpush1.msra.mxu0 0.0
        %2019 = vmatprep.mubr.f32.mxu0 0.0
        %2020 = vmatmul.mubr.f32.gmra.mrb[0].mxu0 %v1953
        %v2021 = vpop.f32.mrb[0].mxu0
        %v2022 = vadd.f32 0.0, %v2021
        %v2023 = vpop.f32.mrb[0].mxu0
        %2024 = vdwg.mxu0
        %v2025 = vrot.slane %v432, 4
        %v2027 = vrot.slane %v1727, 4
        %v2029 = vadd.f32 %v2025, %v2027
        %v2031 = vsel %vm482, %v2029, 0
        %2033 = vmatprep.subr.mxu0 0.0
        %2034 = vmatpush1.msra.mxu0 %v430
        %2035 = vmatprep.subr.mxu0 0.0
        %2036 = vmatpush1.msra.mxu0 %v431
        %2037 = vmatprep.subr.mxu0 0.0
        %2038 = vmatpush1.msra.mxu0 0.0
        %2039 = vmatprep.subr.mxu0 0.0
        %2040 = vmatpush1.msra.mxu0 0.0
        %2041 = vmatprep.subr.mxu0 0.0
        %2042 = vmatpush1.msra.mxu0 0.0
        %2043 = vmatprep.subr.mxu0 0.0
        %2044 = vmatpush1.msra.mxu0 0.0
        %2045 = vmatprep.subr.mxu0 0.0
        %2046 = vmatpush1.msra.mxu0 0.0
        %2047 = vmatprep.subr.mxu0 0.0
        %2048 = vmatpush1.msra.mxu0 0.0
        %2049 = vmatprep.subr.mxu0 0.0
        %2050 = vmatpush1.msra.mxu0 0.0
        %2051 = vmatprep.subr.mxu0 0.0
        %2052 = vmatpush1.msra.mxu0 0.0
        %2053 = vmatprep.subr.mxu0 0.0
        %2054 = vmatpush1.msra.mxu0 0.0
        %2055 = vmatprep.subr.mxu0 0.0
        %2056 = vmatpush1.msra.mxu0 0.0
        %2057 = vmatprep.subr.mxu0 0.0
        %2058 = vmatpush1.msra.mxu0 0.0
        %2059 = vmatprep.subr.mxu0 0.0
        %2060 = vmatpush1.msra.mxu0 0.0
        %2061 = vmatprep.subr.mxu0 0.0
        %2062 = vmatpush1.msra.mxu0 0.0
        %2063 = vmatprep.subr.mxu0 0.0
        %2064 = vmatpush1.msra.mxu0 0.0
        %2065 = vmatprep.subr.mxu0 0.0
        %2066 = vmatpush1.msra.mxu0 0.0
        %2067 = vmatprep.subr.mxu0 0.0
        %2068 = vmatpush1.msra.mxu0 0.0
        %2069 = vmatprep.subr.mxu0 0.0
        %2070 = vmatpush1.msra.mxu0 0.0
        %2071 = vmatprep.subr.mxu0 0.0
        %2072 = vmatpush1.msra.mxu0 0.0
        %2073 = vmatprep.subr.mxu0 0.0
        %2074 = vmatpush1.msra.mxu0 0.0
        %2075 = vmatprep.subr.mxu0 0.0
        %2076 = vmatpush1.msra.mxu0 0.0
        %2077 = vmatprep.subr.mxu0 0.0
        %2078 = vmatpush1.msra.mxu0 0.0
        %2079 = vmatprep.subr.mxu0 0.0
        %2080 = vmatpush1.msra.mxu0 0.0
        %2081 = vmatprep.subr.mxu0 0.0
        %2082 = vmatpush1.msra.mxu0 0.0
        %2083 = vmatprep.subr.mxu0 0.0
        %2084 = vmatpush1.msra.mxu0 0.0
        %2085 = vmatprep.subr.mxu0 0.0
        %2086 = vmatpush1.msra.mxu0 0.0
        %2087 = vmatprep.subr.mxu0 0.0
        %2088 = vmatpush1.msra.mxu0 0.0
        %2089 = vmatprep.subr.mxu0 0.0
        %2090 = vmatpush1.msra.mxu0 0.0
        %2091 = vmatprep.subr.mxu0 0.0
        %2092 = vmatpush1.msra.mxu0 0.0
        %2093 = vmatprep.subr.mxu0 0.0
        %2094 = vmatpush1.msra.mxu0 0.0
        %2095 = vmatprep.subr.mxu0 0.0
        %2096 = vmatpush1.msra.mxu0 0.0
        %2097 = vmatprep.mubr.f32.mxu0 0.0
        %2098 = vmatmul.mubr.f32.gmra.mrb[0].mxu0 %v2031
        %v2099 = vpop.f32.mrb[0].mxu0
        %v2100 = vadd.f32 0.0, %v2099
        %v2101 = vpop.f32.mrb[0].mxu0
        %2102 = vdwg.mxu0
        %2103 = vrot.lane.b32.xlu0 %v432, 96
        %v2104 = vpop.permute.xlu0 %2103
        %v2105 = vrot.slane %v2104, 4
        %2107 = vrot.lane.b32.xlu0 %v432, 80
        %v2108 = vpop.permute.xlu0 %2107
        %v2109 = vrot.slane %v2108, 4
        %v2111 = vadd.f32 %v2105, %v2109
        %v2113 = vsel %vm482, %v2111, 0
        %2115 = vmatprep.subr.mxu0 0.0
        %2116 = vmatpush1.msra.mxu0 %v430
        %2117 = vmatprep.subr.mxu0 0.0
        %2118 = vmatpush1.msra.mxu0 %v431
        %2119 = vmatprep.subr.mxu0 0.0
        %2120 = vmatpush1.msra.mxu0 0.0
        %2121 = vmatprep.subr.mxu0 0.0
        %2122 = vmatpush1.msra.mxu0 0.0
        %2123 = vmatprep.subr.mxu0 0.0
        %2124 = vmatpush1.msra.mxu0 0.0
        %2125 = vmatprep.subr.mxu0 0.0
        %2126 = vmatpush1.msra.mxu0 0.0
        %2127 = vmatprep.subr.mxu0 0.0
        %2128 = vmatpush1.msra.mxu0 0.0
        %2129 = vmatprep.subr.mxu0 0.0
        %2130 = vmatpush1.msra.mxu0 0.0
        %2131 = vmatprep.subr.mxu0 0.0
        %2132 = vmatpush1.msra.mxu0 0.0
        %2133 = vmatprep.subr.mxu0 0.0
        %2134 = vmatpush1.msra.mxu0 0.0
        %2135 = vmatprep.subr.mxu0 0.0
        %2136 = vmatpush1.msra.mxu0 0.0
        %2137 = vmatprep.subr.mxu0 0.0
        %2138 = vmatpush1.msra.mxu0 0.0
        %2139 = vmatprep.subr.mxu0 0.0
        %2140 = vmatpush1.msra.mxu0 0.0
        %2141 = vmatprep.subr.mxu0 0.0
        %2142 = vmatpush1.msra.mxu0 0.0
        %2143 = vmatprep.subr.mxu0 0.0
        %2144 = vmatpush1.msra.mxu0 0.0
        %2145 = vmatprep.subr.mxu0 0.0
        %2146 = vmatpush1.msra.mxu0 0.0
        %2147 = vmatprep.subr.mxu0 0.0
        %2148 = vmatpush1.msra.mxu0 0.0
        %2149 = vmatprep.subr.mxu0 0.0
        %2150 = vmatpush1.msra.mxu0 0.0
        %2151 = vmatprep.subr.mxu0 0.0
        %2152 = vmatpush1.msra.mxu0 0.0
        %2153 = vmatprep.subr.mxu0 0.0
        %2154 = vmatpush1.msra.mxu0 0.0
        %2155 = vmatprep.subr.mxu0 0.0
        %2156 = vmatpush1.msra.mxu0 0.0
        %2157 = vmatprep.subr.mxu0 0.0
        %2158 = vmatpush1.msra.mxu0 0.0
        %2159 = vmatprep.subr.mxu0 0.0
        %2160 = vmatpush1.msra.mxu0 0.0
        %2161 = vmatprep.subr.mxu0 0.0
        %2162 = vmatpush1.msra.mxu0 0.0
        %2163 = vmatprep.subr.mxu0 0.0
        %2164 = vmatpush1.msra.mxu0 0.0
        %2165 = vmatprep.subr.mxu0 0.0
        %2166 = vmatpush1.msra.mxu0 0.0
        %2167 = vmatprep.subr.mxu0 0.0
        %2168 = vmatpush1.msra.mxu0 0.0
        %2169 = vmatprep.subr.mxu0 0.0
        %2170 = vmatpush1.msra.mxu0 0.0
        %2171 = vmatprep.subr.mxu0 0.0
        %2172 = vmatpush1.msra.mxu0 0.0
        %2173 = vmatprep.subr.mxu0 0.0
        %2174 = vmatpush1.msra.mxu0 0.0
        %2175 = vmatprep.subr.mxu0 0.0
        %2176 = vmatpush1.msra.mxu0 0.0
        %2177 = vmatprep.subr.mxu0 0.0
        %2178 = vmatpush1.msra.mxu0 0.0
        %2179 = vmatprep.mubr.f32.mxu0 0.0
        %2180 = vmatmul.mubr.f32.gmra.mrb[0].mxu0 %v2113
        %v2181 = vpop.f32.mrb[0].mxu0
        %v2182 = vadd.f32 0.0, %v2181
        %v2183 = vpop.f32.mrb[0].mxu0
        %2184 = vdwg.mxu0
        %2185 = vrot.lane.b32.xlu0 %v432, 64
        %v2186 = vpop.permute.xlu0 %2185
        %v2187 = vrot.slane %v2186, 4
        %2189 = vrot.lane.b32.xlu0 %v432, 48
        %v2190 = vpop.permute.xlu0 %2189
        %v2191 = vrot.slane %v2190, 4
        %v2193 = vadd.f32 %v2187, %v2191
        %v2195 = vsel %vm482, %v2193, 0
        %2197 = vmatprep.subr.mxu0 0.0
        %2198 = vmatpush1.msra.mxu0 %v430
        %2199 = vmatprep.subr.mxu0 0.0
        %2200 = vmatpush1.msra.mxu0 %v431
        %2201 = vmatprep.subr.mxu0 0.0
        %2202 = vmatpush1.msra.mxu0 0.0
        %2203 = vmatprep.subr.mxu0 0.0
        %2204 = vmatpush1.msra.mxu0 0.0
        %2205 = vmatprep.subr.mxu0 0.0
        %2206 = vmatpush1.msra.mxu0 0.0
        %2207 = vmatprep.subr.mxu0 0.0
        %2208 = vmatpush1.msra.mxu0 0.0
        %2209 = vmatprep.subr.mxu0 0.0
        %2210 = vmatpush1.msra.mxu0 0.0
        %2211 = vmatprep.subr.mxu0 0.0
        %2212 = vmatpush1.msra.mxu0 0.0
        %2213 = vmatprep.subr.mxu0 0.0
        %2214 = vmatpush1.msra.mxu0 0.0
        %2215 = vmatprep.subr.mxu0 0.0
        %2216 = vmatpush1.msra.mxu0 0.0
        %2217 = vmatprep.subr.mxu0 0.0
        %2218 = vmatpush1.msra.mxu0 0.0
        %2219 = vmatprep.subr.mxu0 0.0
        %2220 = vmatpush1.msra.mxu0 0.0
        %2221 = vmatprep.subr.mxu0 0.0
        %2222 = vmatpush1.msra.mxu0 0.0
        %2223 = vmatprep.subr.mxu0 0.0
        %2224 = vmatpush1.msra.mxu0 0.0
        %2225 = vmatprep.subr.mxu0 0.0
        %2226 = vmatpush1.msra.mxu0 0.0
        %2227 = vmatprep.subr.mxu0 0.0
        %2228 = vmatpush1.msra.mxu0 0.0
        %2229 = vmatprep.subr.mxu0 0.0
        %2230 = vmatpush1.msra.mxu0 0.0
        %2231 = vmatprep.subr.mxu0 0.0
        %2232 = vmatpush1.msra.mxu0 0.0
        %2233 = vmatprep.subr.mxu0 0.0
        %2234 = vmatpush1.msra.mxu0 0.0
        %2235 = vmatprep.subr.mxu0 0.0
        %2236 = vmatpush1.msra.mxu0 0.0
        %2237 = vmatprep.subr.mxu0 0.0
        %2238 = vmatpush1.msra.mxu0 0.0
        %2239 = vmatprep.subr.mxu0 0.0
        %2240 = vmatpush1.msra.mxu0 0.0
        %2241 = vmatprep.subr.mxu0 0.0
        %2242 = vmatpush1.msra.mxu0 0.0
        %2243 = vmatprep.subr.mxu0 0.0
        %2244 = vmatpush1.msra.mxu0 0.0
        %2245 = vmatprep.subr.mxu0 0.0
        %2246 = vmatpush1.msra.mxu0 0.0
        %2247 = vmatprep.subr.mxu0 0.0
        %2248 = vmatpush1.msra.mxu0 0.0
        %2249 = vmatprep.subr.mxu0 0.0
        %2250 = vmatpush1.msra.mxu0 0.0
        %2251 = vmatprep.subr.mxu0 0.0
        %2252 = vmatpush1.msra.mxu0 0.0
        %2253 = vmatprep.subr.mxu0 0.0
        %2254 = vmatpush1.msra.mxu0 0.0
        %2255 = vmatprep.subr.mxu0 0.0
        %2256 = vmatpush1.msra.mxu0 0.0
        %2257 = vmatprep.subr.mxu0 0.0
        %2258 = vmatpush1.msra.mxu0 0.0
        %2259 = vmatprep.subr.mxu0 0.0
        %2260 = vmatpush1.msra.mxu0 0.0
        %2261 = vmatprep.mubr.f32.mxu0 0.0
        %2262 = vmatmul.mubr.f32.gmra.mrb[0].mxu0 %v2195
        %v2263 = vpop.f32.mrb[0].mxu0
        %v2264 = vadd.f32 0.0, %v2263
        %v2265 = vpop.f32.mrb[0].mxu0
        %2266 = vdwg.mxu0
        %2267 = vrot.lane.b32.xlu0 %v432, 32
        %v2268 = vpop.permute.xlu0 %2267
        %v2269 = vrot.slane %v2268, 4
        %2271 = vrot.lane.b32.xlu0 %v432, 16
        %v2272 = vpop.permute.xlu0 %2271
        %v2273 = vrot.slane %v2272, 4
        %v2275 = vadd.f32 %v2269, %v2273
        %v2277 = vsel %vm482, %v2275, 0
        %2279 = vmatprep.subr.mxu0 0.0
        %2280 = vmatpush1.msra.mxu0 %v430
        %2281 = vmatprep.subr.mxu0 0.0
        %2282 = vmatpush1.msra.mxu0 %v431
        %2283 = vmatprep.subr.mxu0 0.0
        %2284 = vmatpush1.msra.mxu0 0.0
        %2285 = vmatprep.subr.mxu0 0.0
        %2286 = vmatpush1.msra.mxu0 0.0
        %2287 = vmatprep.subr.mxu0 0.0
        %2288 = vmatpush1.msra.mxu0 0.0
        %2289 = vmatprep.subr.mxu0 0.0
        %2290 = vmatpush1.msra.mxu0 0.0
        %2291 = vmatprep.subr.mxu0 0.0
        %2292 = vmatpush1.msra.mxu0 0.0
        %2293 = vmatprep.subr.mxu0 0.0
        %2294 = vmatpush1.msra.mxu0 0.0
        %2295 = vmatprep.subr.mxu0 0.0
        %2296 = vmatpush1.msra.mxu0 0.0
        %2297 = vmatprep.subr.mxu0 0.0
        %2298 = vmatpush1.msra.mxu0 0.0
        %2299 = vmatprep.subr.mxu0 0.0
        %2300 = vmatpush1.msra.mxu0 0.0
        %2301 = vmatprep.subr.mxu0 0.0
        %2302 = vmatpush1.msra.mxu0 0.0
        %2303 = vmatprep.subr.mxu0 0.0
        %2304 = vmatpush1.msra.mxu0 0.0
        %2305 = vmatprep.subr.mxu0 0.0
        %2306 = vmatpush1.msra.mxu0 0.0
        %2307 = vmatprep.subr.mxu0 0.0
        %2308 = vmatpush1.msra.mxu0 0.0
        %2309 = vmatprep.subr.mxu0 0.0
        %2310 = vmatpush1.msra.mxu0 0.0
        %2311 = vmatprep.subr.mxu0 0.0
        %2312 = vmatpush1.msra.mxu0 0.0
        %2313 = vmatprep.subr.mxu0 0.0
        %2314 = vmatpush1.msra.mxu0 0.0
        %2315 = vmatprep.subr.mxu0 0.0
        %2316 = vmatpush1.msra.mxu0 0.0
        %2317 = vmatprep.subr.mxu0 0.0
        %2318 = vmatpush1.msra.mxu0 0.0
        %2319 = vmatprep.subr.mxu0 0.0
        %2320 = vmatpush1.msra.mxu0 0.0
        %2321 = vmatprep.subr.mxu0 0.0
        %2322 = vmatpush1.msra.mxu0 0.0
        %2323 = vmatprep.subr.mxu0 0.0
        %2324 = vmatpush1.msra.mxu0 0.0
        %2325 = vmatprep.subr.mxu0 0.0
        %2326 = vmatpush1.msra.mxu0 0.0
        %2327 = vmatprep.subr.mxu0 0.0
        %2328 = vmatpush1.msra.mxu0 0.0
        %2329 = vmatprep.subr.mxu0 0.0
        %2330 = vmatpush1.msra.mxu0 0.0
        %2331 = vmatprep.subr.mxu0 0.0
        %2332 = vmatpush1.msra.mxu0 0.0
        %2333 = vmatprep.subr.mxu0 0.0
        %2334 = vmatpush1.msra.mxu0 0.0
        %2335 = vmatprep.subr.mxu0 0.0
        %2336 = vmatpush1.msra.mxu0 0.0
        %2337 = vmatprep.subr.mxu0 0.0
        %2338 = vmatpush1.msra.mxu0 0.0
        %2339 = vmatprep.subr.mxu0 0.0
        %2340 = vmatpush1.msra.mxu0 0.0
        %2341 = vmatprep.subr.mxu0 0.0
        %2342 = vmatpush1.msra.mxu0 0.0
        %2343 = vmatprep.mubr.f32.mxu0 0.0
        %2344 = vmatmul.mubr.f32.gmra.mrb[0].mxu0 %v2277
        %v2345 = vpop.f32.mrb[0].mxu0
        %v2346 = vadd.f32 0.0, %v2345
        %v2347 = vpop.f32.mrb[0].mxu0
        %2348 = vdwg.mxu0
        %2350 = vrot.lane.b32.xlu0 %v1874, 8
        %v2351 = vpop.permute.xlu0 %2350
        %2354 = vrot.lane.b32.xlu0 %v1948, 16
        %v2355 = vpop.permute.xlu0 %2354
        %2358 = vrot.lane.b32.xlu0 %v2022, 24
        %v2359 = vpop.permute.xlu0 %2358
        %2362 = vrot.lane.b32.xlu0 %v2100, 32
        %v2363 = vpop.permute.xlu0 %2362
        %2366 = vrot.lane.b32.xlu0 %v2182, 40
        %v2367 = vpop.permute.xlu0 %2366
        %2370 = vrot.lane.b32.xlu0 %v2264, 48
        %v2371 = vpop.permute.xlu0 %2370
        %2374 = vrot.lane.b32.xlu0 %v2346, 56
        %v2375 = vpop.permute.xlu0 %2374
        %v2377 = vsel %vm1415, %v1800, %v2351
        %v2378 = vsel %vm482, %v2377, %v2355
        %v2379 = vsel %vm1418, %v2378, %v2359
        %v2380 = vsel %vm1420, %v2379, %v2363
        %v2381 = vsel %vm1422, %v2380, %v2367
        %v2382 = vsel %vm1424, %v2381, %v2371
        %v2383 = vsel %vm1426, %v2382, %v2375
        %v2384 = vld [vmem:[%s8] sm:$0xff]
        %vm2385 = vcmask 31744
        %v2387 = vsel %vm2385, %v2384, 0
        %v2390 = vsel %vm467, %v2383, 0
        %2392 = vmatprep.subr.mxu0 0.0
        %2393 = vmatpush1.msra.mxu0 %v2390
        %2394 = vmatprep.subr.mxu0 0.0
        %2395 = vmatpush1.msra.mxu0 0.0
        %2396 = vmatprep.subr.mxu0 0.0
        %2397 = vmatpush1.msra.mxu0 0.0
        %2398 = vmatprep.subr.mxu0 0.0
        %2399 = vmatpush1.msra.mxu0 0.0
        %2400 = vmatprep.subr.mxu0 0.0
        %2401 = vmatpush1.msra.mxu0 0.0
        %2402 = vmatprep.subr.mxu0 0.0
        %2403 = vmatpush1.msra.mxu0 0.0
        %2404 = vmatprep.subr.mxu0 0.0
        %2405 = vmatpush1.msra.mxu0 0.0
        %2406 = vmatprep.subr.mxu0 0.0
        %2407 = vmatpush1.msra.mxu0 0.0
        %2408 = vmatprep.subr.mxu0 0.0
        %2409 = vmatpush1.msra.mxu0 0.0
        %2410 = vmatprep.subr.mxu0 0.0
        %2411 = vmatpush1.msra.mxu0 0.0
        %2412 = vmatprep.subr.mxu0 0.0
        %2413 = vmatpush1.msra.mxu0 0.0
        %2414 = vmatprep.subr.mxu0 0.0
        %2415 = vmatpush1.msra.mxu0 0.0
        %2416 = vmatprep.subr.mxu0 0.0
        %2417 = vmatpush1.msra.mxu0 0.0
        %2418 = vmatprep.subr.mxu0 0.0
        %2419 = vmatpush1.msra.mxu0 0.0
        %2420 = vmatprep.subr.mxu0 0.0
        %2421 = vmatpush1.msra.mxu0 0.0
        %2422 = vmatprep.subr.mxu0 0.0
        %2423 = vmatpush1.msra.mxu0 0.0
        %2424 = vmatprep.subr.mxu0 0.0
        %2425 = vmatpush1.msra.mxu0 0.0
        %2426 = vmatprep.subr.mxu0 0.0
        %2427 = vmatpush1.msra.mxu0 0.0
        %2428 = vmatprep.subr.mxu0 0.0
        %2429 = vmatpush1.msra.mxu0 0.0
        %2430 = vmatprep.subr.mxu0 0.0
        %2431 = vmatpush1.msra.mxu0 0.0
        %2432 = vmatprep.subr.mxu0 0.0
        %2433 = vmatpush1.msra.mxu0 0.0
        %2434 = vmatprep.subr.mxu0 0.0
        %2435 = vmatpush1.msra.mxu0 0.0
        %2436 = vmatprep.subr.mxu0 0.0
        %2437 = vmatpush1.msra.mxu0 0.0
        %2438 = vmatprep.subr.mxu0 0.0
        %2439 = vmatpush1.msra.mxu0 0.0
        %2440 = vmatprep.subr.mxu0 0.0
        %2441 = vmatpush1.msra.mxu0 0.0
        %2442 = vmatprep.subr.mxu0 0.0
        %2443 = vmatpush1.msra.mxu0 0.0
        %2444 = vmatprep.subr.mxu0 0.0
        %2445 = vmatpush1.msra.mxu0 0.0
        %2446 = vmatprep.subr.mxu0 0.0
        %2447 = vmatpush1.msra.mxu0 0.0
        %2448 = vmatprep.subr.mxu0 0.0
        %2449 = vmatpush1.msra.mxu0 0.0
        %2450 = vmatprep.subr.mxu0 0.0
        %2451 = vmatpush1.msra.mxu0 0.0
        %2452 = vmatprep.subr.mxu0 0.0
        %2453 = vmatpush1.msra.mxu0 0.0
        %2454 = vmatprep.subr.mxu0 0.0
        %2455 = vmatpush1.msra.mxu0 0.0
        %2456 = vmatprep.mubr.f32.mxu0 0.0
        %2457 = vmatmul.mubr.f32.gmra.mrb[0].mxu0 %v2387
        %v2458 = vpop.f32.mrb[0].mxu0
        %v2459 = vadd.f32 0.0, %v2458
        %v2460 = vpop.f32.mrb[0].mxu0
        %2461 = vdwg.mxu0
        %v2462 = vld [vmem:[%s9] sm:$0xff]
        %v2463 = vld [vmem:[%s10] sm:$0xff]
        %v2464 = vsel %vm1697, %v2459, 0.0
        %2465 = vadd.xlane.f32.xlu0 %v2464
        %v2466 = vpop.xlane.xlu0 %2465
        %v2467 = vmul.f32 %v2466, 0.015625
        %v2468 = vmul.f32 %v2459, %v2459
        %v2469 = vsel %vm1697, %v2468, 0.0
        %2470 = vadd.xlane.f32.xlu0 %v2469
        %v2471 = vpop.xlane.xlu0 %2470
        %v2472 = vmul.f32 %v2471, 0.015625
        %v2473 = vmul.f32 %v2467, %v2467
        %v2474 = vsub.f32 %v2472, %v2473
        %v2475 = vmax.f32 %v2474, 0.0
        %v2476 = vsub.f32 %v2459, %v2467
        %v2477 = vadd.f32 %v2475, 1e-05
        %v2478 = vrsqrt.pop %v2477
        %v2479 = vmul.f32 %v2476, %v2478
        %2481 = vset.pattern.permute.xlu0 0
        %2482 = vperm.xlu0 %2481, %v2462
        %v2483 = vpop.permute.xlu0 %2482
        %v2485 = vmul.f32 %v2479, %v2483
        %2487 = vset.pattern.permute.xlu0 0
        %2488 = vperm.xlu0 %2487, %v2463
        %v2489 = vpop.permute.xlu0 %2488
        %v2491 = vadd.f32 %v2485, %v2489
        %v2492 = vadd.f32 %v1725, %v2491
        %v2493 = vmax.f32 %v2492, 0.0
        %2494 = vst.msk [vmem:[%s379] sm:$0xff] %vm1697, %v2493
        %s2495 = sand.u32 %s269, 1
        %s2496 = scalar_lea.sflag [#allocation3], %s2495
        %s2497 = sand.u32 %s269, 1
        %s2498 = smul.addr %s2497, 8
        %s2499 = scalar_lea.vmem [#allocation2], %s2498
        // Predicated region
        $region65: #{tpu_custom_call.1} parent=63 // pred_check
          %p2500 = pneg %p279
        $region66: #{tpu_custom_call.1} parent=63 // pred_check_branch
          %2502 = sbr.rel (%p2500) target = $region68
        $region67: #{tpu_custom_call.1} parent=63 // pred_region
          %s2504 = ssub.s32 128, 128
          %2505 = vsyncadd %s2496, %s2504
          %s2506 = smul.addr %s25, 128
          %s2507 = scalar_lea.hbm %s11, %s2506
          %s2509 = sshll.u32 %s2499, 4
          %s2510 = int_to_ptr.vmem [resolvable:$true] %s2509
          %2512 = dma.vmem_to_hbm [thread:$0]  %s2510, 128, %s2507, %s2496
        $region68: #{tpu_custom_call.1} parent=63 // pred_fallthru
          _
      $region64: #{tpu_custom_call.1} parent=5 // pred_fallthru
        _
      %p2513 = scmp.le.s32.totalorder 2, %s20
      // Predicated region
      $region69: #{tpu_custom_call.1} parent=5 // pred_check
        %p2514 = pneg %p2513
      $region70: #{tpu_custom_call.1} parent=5 // pred_check_branch
        %2516 = sbr.rel (%p2514) target = $region72
      $region71: #{tpu_custom_call.1} parent=5 // pred_region
        %s2517 = ssub.s32 %s20, 2
        // Predicated region
        $region73: #{tpu_custom_call.1} parent=71 // pred_check
          %p2518 = pneg %p285
        $region74: #{tpu_custom_call.1} parent=71 // pred_check_branch
          %2520 = sbr.rel (%p2518) target = $region76
        $region75: #{tpu_custom_call.1} parent=71 // pred_region
          %s2521 = sand.u32 %s270, 1
          %s2522 = scalar_lea.sflag [#allocation3], %s2521
          %s2523 = sand.u32 %s270, 1
          %s2524 = smul.addr %s2523, 8
          %s2525 = scalar_lea.vmem [#allocation2], %s2524
          %2526 = dma.done %s2522, 128
        $region76: #{tpu_custom_call.1} parent=71 // pred_fallthru
          _
      $region72: #{tpu_custom_call.1} parent=5 // pred_fallthru
        _
    $region6: #{tpu_custom_call.1} parent=1 // loop_footer
      %s24 = sadd.s32 1, %s20
    $region7: #{tpu_custom_call.1} parent=1 // loop_footer_branch
      %19 = sbr.rel target = $region3
    $region8: #{tpu_custom_call.1} parent=1 // loop_exit
      _
    %2527 = vsyncpa [#allocation3], 1
    %s2528 = scalar_lea.sflag [#allocation3], 1
    %2529 = vsyncpa %s2528, 1

</llo_original>
